<compile_context>
chip_gen: v7x
topology: tpu7x:2x2x1
jax: 0.10.0
libtpu: 0.0.40
codegen_flags: <defaults>
</compile_context>

<pallas_src>
import math

import jax
import jax.numpy as jnp
from jax import lax
from jax.experimental import pallas as pl
from jax.experimental.pallas import tpu as pltpu

# Small, module-consistent shapes.
D_MODEL = 32
NUM_HEADS = 4
NUM_FFN = 64
NUM_LAYERS = 2
VOCAB = 50
SEQ = 8
BATCH = 2
HEAD_DIM = D_MODEL // NUM_HEADS
BS = BATCH * SEQ
LN_EPS = 1e-5  # PyTorch nn.LayerNorm default


def _layernorm(y, gamma, beta):
    mu = jnp.mean(y, axis=-1, keepdims=True)
    var = jnp.mean(jnp.square(y - mu), axis=-1, keepdims=True)
    return (y - mu) * lax.rsqrt(var + LN_EPS) * gamma + beta


# ----------------------------------------------------------------------------
# Pallas kernel: all encoder layers for the whole (batch-folded) activation
# slab in a single grid step.
# ----------------------------------------------------------------------------
def encoder_kernel(x_ref, mask_ref,
                   wqkv_ref, bqkv_ref, wo_ref,
                   w1_ref, b1_ref, w2_ref, vecs_ref,
                   out_ref):
    x = x_ref[...]                       # (B*S, D) embeddings*sqrt(D) + PE
    mask_val = mask_ref[...]             # (B*S, B*S) 0 / -1e6 / -1e30
    keep = mask_val == 0.0
    scale = 1.0 / math.sqrt(HEAD_DIM)

    for l in range(NUM_LAYERS):          # all layers fused, static unroll
        wqkv = wqkv_ref[l]               # (D, 3D)
        bqkv = bqkv_ref[l]               # (1, 3D)
        wo = wo_ref[l]                   # (D, D)
        vec = vecs_ref[l]                # (6, D) packed vectors
        bo, g1, be1 = vec[0:1, :], vec[1:2, :], vec[2:3, :]
        b2, g2, be2 = vec[3:4, :], vec[4:5, :], vec[5:6, :]

        # Fused Q|K|V projection: one (16,32)x(32,96) MXU push.
        qkv = jnp.dot(x, wqkv, preferred_element_type=jnp.float32) + bqkv

        attn = None
        for h in range(NUM_HEADS):       # static unrolled head loop
            lo = h * HEAD_DIM
            qh = qkv[:, lo:lo + HEAD_DIM]
            kh = qkv[:, D_MODEL + lo:D_MODEL + lo + HEAD_DIM]
            vh = qkv[:, 2 * D_MODEL + lo:2 * D_MODEL + lo + HEAD_DIM]
            # Contract last dims directly (no explicit kh.T materialization);
            # all batch rows go through one (16,16) score matrix per head, the
            # cross-batch entries are killed by the precomputed mask.
            scores = lax.dot_general(
                qh, kh, (((1,), (1,)), ((), ())),
                preferred_element_type=jnp.float32) * scale
            scores = jnp.where(keep, scores, mask_val)
            p = jnp.exp(scores - jnp.max(scores, axis=-1, keepdims=True))
            p = p / jnp.sum(p, axis=-1, keepdims=True)   # exact reciprocal
            oh = jnp.dot(p, vh, preferred_element_type=jnp.float32)   # (BS, HD)
            # Accumulate through a sublane slice of W_o (no lane-axis concat).
            contrib = jnp.dot(oh, wo[lo:lo + HEAD_DIM, :],
                              preferred_element_type=jnp.float32)     # (BS, D)
            attn = contrib if attn is None else attn + contrib
        attn = attn + bo

        # --- Add & Norm 1 ---
        ffn_in = _layernorm(x + attn, g1, be1)

        # --- Position-wise FFN (Linear -> ReLU -> Linear) ---
        h1 = jnp.maximum(
            jnp.dot(ffn_in, w1_ref[l], preferred_element_type=jnp.float32)
            + b1_ref[l], 0.0)
        ffn_out = jnp.dot(h1, w2_ref[l], preferred_element_type=jnp.float32) + b2

        # --- Add & Norm 2 ---
        x = _layernorm(ffn_in + ffn_out, g2, be2)

    out_ref[...] = x


# ----------------------------------------------------------------------------
# Host-side packing + single pallas_call wrapper.
# ----------------------------------------------------------------------------
def pack_params(params):
    def stack(k):
        return jnp.stack([lp[k] for lp in params['layers']])

    wqkv = jnp.stack([jnp.concatenate([lp['wq'], lp['wk'], lp['wv']], axis=1)
                      for lp in params['layers']])                  # (L, D, 3D)
    bqkv = jnp.stack([jnp.concatenate([lp['bq'], lp['bk'], lp['bv']], axis=1)
                      for lp in params['layers']])                  # (L, 1, 3D)
    vecs = jnp.stack([jnp.concatenate([lp['bo'], lp['g1'], lp['be1'],
                                       lp['b2'], lp['g2'], lp['be2']], axis=0)
                      for lp in params['layers']])                  # (L, 6, D)
    return {
        'wqkv': wqkv, 'bqkv': bqkv,
        'wo': stack('wo'),
        'w1': stack('w1'), 'b1': stack('b1'),
        'w2': stack('w2'),
        'vecs': vecs,
    }


def encoder_forward(params, enc_in, valid_lens):
    """enc_in: (B, S) int32 token ids, valid_lens: (B,) int32."""
    B, S = enc_in.shape
    pk = pack_params(params)
    pe = params['pe'][:S]                                           # (S, D)

    # Embedding gather + scale + positional encoding in XLA (cheap; removes
    # the scalar-addressed per-token copies from the kernel).
    x = params['embedding'][enc_in] * math.sqrt(D_MODEL) + pe[None, :, :]
    x = x.reshape(B * S, D_MODEL).astype(jnp.float32)

    # Precompute (B*S, B*S) attention mask values for the batch-folded layout:
    #   0.0   -> keep the score (same batch, key position < valid_len)
    #   -1e6  -> same batch but padded key (matches the reference mask value)
    #   -1e30 -> cross-batch key (underflows to exactly 0 after exp)
    rows = jnp.arange(B * S, dtype=jnp.int32)
    rb = rows // S
    cp = rows % S
    same = rb[:, None] == rb[None, :]
    pos_ok = cp[None, :] < valid_lens[rb][:, None]
    mask_val = jnp.where(same & pos_ok, 0.0,
                         jnp.where(same, -1e6, -1e30)).astype(jnp.float32)

    def cspec(shape):
        nd = len(shape)
        return pl.BlockSpec(shape, lambda *_: (0,) * nd)            # VMEM-resident

    flops = 2 * NUM_LAYERS * (
        B * S * D_MODEL * 3 * D_MODEL                               # QKV
        + NUM_HEADS * (2 * (B * S) * (B * S) * HEAD_DIM             # scores + PV
                       + B * S * HEAD_DIM * D_MODEL)                # W_o slices
        + 2 * B * S * D_MODEL * NUM_FFN)                            # FFN
    weight_bytes = 4 * NUM_LAYERS * (
        D_MODEL * 3 * D_MODEL + 3 * D_MODEL + D_MODEL * D_MODEL
        + D_MODEL * NUM_FFN + NUM_FFN + NUM_FFN * D_MODEL + 6 * D_MODEL)
    act_bytes = 4 * (2 * B * S * D_MODEL + (B * S) * (B * S))
    cost = pl.CostEstimate(flops=flops,
                           transcendentals=NUM_LAYERS * NUM_HEADS * (B * S) ** 2,
                           bytes_accessed=weight_bytes + act_bytes)

    out = pl.pallas_call(
        encoder_kernel,
        out_shape=jax.ShapeDtypeStruct((B * S, D_MODEL), jnp.float32),
        grid=(1,),                                                  # single step
        in_specs=[
            cspec((B * S, D_MODEL)),                           # activations
            cspec((B * S, B * S)),                             # attention mask
            cspec((NUM_LAYERS, D_MODEL, 3 * D_MODEL)),         # wqkv (fused)
            cspec((NUM_LAYERS, 1, 3 * D_MODEL)),               # bqkv (fused)
            cspec((NUM_LAYERS, D_MODEL, D_MODEL)),             # wo
            cspec((NUM_LAYERS, D_MODEL, NUM_FFN)),             # ffn w1
            cspec((NUM_LAYERS, 1, NUM_FFN)),                   # ffn b1
            cspec((NUM_LAYERS, NUM_FFN, D_MODEL)),             # ffn w2
            cspec((NUM_LAYERS, 6, D_MODEL)),                   # bo/g1/be1/b2/g2/be2
        ],
        out_specs=cspec((B * S, D_MODEL)),
        compiler_params=pltpu.CompilerParams(
            dimension_semantics=("arbitrary",)),
        cost_estimate=cost,
    )(x, mask_val, pk['wqkv'], pk['bqkv'], pk['wo'],
      pk['w1'], pk['b1'], pk['w2'], pk['vecs'])
    return out.reshape(B, S, D_MODEL)


# ----------------------------------------------------------------------------
# Sinusoidal positional-encoding table (host side, built once).
# ----------------------------------------------------------------------------
def positional_encoding_table(max_len, d_model):
    pos = jnp.arange(max_len, dtype=jnp.float32)[:, None]
    i = jnp.arange(0, d_model, 2, dtype=jnp.float32)
    angles = pos / jnp.power(10000.0, i / d_model)
    pe = jnp.zeros((max_len, d_model), dtype=jnp.float32)
    pe = pe.at[:, 0::2].set(jnp.sin(angles))
    pe = pe.at[:, 1::2].set(jnp.cos(angles))
    return pe


# Pure-JAX reference for a correctness check of the Pallas path.
def encoder_forward_ref(params, enc_in, valid_lens):
    emb = params['embedding'][enc_in] * math.sqrt(D_MODEL)
    x = emb + params['pe'][: enc_in.shape[1]][None, :, :]
    S = x.shape[1]
    for p in params['layers']:
        outs = []
        for b in range(x.shape[0]):
            xb = x[b]
            q = xb @ p['wq'] + p['bq']
            k = xb @ p['wk'] + p['bk']
            v = xb @ p['wv'] + p['bv']
            valid = (jnp.arange(S)[None, :] < valid_lens[b])
            heads = []
            for h in range(NUM_HEADS):
                sl = slice(h * HEAD_DIM, (h + 1) * HEAD_DIM)
                s = (q[:, sl] @ k[:, sl].T) / math.sqrt(HEAD_DIM)
                s = jnp.where(valid, s, -1e6)
                heads.append(jax.nn.softmax(s, axis=-1) @ v[:, sl])
            attn = jnp.concatenate(heads, -1) @ p['wo'] + p['bo']
            ffn_in = _layernorm(xb + attn, p['g1'], p['be1'])
            h1 = jax.nn.relu(ffn_in @ p['w1'] + p['b1'])
            ffn_out = h1 @ p['w2'] + p['b2']
            outs.append(_layernorm(ffn_in + ffn_out, p['g2'], p['be2']))
        x = jnp.stack(outs)
    return x


def init_params(key):
    keys = jax.random.split(key, 1 + NUM_LAYERS)

    def dense(k, fan_in, fan_out):
        return jax.random.normal(k, (fan_in, fan_out), jnp.float32) * 0.05

    params = {
        'embedding': jax.random.normal(keys[0], (VOCAB, D_MODEL), jnp.float32),
        'pe': positional_encoding_table(1000, D_MODEL),
        'layers': [],
    }
    for i in range(NUM_LAYERS):
        lk = jax.random.split(keys[1 + i], 10)
        layer = {
            'wq': dense(lk[0], D_MODEL, D_MODEL),
            'bq': jax.random.normal(lk[6], (1, D_MODEL), jnp.float32) * 0.01,
            'wk': dense(lk[1], D_MODEL, D_MODEL),
            'bk': jax.random.normal(lk[7], (1, D_MODEL), jnp.float32) * 0.01,
            'wv': dense(lk[2], D_MODEL, D_MODEL),
            'bv': jax.random.normal(lk[8], (1, D_MODEL), jnp.float32) * 0.01,
            'wo': dense(lk[3], D_MODEL, D_MODEL),
            'bo': jnp.zeros((1, D_MODEL), jnp.float32),
            'g1': jnp.ones((1, D_MODEL), jnp.float32),
            'be1': jnp.zeros((1, D_MODEL), jnp.float32),
            'w1': dense(lk[4], D_MODEL, NUM_FFN),
            'b1': jax.random.normal(lk[9], (1, NUM_FFN), jnp.float32) * 0.01,
            'w2': dense(lk[5], NUM_FFN, D_MODEL),
            'b2': jnp.zeros((1, D_MODEL), jnp.float32),
            'g2': jnp.ones((1, D_MODEL), jnp.float32),
            'be2': jnp.zeros((1, D_MODEL), jnp.float32),
        }
        params['layers'].append(layer)
    return params


if __name__ == "__main__":
    key = jax.random.PRNGKey(0)
    k_param, k_tok = jax.random.split(key)
    params = init_params(k_param)

    enc_in = jax.random.randint(k_tok, (BATCH, SEQ), 0, VOCAB, dtype=jnp.int32)
    valid_lens = jnp.array([SEQ, SEQ // 2], dtype=jnp.int32)

    out = jax.block_until_ready(encoder_forward(params, enc_in, valid_lens))

    ref = encoder_forward_ref(params, enc_in, valid_lens)
    assert out.shape == (BATCH, SEQ, D_MODEL)
    # Exact softmax normalization now -> tight tolerance.
    assert jnp.allclose(out, ref, atol=1e-5, rtol=1e-5), \
        "Pallas output mismatch vs JAX reference"

    print("KERNEL_OK")
</pallas_src>

<mosaic_0001>
module attributes {stable_mosaic.version = 11 : i64} {
  func.func @encoder_kernel(%arg0: i32, %arg1: memref<16x32xf32, #tpu.memory_space<vmem>>, %arg2: memref<16x16xf32, #tpu.memory_space<vmem>>, %arg3: memref<2x32x96xf32, #tpu.memory_space<vmem>>, %arg4: memref<2x1x96xf32, #tpu.memory_space<vmem>>, %arg5: memref<2x32x32xf32, #tpu.memory_space<vmem>>, %arg6: memref<2x32x64xf32, #tpu.memory_space<vmem>>, %arg7: memref<2x1x64xf32, #tpu.memory_space<vmem>>, %arg8: memref<2x64x32xf32, #tpu.memory_space<vmem>>, %arg9: memref<2x6x32xf32, #tpu.memory_space<vmem>>, %arg10: memref<16x32xf32, #tpu.memory_space<vmem>>) attributes {dimension_semantics = [#tpu.dimension_semantics<arbitrary>], iteration_bounds = array<i64: 1>, scalar_prefetch = 0 : i64, scratch_operands = 0 : i64, tpu.core_type = #tpu.core_type<tc>, window_params = [{pipeline_mode = #tpu.pipeline_mode<synchronous>, transform_indices = @transform_0, window_bounds = array<i64: 16, 32>}, {pipeline_mode = #tpu.pipeline_mode<synchronous>, transform_indices = @transform_1, window_bounds = array<i64: 16, 16>}, {pipeline_mode = #tpu.pipeline_mode<synchronous>, transform_indices = @transform_2, window_bounds = array<i64: 2, 32, 96>}, {pipeline_mode = #tpu.pipeline_mode<synchronous>, transform_indices = @transform_3, window_bounds = array<i64: 2, 1, 96>}, {pipeline_mode = #tpu.pipeline_mode<synchronous>, transform_indices = @transform_4, window_bounds = array<i64: 2, 32, 32>}, {pipeline_mode = #tpu.pipeline_mode<synchronous>, transform_indices = @transform_5, window_bounds = array<i64: 2, 32, 64>}, {pipeline_mode = #tpu.pipeline_mode<synchronous>, transform_indices = @transform_6, window_bounds = array<i64: 2, 1, 64>}, {pipeline_mode = #tpu.pipeline_mode<synchronous>, transform_indices = @transform_7, window_bounds = array<i64: 2, 64, 32>}, {pipeline_mode = #tpu.pipeline_mode<synchronous>, transform_indices = @transform_8, window_bounds = array<i64: 2, 6, 32>}, {pipeline_mode = #tpu.pipeline_mode<synchronous>, transform_indices = @transform_9, window_bounds = array<i64: 16, 32>}]} {
    %c0 = arith.constant 0 : index
    %c0_0 = arith.constant 0 : index
    %0 = vector.load %arg1[%c0, %c0_0] : memref<16x32xf32, #tpu.memory_space<vmem>>, vector<16x32xf32>
    %c0_1 = arith.constant 0 : index
    %c0_2 = arith.constant 0 : index
    %1 = vector.load %arg2[%c0_1, %c0_2] : memref<16x16xf32, #tpu.memory_space<vmem>>, vector<16x16xf32>
    %cst = arith.constant 0.000000e+00 : f32
    %2 = vector.broadcast %cst : f32 to vector<16x16xf32>
    %3 = arith.cmpf oeq, %1, %2 : vector<16x16xf32>
    %c0_3 = arith.constant 0 : index
    %c0_4 = arith.constant 0 : index
    %c0_5 = arith.constant 0 : index
    %4 = vector.load %arg3[%c0_3, %c0_4, %c0_5] : memref<2x32x96xf32, #tpu.memory_space<vmem>>, vector<1x32x96xf32>
    %5 = vector.shape_cast %4 : vector<1x32x96xf32> to vector<32x96xf32>
    %c0_6 = arith.constant 0 : index
    %c0_7 = arith.constant 0 : index
    %c0_8 = arith.constant 0 : index
    %6 = vector.load %arg4[%c0_6, %c0_7, %c0_8] : memref<2x1x96xf32, #tpu.memory_space<vmem>>, vector<1x1x96xf32>
    %7 = vector.shape_cast %6 : vector<1x1x96xf32> to vector<1x96xf32>
    %c0_9 = arith.constant 0 : index
    %c0_10 = arith.constant 0 : index
    %c0_11 = arith.constant 0 : index
    %8 = vector.load %arg5[%c0_9, %c0_10, %c0_11] : memref<2x32x32xf32, #tpu.memory_space<vmem>>, vector<1x32x32xf32>
    %9 = vector.shape_cast %8 : vector<1x32x32xf32> to vector<32x32xf32>
    %c0_12 = arith.constant 0 : index
    %c0_13 = arith.constant 0 : index
    %c0_14 = arith.constant 0 : index
    %10 = vector.load %arg9[%c0_12, %c0_13, %c0_14] : memref<2x6x32xf32, #tpu.memory_space<vmem>>, vector<1x6x32xf32>
    %11 = vector.shape_cast %10 : vector<1x6x32xf32> to vector<6x32xf32>
    %12 = vector.extract_strided_slice %11 {offsets = [0, 0], sizes = [1, 32], strides = [1, 1]} : vector<6x32xf32> to vector<1x32xf32>
    %13 = vector.extract_strided_slice %11 {offsets = [1, 0], sizes = [1, 32], strides = [1, 1]} : vector<6x32xf32> to vector<1x32xf32>
    %14 = vector.extract_strided_slice %11 {offsets = [2, 0], sizes = [1, 32], strides = [1, 1]} : vector<6x32xf32> to vector<1x32xf32>
    %15 = vector.extract_strided_slice %11 {offsets = [3, 0], sizes = [1, 32], strides = [1, 1]} : vector<6x32xf32> to vector<1x32xf32>
    %16 = vector.extract_strided_slice %11 {offsets = [4, 0], sizes = [1, 32], strides = [1, 1]} : vector<6x32xf32> to vector<1x32xf32>
    %17 = vector.extract_strided_slice %11 {offsets = [5, 0], sizes = [1, 32], strides = [1, 1]} : vector<6x32xf32> to vector<1x32xf32>
    %cst_15 = arith.constant dense<0.000000e+00> : vector<16x96xf32>
    %18 = tpu.matmul %0, %5, %cst_15 {dimension_numbers = #tpu.dot_dimension_numbers<[1], [0], [0], [1], [0, 0, 1, 1], [], []>} : vector<16x32xf32>, vector<32x96xf32>, vector<16x96xf32> -> vector<16x96xf32>
    %19 = vector.broadcast %7 : vector<1x96xf32> to vector<16x96xf32>
    %20 = arith.addf %18, %19 : vector<16x96xf32>
    %21 = vector.extract_strided_slice %20 {offsets = [0, 0], sizes = [16, 8], strides = [1, 1]} : vector<16x96xf32> to vector<16x8xf32>
    %22 = vector.extract_strided_slice %20 {offsets = [0, 32], sizes = [16, 8], strides = [1, 1]} : vector<16x96xf32> to vector<16x8xf32>
    %23 = vector.extract_strided_slice %20 {offsets = [0, 64], sizes = [16, 8], strides = [1, 1]} : vector<16x96xf32> to vector<16x8xf32>
    %cst_16 = arith.constant dense<0.000000e+00> : vector<16x16xf32>
    %24 = tpu.matmul %21, %22, %cst_16 {dimension_numbers = #tpu.dot_dimension_numbers<[1], [1], [0], [0], [0, 0, 1, 0], [], []>} : vector<16x8xf32>, vector<16x8xf32>, vector<16x16xf32> -> vector<16x16xf32>
    %cst_17 = arith.constant 0.353553385 : f32
    %25 = vector.broadcast %cst_17 : f32 to vector<16x16xf32>
    %26 = arith.mulf %24, %25 : vector<16x16xf32>
    %27 = arith.select %3, %26, %1 : vector<16x16xi1>, vector<16x16xf32>
    %cst_18 = arith.constant dense<0xFF800000> : vector<16xf32>
    %28 = vector.multi_reduction <maximumf>, %27, %cst_18 [1] : vector<16x16xf32> to vector<16xf32>
    %29 = vector.shape_cast %28 : vector<16xf32> to vector<16x1xf32>
    %30 = vector.broadcast %29 : vector<16x1xf32> to vector<16x16xf32>
    %31 = arith.subf %27, %30 : vector<16x16xf32>
    %32 = math.exp %31 : vector<16x16xf32>
    %cst_19 = arith.constant dense<0.000000e+00> : vector<16xf32>
    %33 = vector.multi_reduction <add>, %32, %cst_19 [1] : vector<16x16xf32> to vector<16xf32>
    %34 = vector.shape_cast %33 : vector<16xf32> to vector<16x1xf32>
    %35 = vector.broadcast %34 : vector<16x1xf32> to vector<16x16xf32>
    %36 = arith.divf %32, %35 : vector<16x16xf32>
    %cst_20 = arith.constant dense<0.000000e+00> : vector<16x8xf32>
    %37 = tpu.matmul %36, %23, %cst_20 {dimension_numbers = #tpu.dot_dimension_numbers<[1], [0], [0], [1], [0, 0, 1, 1], [], []>} : vector<16x16xf32>, vector<16x8xf32>, vector<16x8xf32> -> vector<16x8xf32>
    %38 = vector.extract_strided_slice %9 {offsets = [0, 0], sizes = [8, 32], strides = [1, 1]} : vector<32x32xf32> to vector<8x32xf32>
    %cst_21 = arith.constant dense<0.000000e+00> : vector<16x32xf32>
    %39 = tpu.matmul %37, %38, %cst_21 {dimension_numbers = #tpu.dot_dimension_numbers<[1], [0], [0], [1], [0, 0, 1, 1], [], []>} : vector<16x8xf32>, vector<8x32xf32>, vector<16x32xf32> -> vector<16x32xf32>
    %40 = vector.extract_strided_slice %20 {offsets = [0, 8], sizes = [16, 8], strides = [1, 1]} : vector<16x96xf32> to vector<16x8xf32>
    %41 = vector.extract_strided_slice %20 {offsets = [0, 40], sizes = [16, 8], strides = [1, 1]} : vector<16x96xf32> to vector<16x8xf32>
    %42 = vector.extract_strided_slice %20 {offsets = [0, 72], sizes = [16, 8], strides = [1, 1]} : vector<16x96xf32> to vector<16x8xf32>
    %cst_22 = arith.constant dense<0.000000e+00> : vector<16x16xf32>
    %43 = tpu.matmul %40, %41, %cst_22 {dimension_numbers = #tpu.dot_dimension_numbers<[1], [1], [0], [0], [0, 0, 1, 0], [], []>} : vector<16x8xf32>, vector<16x8xf32>, vector<16x16xf32> -> vector<16x16xf32>
    %cst_23 = arith.constant 0.353553385 : f32
    %44 = vector.broadcast %cst_23 : f32 to vector<16x16xf32>
    %45 = arith.mulf %43, %44 : vector<16x16xf32>
    %46 = arith.select %3, %45, %1 : vector<16x16xi1>, vector<16x16xf32>
    %cst_24 = arith.constant dense<0xFF800000> : vector<16xf32>
    %47 = vector.multi_reduction <maximumf>, %46, %cst_24 [1] : vector<16x16xf32> to vector<16xf32>
    %48 = vector.shape_cast %47 : vector<16xf32> to vector<16x1xf32>
    %49 = vector.broadcast %48 : vector<16x1xf32> to vector<16x16xf32>
    %50 = arith.subf %46, %49 : vector<16x16xf32>
    %51 = math.exp %50 : vector<16x16xf32>
    %cst_25 = arith.constant dense<0.000000e+00> : vector<16xf32>
    %52 = vector.multi_reduction <add>, %51, %cst_25 [1] : vector<16x16xf32> to vector<16xf32>
    %53 = vector.shape_cast %52 : vector<16xf32> to vector<16x1xf32>
    %54 = vector.broadcast %53 : vector<16x1xf32> to vector<16x16xf32>
    %55 = arith.divf %51, %54 : vector<16x16xf32>
    %cst_26 = arith.constant dense<0.000000e+00> : vector<16x8xf32>
    %56 = tpu.matmul %55, %42, %cst_26 {dimension_numbers = #tpu.dot_dimension_numbers<[1], [0], [0], [1], [0, 0, 1, 1], [], []>} : vector<16x16xf32>, vector<16x8xf32>, vector<16x8xf32> -> vector<16x8xf32>
    %57 = vector.extract_strided_slice %9 {offsets = [8, 0], sizes = [8, 32], strides = [1, 1]} : vector<32x32xf32> to vector<8x32xf32>
    %cst_27 = arith.constant dense<0.000000e+00> : vector<16x32xf32>
    %58 = tpu.matmul %56, %57, %cst_27 {dimension_numbers = #tpu.dot_dimension_numbers<[1], [0], [0], [1], [0, 0, 1, 1], [], []>} : vector<16x8xf32>, vector<8x32xf32>, vector<16x32xf32> -> vector<16x32xf32>
    %59 = arith.addf %39, %58 : vector<16x32xf32>
    %60 = vector.extract_strided_slice %20 {offsets = [0, 16], sizes = [16, 8], strides = [1, 1]} : vector<16x96xf32> to vector<16x8xf32>
    %61 = vector.extract_strided_slice %20 {offsets = [0, 48], sizes = [16, 8], strides = [1, 1]} : vector<16x96xf32> to vector<16x8xf32>
    %62 = vector.extract_strided_slice %20 {offsets = [0, 80], sizes = [16, 8], strides = [1, 1]} : vector<16x96xf32> to vector<16x8xf32>
    %cst_28 = arith.constant dense<0.000000e+00> : vector<16x16xf32>
    %63 = tpu.matmul %60, %61, %cst_28 {dimension_numbers = #tpu.dot_dimension_numbers<[1], [1], [0], [0], [0, 0, 1, 0], [], []>} : vector<16x8xf32>, vector<16x8xf32>, vector<16x16xf32> -> vector<16x16xf32>
    %cst_29 = arith.constant 0.353553385 : f32
    %64 = vector.broadcast %cst_29 : f32 to vector<16x16xf32>
    %65 = arith.mulf %63, %64 : vector<16x16xf32>
    %66 = arith.select %3, %65, %1 : vector<16x16xi1>, vector<16x16xf32>
    %cst_30 = arith.constant dense<0xFF800000> : vector<16xf32>
    %67 = vector.multi_reduction <maximumf>, %66, %cst_30 [1] : vector<16x16xf32> to vector<16xf32>
    %68 = vector.shape_cast %67 : vector<16xf32> to vector<16x1xf32>
    %69 = vector.broadcast %68 : vector<16x1xf32> to vector<16x16xf32>
    %70 = arith.subf %66, %69 : vector<16x16xf32>
    %71 = math.exp %70 : vector<16x16xf32>
    %cst_31 = arith.constant dense<0.000000e+00> : vector<16xf32>
    %72 = vector.multi_reduction <add>, %71, %cst_31 [1] : vector<16x16xf32> to vector<16xf32>
    %73 = vector.shape_cast %72 : vector<16xf32> to vector<16x1xf32>
    %74 = vector.broadcast %73 : vector<16x1xf32> to vector<16x16xf32>
    %75 = arith.divf %71, %74 : vector<16x16xf32>
    %cst_32 = arith.constant dense<0.000000e+00> : vector<16x8xf32>
    %76 = tpu.matmul %75, %62, %cst_32 {dimension_numbers = #tpu.dot_dimension_numbers<[1], [0], [0], [1], [0, 0, 1, 1], [], []>} : vector<16x16xf32>, vector<16x8xf32>, vector<16x8xf32> -> vector<16x8xf32>
    %77 = vector.extract_strided_slice %9 {offsets = [16, 0], sizes = [8, 32], strides = [1, 1]} : vector<32x32xf32> to vector<8x32xf32>
    %cst_33 = arith.constant dense<0.000000e+00> : vector<16x32xf32>
    %78 = tpu.matmul %76, %77, %cst_33 {dimension_numbers = #tpu.dot_dimension_numbers<[1], [0], [0], [1], [0, 0, 1, 1], [], []>} : vector<16x8xf32>, vector<8x32xf32>, vector<16x32xf32> -> vector<16x32xf32>
    %79 = arith.addf %59, %78 : vector<16x32xf32>
    %80 = vector.extract_strided_slice %20 {offsets = [0, 24], sizes = [16, 8], strides = [1, 1]} : vector<16x96xf32> to vector<16x8xf32>
    %81 = vector.extract_strided_slice %20 {offsets = [0, 56], sizes = [16, 8], strides = [1, 1]} : vector<16x96xf32> to vector<16x8xf32>
    %82 = vector.extract_strided_slice %20 {offsets = [0, 88], sizes = [16, 8], strides = [1, 1]} : vector<16x96xf32> to vector<16x8xf32>
    %cst_34 = arith.constant dense<0.000000e+00> : vector<16x16xf32>
    %83 = tpu.matmul %80, %81, %cst_34 {dimension_numbers = #tpu.dot_dimension_numbers<[1], [1], [0], [0], [0, 0, 1, 0], [], []>} : vector<16x8xf32>, vector<16x8xf32>, vector<16x16xf32> -> vector<16x16xf32>
    %cst_35 = arith.constant 0.353553385 : f32
    %84 = vector.broadcast %cst_35 : f32 to vector<16x16xf32>
    %85 = arith.mulf %83, %84 : vector<16x16xf32>
    %86 = arith.select %3, %85, %1 : vector<16x16xi1>, vector<16x16xf32>
    %cst_36 = arith.constant dense<0xFF800000> : vector<16xf32>
    %87 = vector.multi_reduction <maximumf>, %86, %cst_36 [1] : vector<16x16xf32> to vector<16xf32>
    %88 = vector.shape_cast %87 : vector<16xf32> to vector<16x1xf32>
    %89 = vector.broadcast %88 : vector<16x1xf32> to vector<16x16xf32>
    %90 = arith.subf %86, %89 : vector<16x16xf32>
    %91 = math.exp %90 : vector<16x16xf32>
    %cst_37 = arith.constant dense<0.000000e+00> : vector<16xf32>
    %92 = vector.multi_reduction <add>, %91, %cst_37 [1] : vector<16x16xf32> to vector<16xf32>
    %93 = vector.shape_cast %92 : vector<16xf32> to vector<16x1xf32>
    %94 = vector.broadcast %93 : vector<16x1xf32> to vector<16x16xf32>
    %95 = arith.divf %91, %94 : vector<16x16xf32>
    %cst_38 = arith.constant dense<0.000000e+00> : vector<16x8xf32>
    %96 = tpu.matmul %95, %82, %cst_38 {dimension_numbers = #tpu.dot_dimension_numbers<[1], [0], [0], [1], [0, 0, 1, 1], [], []>} : vector<16x16xf32>, vector<16x8xf32>, vector<16x8xf32> -> vector<16x8xf32>
    %97 = vector.extract_strided_slice %9 {offsets = [24, 0], sizes = [8, 32], strides = [1, 1]} : vector<32x32xf32> to vector<8x32xf32>
    %cst_39 = arith.constant dense<0.000000e+00> : vector<16x32xf32>
    %98 = tpu.matmul %96, %97, %cst_39 {dimension_numbers = #tpu.dot_dimension_numbers<[1], [0], [0], [1], [0, 0, 1, 1], [], []>} : vector<16x8xf32>, vector<8x32xf32>, vector<16x32xf32> -> vector<16x32xf32>
    %99 = arith.addf %79, %98 : vector<16x32xf32>
    %100 = vector.broadcast %12 : vector<1x32xf32> to vector<16x32xf32>
    %101 = arith.addf %99, %100 : vector<16x32xf32>
    %102 = arith.addf %0, %101 : vector<16x32xf32>
    %cst_40 = arith.constant dense<0.000000e+00> : vector<16xf32>
    %103 = vector.multi_reduction <add>, %102, %cst_40 [1] : vector<16x32xf32> to vector<16xf32>
    %104 = vector.shape_cast %103 : vector<16xf32> to vector<16x1xf32>
    %cst_41 = arith.constant 3.200000e+01 : f32
    %105 = vector.broadcast %cst_41 : f32 to vector<16x1xf32>
    %106 = arith.divf %104, %105 : vector<16x1xf32>
    %107 = vector.broadcast %106 : vector<16x1xf32> to vector<16x32xf32>
    %108 = arith.subf %102, %107 : vector<16x32xf32>
    %109 = arith.mulf %108, %108 : vector<16x32xf32>
    %cst_42 = arith.constant dense<0.000000e+00> : vector<16xf32>
    %110 = vector.multi_reduction <add>, %109, %cst_42 [1] : vector<16x32xf32> to vector<16xf32>
    %111 = vector.shape_cast %110 : vector<16xf32> to vector<16x1xf32>
    %cst_43 = arith.constant 3.200000e+01 : f32
    %112 = vector.broadcast %cst_43 : f32 to vector<16x1xf32>
    %113 = arith.divf %111, %112 : vector<16x1xf32>
    %114 = vector.broadcast %106 : vector<16x1xf32> to vector<16x32xf32>
    %115 = arith.subf %102, %114 : vector<16x32xf32>
    %cst_44 = arith.constant 9.99999974E-6 : f32
    %116 = vector.broadcast %cst_44 : f32 to vector<16x1xf32>
    %117 = arith.addf %113, %116 : vector<16x1xf32>
    %118 = math.rsqrt %117 : vector<16x1xf32>
    %119 = vector.broadcast %118 : vector<16x1xf32> to vector<16x32xf32>
    %120 = arith.mulf %115, %119 : vector<16x32xf32>
    %121 = vector.broadcast %13 : vector<1x32xf32> to vector<16x32xf32>
    %122 = arith.mulf %120, %121 : vector<16x32xf32>
    %123 = vector.broadcast %14 : vector<1x32xf32> to vector<16x32xf32>
    %124 = arith.addf %122, %123 : vector<16x32xf32>
    %c0_45 = arith.constant 0 : index
    %c0_46 = arith.constant 0 : index
    %c0_47 = arith.constant 0 : index
    %125 = vector.load %arg6[%c0_45, %c0_46, %c0_47] : memref<2x32x64xf32, #tpu.memory_space<vmem>>, vector<1x32x64xf32>
    %126 = vector.shape_cast %125 : vector<1x32x64xf32> to vector<32x64xf32>
    %cst_48 = arith.constant dense<0.000000e+00> : vector<16x64xf32>
    %127 = tpu.matmul %124, %126, %cst_48 {dimension_numbers = #tpu.dot_dimension_numbers<[1], [0], [0], [1], [0, 0, 1, 1], [], []>} : vector<16x32xf32>, vector<32x64xf32>, vector<16x64xf32> -> vector<16x64xf32>
    %c0_49 = arith.constant 0 : index
    %c0_50 = arith.constant 0 : index
    %c0_51 = arith.constant 0 : index
    %128 = vector.load %arg7[%c0_49, %c0_50, %c0_51] : memref<2x1x64xf32, #tpu.memory_space<vmem>>, vector<1x1x64xf32>
    %129 = vector.shape_cast %128 : vector<1x1x64xf32> to vector<1x64xf32>
    %130 = vector.broadcast %129 : vector<1x64xf32> to vector<16x64xf32>
    %131 = arith.addf %127, %130 : vector<16x64xf32>
    %cst_52 = arith.constant 0.000000e+00 : f32
    %132 = vector.broadcast %cst_52 : f32 to vector<16x64xf32>
    %133 = arith.maximumf %131, %132 : vector<16x64xf32>
    %c0_53 = arith.constant 0 : index
    %c0_54 = arith.constant 0 : index
    %c0_55 = arith.constant 0 : index
    %134 = vector.load %arg8[%c0_53, %c0_54, %c0_55] : memref<2x64x32xf32, #tpu.memory_space<vmem>>, vector<1x64x32xf32>
    %135 = vector.shape_cast %134 : vector<1x64x32xf32> to vector<64x32xf32>
    %cst_56 = arith.constant dense<0.000000e+00> : vector<16x32xf32>
    %136 = tpu.matmul %133, %135, %cst_56 {dimension_numbers = #tpu.dot_dimension_numbers<[1], [0], [0], [1], [0, 0, 1, 1], [], []>} : vector<16x64xf32>, vector<64x32xf32>, vector<16x32xf32> -> vector<16x32xf32>
    %137 = vector.broadcast %15 : vector<1x32xf32> to vector<16x32xf32>
    %138 = arith.addf %136, %137 : vector<16x32xf32>
    %139 = arith.addf %124, %138 : vector<16x32xf32>
    %cst_57 = arith.constant dense<0.000000e+00> : vector<16xf32>
    %140 = vector.multi_reduction <add>, %139, %cst_57 [1] : vector<16x32xf32> to vector<16xf32>
    %141 = vector.shape_cast %140 : vector<16xf32> to vector<16x1xf32>
    %cst_58 = arith.constant 3.200000e+01 : f32
    %142 = vector.broadcast %cst_58 : f32 to vector<16x1xf32>
    %143 = arith.divf %141, %142 : vector<16x1xf32>
    %144 = vector.broadcast %143 : vector<16x1xf32> to vector<16x32xf32>
    %145 = arith.subf %139, %144 : vector<16x32xf32>
    %146 = arith.mulf %145, %145 : vector<16x32xf32>
    %cst_59 = arith.constant dense<0.000000e+00> : vector<16xf32>
    %147 = vector.multi_reduction <add>, %146, %cst_59 [1] : vector<16x32xf32> to vector<16xf32>
    %148 = vector.shape_cast %147 : vector<16xf32> to vector<16x1xf32>
    %cst_60 = arith.constant 3.200000e+01 : f32
    %149 = vector.broadcast %cst_60 : f32 to vector<16x1xf32>
    %150 = arith.divf %148, %149 : vector<16x1xf32>
    %151 = vector.broadcast %143 : vector<16x1xf32> to vector<16x32xf32>
    %152 = arith.subf %139, %151 : vector<16x32xf32>
    %cst_61 = arith.constant 9.99999974E-6 : f32
    %153 = vector.broadcast %cst_61 : f32 to vector<16x1xf32>
    %154 = arith.addf %150, %153 : vector<16x1xf32>
    %155 = math.rsqrt %154 : vector<16x1xf32>
    %156 = vector.broadcast %155 : vector<16x1xf32> to vector<16x32xf32>
    %157 = arith.mulf %152, %156 : vector<16x32xf32>
    %158 = vector.broadcast %16 : vector<1x32xf32> to vector<16x32xf32>
    %159 = arith.mulf %157, %158 : vector<16x32xf32>
    %160 = vector.broadcast %17 : vector<1x32xf32> to vector<16x32xf32>
    %161 = arith.addf %159, %160 : vector<16x32xf32>
    %c1 = arith.constant 1 : index
    %c0_62 = arith.constant 0 : index
    %c0_63 = arith.constant 0 : index
    %162 = vector.load %arg3[%c1, %c0_62, %c0_63] : memref<2x32x96xf32, #tpu.memory_space<vmem>>, vector<1x32x96xf32>
    %163 = vector.shape_cast %162 : vector<1x32x96xf32> to vector<32x96xf32>
    %c1_64 = arith.constant 1 : index
    %c0_65 = arith.constant 0 : index
    %c0_66 = arith.constant 0 : index
    %164 = vector.load %arg4[%c1_64, %c0_65, %c0_66] : memref<2x1x96xf32, #tpu.memory_space<vmem>>, vector<1x1x96xf32>
    %165 = vector.shape_cast %164 : vector<1x1x96xf32> to vector<1x96xf32>
    %c1_67 = arith.constant 1 : index
    %c0_68 = arith.constant 0 : index
    %c0_69 = arith.constant 0 : index
    %166 = vector.load %arg5[%c1_67, %c0_68, %c0_69] : memref<2x32x32xf32, #tpu.memory_space<vmem>>, vector<1x32x32xf32>
    %167 = vector.shape_cast %166 : vector<1x32x32xf32> to vector<32x32xf32>
    %c1_70 = arith.constant 1 : index
    %c0_71 = arith.constant 0 : index
    %c0_72 = arith.constant 0 : index
    %168 = vector.load %arg9[%c1_70, %c0_71, %c0_72] : memref<2x6x32xf32, #tpu.memory_space<vmem>>, vector<1x6x32xf32>
    %169 = vector.shape_cast %168 : vector<1x6x32xf32> to vector<6x32xf32>
    %170 = vector.extract_strided_slice %169 {offsets = [0, 0], sizes = [1, 32], strides = [1, 1]} : vector<6x32xf32> to vector<1x32xf32>
    %171 = vector.extract_strided_slice %169 {offsets = [1, 0], sizes = [1, 32], strides = [1, 1]} : vector<6x32xf32> to vector<1x32xf32>
    %172 = vector.extract_strided_slice %169 {offsets = [2, 0], sizes = [1, 32], strides = [1, 1]} : vector<6x32xf32> to vector<1x32xf32>
    %173 = vector.extract_strided_slice %169 {offsets = [3, 0], sizes = [1, 32], strides = [1, 1]} : vector<6x32xf32> to vector<1x32xf32>
    %174 = vector.extract_strided_slice %169 {offsets = [4, 0], sizes = [1, 32], strides = [1, 1]} : vector<6x32xf32> to vector<1x32xf32>
    %175 = vector.extract_strided_slice %169 {offsets = [5, 0], sizes = [1, 32], strides = [1, 1]} : vector<6x32xf32> to vector<1x32xf32>
    %cst_73 = arith.constant dense<0.000000e+00> : vector<16x96xf32>
    %176 = tpu.matmul %161, %163, %cst_73 {dimension_numbers = #tpu.dot_dimension_numbers<[1], [0], [0], [1], [0, 0, 1, 1], [], []>} : vector<16x32xf32>, vector<32x96xf32>, vector<16x96xf32> -> vector<16x96xf32>
    %177 = vector.broadcast %165 : vector<1x96xf32> to vector<16x96xf32>
    %178 = arith.addf %176, %177 : vector<16x96xf32>
    %179 = vector.extract_strided_slice %178 {offsets = [0, 0], sizes = [16, 8], strides = [1, 1]} : vector<16x96xf32> to vector<16x8xf32>
    %180 = vector.extract_strided_slice %178 {offsets = [0, 32], sizes = [16, 8], strides = [1, 1]} : vector<16x96xf32> to vector<16x8xf32>
    %181 = vector.extract_strided_slice %178 {offsets = [0, 64], sizes = [16, 8], strides = [1, 1]} : vector<16x96xf32> to vector<16x8xf32>
    %cst_74 = arith.constant dense<0.000000e+00> : vector<16x16xf32>
    %182 = tpu.matmul %179, %180, %cst_74 {dimension_numbers = #tpu.dot_dimension_numbers<[1], [1], [0], [0], [0, 0, 1, 0], [], []>} : vector<16x8xf32>, vector<16x8xf32>, vector<16x16xf32> -> vector<16x16xf32>
    %cst_75 = arith.constant 0.353553385 : f32
    %183 = vector.broadcast %cst_75 : f32 to vector<16x16xf32>
    %184 = arith.mulf %182, %183 : vector<16x16xf32>
    %185 = arith.select %3, %184, %1 : vector<16x16xi1>, vector<16x16xf32>
    %cst_76 = arith.constant dense<0xFF800000> : vector<16xf32>
    %186 = vector.multi_reduction <maximumf>, %185, %cst_76 [1] : vector<16x16xf32> to vector<16xf32>
    %187 = vector.shape_cast %186 : vector<16xf32> to vector<16x1xf32>
    %188 = vector.broadcast %187 : vector<16x1xf32> to vector<16x16xf32>
    %189 = arith.subf %185, %188 : vector<16x16xf32>
    %190 = math.exp %189 : vector<16x16xf32>
    %cst_77 = arith.constant dense<0.000000e+00> : vector<16xf32>
    %191 = vector.multi_reduction <add>, %190, %cst_77 [1] : vector<16x16xf32> to vector<16xf32>
    %192 = vector.shape_cast %191 : vector<16xf32> to vector<16x1xf32>
    %193 = vector.broadcast %192 : vector<16x1xf32> to vector<16x16xf32>
    %194 = arith.divf %190, %193 : vector<16x16xf32>
    %cst_78 = arith.constant dense<0.000000e+00> : vector<16x8xf32>
    %195 = tpu.matmul %194, %181, %cst_78 {dimension_numbers = #tpu.dot_dimension_numbers<[1], [0], [0], [1], [0, 0, 1, 1], [], []>} : vector<16x16xf32>, vector<16x8xf32>, vector<16x8xf32> -> vector<16x8xf32>
    %196 = vector.extract_strided_slice %167 {offsets = [0, 0], sizes = [8, 32], strides = [1, 1]} : vector<32x32xf32> to vector<8x32xf32>
    %cst_79 = arith.constant dense<0.000000e+00> : vector<16x32xf32>
    %197 = tpu.matmul %195, %196, %cst_79 {dimension_numbers = #tpu.dot_dimension_numbers<[1], [0], [0], [1], [0, 0, 1, 1], [], []>} : vector<16x8xf32>, vector<8x32xf32>, vector<16x32xf32> -> vector<16x32xf32>
    %198 = vector.extract_strided_slice %178 {offsets = [0, 8], sizes = [16, 8], strides = [1, 1]} : vector<16x96xf32> to vector<16x8xf32>
    %199 = vector.extract_strided_slice %178 {offsets = [0, 40], sizes = [16, 8], strides = [1, 1]} : vector<16x96xf32> to vector<16x8xf32>
    %200 = vector.extract_strided_slice %178 {offsets = [0, 72], sizes = [16, 8], strides = [1, 1]} : vector<16x96xf32> to vector<16x8xf32>
    %cst_80 = arith.constant dense<0.000000e+00> : vector<16x16xf32>
    %201 = tpu.matmul %198, %199, %cst_80 {dimension_numbers = #tpu.dot_dimension_numbers<[1], [1], [0], [0], [0, 0, 1, 0], [], []>} : vector<16x8xf32>, vector<16x8xf32>, vector<16x16xf32> -> vector<16x16xf32>
    %cst_81 = arith.constant 0.353553385 : f32
    %202 = vector.broadcast %cst_81 : f32 to vector<16x16xf32>
    %203 = arith.mulf %201, %202 : vector<16x16xf32>
    %204 = arith.select %3, %203, %1 : vector<16x16xi1>, vector<16x16xf32>
    %cst_82 = arith.constant dense<0xFF800000> : vector<16xf32>
    %205 = vector.multi_reduction <maximumf>, %204, %cst_82 [1] : vector<16x16xf32> to vector<16xf32>
    %206 = vector.shape_cast %205 : vector<16xf32> to vector<16x1xf32>
    %207 = vector.broadcast %206 : vector<16x1xf32> to vector<16x16xf32>
    %208 = arith.subf %204, %207 : vector<16x16xf32>
    %209 = math.exp %208 : vector<16x16xf32>
    %cst_83 = arith.constant dense<0.000000e+00> : vector<16xf32>
    %210 = vector.multi_reduction <add>, %209, %cst_83 [1] : vector<16x16xf32> to vector<16xf32>
    %211 = vector.shape_cast %210 : vector<16xf32> to vector<16x1xf32>
    %212 = vector.broadcast %211 : vector<16x1xf32> to vector<16x16xf32>
    %213 = arith.divf %209, %212 : vector<16x16xf32>
    %cst_84 = arith.constant dense<0.000000e+00> : vector<16x8xf32>
    %214 = tpu.matmul %213, %200, %cst_84 {dimension_numbers = #tpu.dot_dimension_numbers<[1], [0], [0], [1], [0, 0, 1, 1], [], []>} : vector<16x16xf32>, vector<16x8xf32>, vector<16x8xf32> -> vector<16x8xf32>
    %215 = vector.extract_strided_slice %167 {offsets = [8, 0], sizes = [8, 32], strides = [1, 1]} : vector<32x32xf32> to vector<8x32xf32>
    %cst_85 = arith.constant dense<0.000000e+00> : vector<16x32xf32>
    %216 = tpu.matmul %214, %215, %cst_85 {dimension_numbers = #tpu.dot_dimension_numbers<[1], [0], [0], [1], [0, 0, 1, 1], [], []>} : vector<16x8xf32>, vector<8x32xf32>, vector<16x32xf32> -> vector<16x32xf32>
    %217 = arith.addf %197, %216 : vector<16x32xf32>
    %218 = vector.extract_strided_slice %178 {offsets = [0, 16], sizes = [16, 8], strides = [1, 1]} : vector<16x96xf32> to vector<16x8xf32>
    %219 = vector.extract_strided_slice %178 {offsets = [0, 48], sizes = [16, 8], strides = [1, 1]} : vector<16x96xf32> to vector<16x8xf32>
    %220 = vector.extract_strided_slice %178 {offsets = [0, 80], sizes = [16, 8], strides = [1, 1]} : vector<16x96xf32> to vector<16x8xf32>
    %cst_86 = arith.constant dense<0.000000e+00> : vector<16x16xf32>
    %221 = tpu.matmul %218, %219, %cst_86 {dimension_numbers = #tpu.dot_dimension_numbers<[1], [1], [0], [0], [0, 0, 1, 0], [], []>} : vector<16x8xf32>, vector<16x8xf32>, vector<16x16xf32> -> vector<16x16xf32>
    %cst_87 = arith.constant 0.353553385 : f32
    %222 = vector.broadcast %cst_87 : f32 to vector<16x16xf32>
    %223 = arith.mulf %221, %222 : vector<16x16xf32>
    %224 = arith.select %3, %223, %1 : vector<16x16xi1>, vector<16x16xf32>
    %cst_88 = arith.constant dense<0xFF800000> : vector<16xf32>
    %225 = vector.multi_reduction <maximumf>, %224, %cst_88 [1] : vector<16x16xf32> to vector<16xf32>
    %226 = vector.shape_cast %225 : vector<16xf32> to vector<16x1xf32>
    %227 = vector.broadcast %226 : vector<16x1xf32> to vector<16x16xf32>
    %228 = arith.subf %224, %227 : vector<16x16xf32>
    %229 = math.exp %228 : vector<16x16xf32>
    %cst_89 = arith.constant dense<0.000000e+00> : vector<16xf32>
    %230 = vector.multi_reduction <add>, %229, %cst_89 [1] : vector<16x16xf32> to vector<16xf32>
    %231 = vector.shape_cast %230 : vector<16xf32> to vector<16x1xf32>
    %232 = vector.broadcast %231 : vector<16x1xf32> to vector<16x16xf32>
    %233 = arith.divf %229, %232 : vector<16x16xf32>
    %cst_90 = arith.constant dense<0.000000e+00> : vector<16x8xf32>
    %234 = tpu.matmul %233, %220, %cst_90 {dimension_numbers = #tpu.dot_dimension_numbers<[1], [0], [0], [1], [0, 0, 1, 1], [], []>} : vector<16x16xf32>, vector<16x8xf32>, vector<16x8xf32> -> vector<16x8xf32>
    %235 = vector.extract_strided_slice %167 {offsets = [16, 0], sizes = [8, 32], strides = [1, 1]} : vector<32x32xf32> to vector<8x32xf32>
    %cst_91 = arith.constant dense<0.000000e+00> : vector<16x32xf32>
    %236 = tpu.matmul %234, %235, %cst_91 {dimension_numbers = #tpu.dot_dimension_numbers<[1], [0], [0], [1], [0, 0, 1, 1], [], []>} : vector<16x8xf32>, vector<8x32xf32>, vector<16x32xf32> -> vector<16x32xf32>
    %237 = arith.addf %217, %236 : vector<16x32xf32>
    %238 = vector.extract_strided_slice %178 {offsets = [0, 24], sizes = [16, 8], strides = [1, 1]} : vector<16x96xf32> to vector<16x8xf32>
    %239 = vector.extract_strided_slice %178 {offsets = [0, 56], sizes = [16, 8], strides = [1, 1]} : vector<16x96xf32> to vector<16x8xf32>
    %240 = vector.extract_strided_slice %178 {offsets = [0, 88], sizes = [16, 8], strides = [1, 1]} : vector<16x96xf32> to vector<16x8xf32>
    %cst_92 = arith.constant dense<0.000000e+00> : vector<16x16xf32>
    %241 = tpu.matmul %238, %239, %cst_92 {dimension_numbers = #tpu.dot_dimension_numbers<[1], [1], [0], [0], [0, 0, 1, 0], [], []>} : vector<16x8xf32>, vector<16x8xf32>, vector<16x16xf32> -> vector<16x16xf32>
    %cst_93 = arith.constant 0.353553385 : f32
    %242 = vector.broadcast %cst_93 : f32 to vector<16x16xf32>
    %243 = arith.mulf %241, %242 : vector<16x16xf32>
    %244 = arith.select %3, %243, %1 : vector<16x16xi1>, vector<16x16xf32>
    %cst_94 = arith.constant dense<0xFF800000> : vector<16xf32>
    %245 = vector.multi_reduction <maximumf>, %244, %cst_94 [1] : vector<16x16xf32> to vector<16xf32>
    %246 = vector.shape_cast %245 : vector<16xf32> to vector<16x1xf32>
    %247 = vector.broadcast %246 : vector<16x1xf32> to vector<16x16xf32>
    %248 = arith.subf %244, %247 : vector<16x16xf32>
    %249 = math.exp %248 : vector<16x16xf32>
    %cst_95 = arith.constant dense<0.000000e+00> : vector<16xf32>
    %250 = vector.multi_reduction <add>, %249, %cst_95 [1] : vector<16x16xf32> to vector<16xf32>
    %251 = vector.shape_cast %250 : vector<16xf32> to vector<16x1xf32>
    %252 = vector.broadcast %251 : vector<16x1xf32> to vector<16x16xf32>
    %253 = arith.divf %249, %252 : vector<16x16xf32>
    %cst_96 = arith.constant dense<0.000000e+00> : vector<16x8xf32>
    %254 = tpu.matmul %253, %240, %cst_96 {dimension_numbers = #tpu.dot_dimension_numbers<[1], [0], [0], [1], [0, 0, 1, 1], [], []>} : vector<16x16xf32>, vector<16x8xf32>, vector<16x8xf32> -> vector<16x8xf32>
    %255 = vector.extract_strided_slice %167 {offsets = [24, 0], sizes = [8, 32], strides = [1, 1]} : vector<32x32xf32> to vector<8x32xf32>
    %cst_97 = arith.constant dense<0.000000e+00> : vector<16x32xf32>
    %256 = tpu.matmul %254, %255, %cst_97 {dimension_numbers = #tpu.dot_dimension_numbers<[1], [0], [0], [1], [0, 0, 1, 1], [], []>} : vector<16x8xf32>, vector<8x32xf32>, vector<16x32xf32> -> vector<16x32xf32>
    %257 = arith.addf %237, %256 : vector<16x32xf32>
    %258 = vector.broadcast %170 : vector<1x32xf32> to vector<16x32xf32>
    %259 = arith.addf %257, %258 : vector<16x32xf32>
    %260 = arith.addf %161, %259 : vector<16x32xf32>
    %cst_98 = arith.constant dense<0.000000e+00> : vector<16xf32>
    %261 = vector.multi_reduction <add>, %260, %cst_98 [1] : vector<16x32xf32> to vector<16xf32>
    %262 = vector.shape_cast %261 : vector<16xf32> to vector<16x1xf32>
    %cst_99 = arith.constant 3.200000e+01 : f32
    %263 = vector.broadcast %cst_99 : f32 to vector<16x1xf32>
    %264 = arith.divf %262, %263 : vector<16x1xf32>
    %265 = vector.broadcast %264 : vector<16x1xf32> to vector<16x32xf32>
    %266 = arith.subf %260, %265 : vector<16x32xf32>
    %267 = arith.mulf %266, %266 : vector<16x32xf32>
    %cst_100 = arith.constant dense<0.000000e+00> : vector<16xf32>
    %268 = vector.multi_reduction <add>, %267, %cst_100 [1] : vector<16x32xf32> to vector<16xf32>
    %269 = vector.shape_cast %268 : vector<16xf32> to vector<16x1xf32>
    %cst_101 = arith.constant 3.200000e+01 : f32
    %270 = vector.broadcast %cst_101 : f32 to vector<16x1xf32>
    %271 = arith.divf %269, %270 : vector<16x1xf32>
    %272 = vector.broadcast %264 : vector<16x1xf32> to vector<16x32xf32>
    %273 = arith.subf %260, %272 : vector<16x32xf32>
    %cst_102 = arith.constant 9.99999974E-6 : f32
    %274 = vector.broadcast %cst_102 : f32 to vector<16x1xf32>
    %275 = arith.addf %271, %274 : vector<16x1xf32>
    %276 = math.rsqrt %275 : vector<16x1xf32>
    %277 = vector.broadcast %276 : vector<16x1xf32> to vector<16x32xf32>
    %278 = arith.mulf %273, %277 : vector<16x32xf32>
    %279 = vector.broadcast %171 : vector<1x32xf32> to vector<16x32xf32>
    %280 = arith.mulf %278, %279 : vector<16x32xf32>
    %281 = vector.broadcast %172 : vector<1x32xf32> to vector<16x32xf32>
    %282 = arith.addf %280, %281 : vector<16x32xf32>
    %c1_103 = arith.constant 1 : index
    %c0_104 = arith.constant 0 : index
    %c0_105 = arith.constant 0 : index
    %283 = vector.load %arg6[%c1_103, %c0_104, %c0_105] : memref<2x32x64xf32, #tpu.memory_space<vmem>>, vector<1x32x64xf32>
    %284 = vector.shape_cast %283 : vector<1x32x64xf32> to vector<32x64xf32>
    %cst_106 = arith.constant dense<0.000000e+00> : vector<16x64xf32>
    %285 = tpu.matmul %282, %284, %cst_106 {dimension_numbers = #tpu.dot_dimension_numbers<[1], [0], [0], [1], [0, 0, 1, 1], [], []>} : vector<16x32xf32>, vector<32x64xf32>, vector<16x64xf32> -> vector<16x64xf32>
    %c1_107 = arith.constant 1 : index
    %c0_108 = arith.constant 0 : index
    %c0_109 = arith.constant 0 : index
    %286 = vector.load %arg7[%c1_107, %c0_108, %c0_109] : memref<2x1x64xf32, #tpu.memory_space<vmem>>, vector<1x1x64xf32>
    %287 = vector.shape_cast %286 : vector<1x1x64xf32> to vector<1x64xf32>
    %288 = vector.broadcast %287 : vector<1x64xf32> to vector<16x64xf32>
    %289 = arith.addf %285, %288 : vector<16x64xf32>
    %cst_110 = arith.constant 0.000000e+00 : f32
    %290 = vector.broadcast %cst_110 : f32 to vector<16x64xf32>
    %291 = arith.maximumf %289, %290 : vector<16x64xf32>
    %c1_111 = arith.constant 1 : index
    %c0_112 = arith.constant 0 : index
    %c0_113 = arith.constant 0 : index
    %292 = vector.load %arg8[%c1_111, %c0_112, %c0_113] : memref<2x64x32xf32, #tpu.memory_space<vmem>>, vector<1x64x32xf32>
    %293 = vector.shape_cast %292 : vector<1x64x32xf32> to vector<64x32xf32>
    %cst_114 = arith.constant dense<0.000000e+00> : vector<16x32xf32>
    %294 = tpu.matmul %291, %293, %cst_114 {dimension_numbers = #tpu.dot_dimension_numbers<[1], [0], [0], [1], [0, 0, 1, 1], [], []>} : vector<16x64xf32>, vector<64x32xf32>, vector<16x32xf32> -> vector<16x32xf32>
    %295 = vector.broadcast %173 : vector<1x32xf32> to vector<16x32xf32>
    %296 = arith.addf %294, %295 : vector<16x32xf32>
    %297 = arith.addf %282, %296 : vector<16x32xf32>
    %cst_115 = arith.constant dense<0.000000e+00> : vector<16xf32>
    %298 = vector.multi_reduction <add>, %297, %cst_115 [1] : vector<16x32xf32> to vector<16xf32>
    %299 = vector.shape_cast %298 : vector<16xf32> to vector<16x1xf32>
    %cst_116 = arith.constant 3.200000e+01 : f32
    %300 = vector.broadcast %cst_116 : f32 to vector<16x1xf32>
    %301 = arith.divf %299, %300 : vector<16x1xf32>
    %302 = vector.broadcast %301 : vector<16x1xf32> to vector<16x32xf32>
    %303 = arith.subf %297, %302 : vector<16x32xf32>
    %304 = arith.mulf %303, %303 : vector<16x32xf32>
    %cst_117 = arith.constant dense<0.000000e+00> : vector<16xf32>
    %305 = vector.multi_reduction <add>, %304, %cst_117 [1] : vector<16x32xf32> to vector<16xf32>
    %306 = vector.shape_cast %305 : vector<16xf32> to vector<16x1xf32>
    %cst_118 = arith.constant 3.200000e+01 : f32
    %307 = vector.broadcast %cst_118 : f32 to vector<16x1xf32>
    %308 = arith.divf %306, %307 : vector<16x1xf32>
    %309 = vector.broadcast %301 : vector<16x1xf32> to vector<16x32xf32>
    %310 = arith.subf %297, %309 : vector<16x32xf32>
    %cst_119 = arith.constant 9.99999974E-6 : f32
    %311 = vector.broadcast %cst_119 : f32 to vector<16x1xf32>
    %312 = arith.addf %308, %311 : vector<16x1xf32>
    %313 = math.rsqrt %312 : vector<16x1xf32>
    %314 = vector.broadcast %313 : vector<16x1xf32> to vector<16x32xf32>
    %315 = arith.mulf %310, %314 : vector<16x32xf32>
    %316 = vector.broadcast %174 : vector<1x32xf32> to vector<16x32xf32>
    %317 = arith.mulf %315, %316 : vector<16x32xf32>
    %318 = vector.broadcast %175 : vector<1x32xf32> to vector<16x32xf32>
    %319 = arith.addf %317, %318 : vector<16x32xf32>
    %c0_120 = arith.constant 0 : index
    %c0_121 = arith.constant 0 : index
    %320 = vector.load %arg10[%c0_120, %c0_121] : memref<16x32xf32, #tpu.memory_space<vmem>>, vector<16x32xf32>
    tpu.vector_store %arg10[%c0_120, %c0_121], %319 {strides = array<i32>} : memref<16x32xf32, #tpu.memory_space<vmem>>, vector<16x32xf32>,
    return
  }
  func.func @transform_0(%arg0: i32) -> (i32, i32) {
    %c0_i32 = arith.constant 0 : i32
    %c0_i32_0 = arith.constant 0 : i32
    %c0_i32_1 = arith.constant 0 : i32
    return %c0_i32, %c0_i32_0 : i32, i32
  }
  func.func @transform_1(%arg0: i32) -> (i32, i32) {
    %c0_i32 = arith.constant 0 : i32
    %c0_i32_0 = arith.constant 0 : i32
    %c0_i32_1 = arith.constant 0 : i32
    return %c0_i32, %c0_i32_0 : i32, i32
  }
  func.func @transform_2(%arg0: i32) -> (i32, i32, i32) {
    %c0_i32 = arith.constant 0 : i32
    %c0_i32_0 = arith.constant 0 : i32
    %c0_i32_1 = arith.constant 0 : i32
    %c0_i32_2 = arith.constant 0 : i32
    return %c0_i32, %c0_i32_0, %c0_i32_1 : i32, i32, i32
  }
  func.func @transform_3(%arg0: i32) -> (i32, i32, i32) {
    %c0_i32 = arith.constant 0 : i32
    %c0_i32_0 = arith.constant 0 : i32
    %c0_i32_1 = arith.constant 0 : i32
    %c0_i32_2 = arith.constant 0 : i32
    return %c0_i32, %c0_i32_0, %c0_i32_1 : i32, i32, i32
  }
  func.func @transform_4(%arg0: i32) -> (i32, i32, i32) {
    %c0_i32 = arith.constant 0 : i32
    %c0_i32_0 = arith.constant 0 : i32
    %c0_i32_1 = arith.constant 0 : i32
    %c0_i32_2 = arith.constant 0 : i32
    return %c0_i32, %c0_i32_0, %c0_i32_1 : i32, i32, i32
  }
  func.func @transform_5(%arg0: i32) -> (i32, i32, i32) {
    %c0_i32 = arith.constant 0 : i32
    %c0_i32_0 = arith.constant 0 : i32
    %c0_i32_1 = arith.constant 0 : i32
    %c0_i32_2 = arith.constant 0 : i32
    return %c0_i32, %c0_i32_0, %c0_i32_1 : i32, i32, i32
  }
  func.func @transform_6(%arg0: i32) -> (i32, i32, i32) {
    %c0_i32 = arith.constant 0 : i32
    %c0_i32_0 = arith.constant 0 : i32
    %c0_i32_1 = arith.constant 0 : i32
    %c0_i32_2 = arith.constant 0 : i32
    return %c0_i32, %c0_i32_0, %c0_i32_1 : i32, i32, i32
  }
  func.func @transform_7(%arg0: i32) -> (i32, i32, i32) {
    %c0_i32 = arith.constant 0 : i32
    %c0_i32_0 = arith.constant 0 : i32
    %c0_i32_1 = arith.constant 0 : i32
    %c0_i32_2 = arith.constant 0 : i32
    return %c0_i32, %c0_i32_0, %c0_i32_1 : i32, i32, i32
  }
  func.func @transform_8(%arg0: i32) -> (i32, i32, i32) {
    %c0_i32 = arith.constant 0 : i32
    %c0_i32_0 = arith.constant 0 : i32
    %c0_i32_1 = arith.constant 0 : i32
    %c0_i32_2 = arith.constant 0 : i32
    return %c0_i32, %c0_i32_0, %c0_i32_1 : i32, i32, i32
  }
  func.func @transform_9(%arg0: i32) -> (i32, i32) {
    %c0_i32 = arith.constant 0 : i32
    %c0_i32_0 = arith.constant 0 : i32
    %c0_i32_1 = arith.constant 0 : i32
    return %c0_i32, %c0_i32_0 : i32, i32
  }
}

</mosaic_0001>

<llo_original>
// kernel: tpu_custom_call.1
$region0: #{tpu_custom_call.1}
  #allocation0 [shape = 'u32[]', space=smem, size = 0x4, offset = 0x4, fixed_abs, tag = 'smem constant byte address 0x4 - core index']
  #allocation1 [shape = 'u32[144,128]{1,0:T(1,128)}', space=vmem, size = 0x12000, scoped, tag = 'internal scratch']
  %s0 = inlined_call_operand.vmem [shape: f32[16,32], index: 0, kind: input, shape index: {}]
  %s1 = inlined_call_operand.hbm [shape: f32[16,16], index: 1, kind: input, shape index: {}]
  %s2 = inlined_call_operand.vmem [shape: f32[2,32,96], index: 2, kind: input, shape index: {}]
  %s3 = inlined_call_operand.vmem [shape: f32[2,1,96], index: 3, kind: input, shape index: {}]
  %s4 = inlined_call_operand.vmem [shape: f32[2,32,32], index: 4, kind: input, shape index: {}]
  %s5 = inlined_call_operand.vmem [shape: f32[2,32,64], index: 5, kind: input, shape index: {}]
  %s6 = inlined_call_operand.vmem [shape: f32[2,1,64], index: 6, kind: input, shape index: {}]
  %s7 = inlined_call_operand.vmem [shape: f32[2,64,32], index: 7, kind: input, shape index: {}]
  %s8 = inlined_call_operand.vmem [shape: f32[2,6,32], index: 8, kind: input, shape index: {}]
  %s9 = inlined_call_operand.hbm [shape: f32[16,32], index: 9, kind: output, shape index: {}]
  %s10 = sld [smem:[#allocation0]]
  $region50: #{tpu_custom_call.1} parent=0
    _
  %s12 = ssub.s32 1, %s10
  %s13 = scalar_select 0, %s12, %s10
  $region1: #{tpu_custom_call.1} parent=0
    #allocation2 [shape = 'u8[8192]{0}', space=vmem, size = 0x2000, scoped, tag = 'input window, operand 1, single buffered']
    #allocation3 [shape = 's32[1]{0}', space=sflag, size = 0x4, scoped, tag = 'scoped memory for tpu_custom_call.1']
    #allocation4 [shape = 's32[1]{0}', space=sflag, size = 0x4, scoped, tag = 'scoped memory for tpu_custom_call.1']
    #allocation5 [shape = 'u8[8192]{0}', space=vmem, size = 0x2000, scoped, tag = 'output window, operand 0, single buffered']
    %14 = vsyncpa [#allocation3], 0
    %15 = vsyncpa [#allocation4], 0
    // Predicated region
    $region2: #{tpu_custom_call.1} parent=1 // pred_check
      _
    $region3: #{tpu_custom_call.1} parent=1 // pred_check_branch
      %17 = sbr.rel (0) target = $region5
    $region4: #{tpu_custom_call.1} parent=1 // pred_region
      _
    $region5: #{tpu_custom_call.1} parent=1 // pred_fallthru
      _
    // Predicated region
    $region6: #{tpu_custom_call.1} parent=1 // pred_check
      _
    $region7: #{tpu_custom_call.1} parent=1 // pred_check_branch
      %19 = sbr.rel (0) target = $region9
    $region8: #{tpu_custom_call.1} parent=1 // pred_region
      %s21 = ssub.s32 256, 256
      %22 = vsyncadd [#allocation3], %s21
      %s23 = sshll.u32 [#allocation2], 4
      %s24 = int_to_ptr.vmem [resolvable:$true] %s23
      %29 = dma.hbm_to_vmem [thread:$0]  %s1, 256, %s24, [#allocation3], 128, 128, 8
    $region9: #{tpu_custom_call.1} parent=1 // pred_fallthru
      _
    // Predicated region
    $region10: #{tpu_custom_call.1} parent=1 // pred_check
      _
    $region11: #{tpu_custom_call.1} parent=1 // pred_check_branch
      %31 = sbr.rel (0) target = $region13
    $region12: #{tpu_custom_call.1} parent=1 // pred_region
      _
    $region13: #{tpu_custom_call.1} parent=1 // pred_fallthru
      _
    // Predicated region
    $region14: #{tpu_custom_call.1} parent=1 // pred_check
      _
    $region15: #{tpu_custom_call.1} parent=1 // pred_check_branch
      %33 = sbr.rel (0) target = $region17
    $region16: #{tpu_custom_call.1} parent=1 // pred_region
      _
    $region17: #{tpu_custom_call.1} parent=1 // pred_fallthru
      _
    // Predicated region
    $region18: #{tpu_custom_call.1} parent=1 // pred_check
      _
    $region19: #{tpu_custom_call.1} parent=1 // pred_check_branch
      %35 = sbr.rel (0) target = $region21
    $region20: #{tpu_custom_call.1} parent=1 // pred_region
      _
    $region21: #{tpu_custom_call.1} parent=1 // pred_fallthru
      _
    // Predicated region
    $region22: #{tpu_custom_call.1} parent=1 // pred_check
      _
    $region23: #{tpu_custom_call.1} parent=1 // pred_check_branch
      %37 = sbr.rel (0) target = $region25
    $region24: #{tpu_custom_call.1} parent=1 // pred_region
      _
    $region25: #{tpu_custom_call.1} parent=1 // pred_fallthru
      _
    // Predicated region
    $region26: #{tpu_custom_call.1} parent=1 // pred_check
      _
    $region27: #{tpu_custom_call.1} parent=1 // pred_check_branch
      %39 = sbr.rel (0) target = $region29
    $region28: #{tpu_custom_call.1} parent=1 // pred_region
      _
    $region29: #{tpu_custom_call.1} parent=1 // pred_fallthru
      _
    // Predicated region
    $region30: #{tpu_custom_call.1} parent=1 // pred_check
      _
    $region31: #{tpu_custom_call.1} parent=1 // pred_check_branch
      %41 = sbr.rel (0) target = $region33
    $region32: #{tpu_custom_call.1} parent=1 // pred_region
      _
    $region33: #{tpu_custom_call.1} parent=1 // pred_fallthru
      _
    // Predicated region
    $region34: #{tpu_custom_call.1} parent=1 // pred_check
      _
    $region35: #{tpu_custom_call.1} parent=1 // pred_check_branch
      %43 = sbr.rel (0) target = $region37
    $region36: #{tpu_custom_call.1} parent=1 // pred_region
      _
    $region37: #{tpu_custom_call.1} parent=1 // pred_fallthru
      _
    // Predicated region
    $region38: #{tpu_custom_call.1} parent=1 // pred_check
      _
    $region39: #{tpu_custom_call.1} parent=1 // pred_check_branch
      %45 = sbr.rel (0) target = $region41
    $region40: #{tpu_custom_call.1} parent=1 // pred_region
      %46 = dma.done [#allocation3], 256
    $region41: #{tpu_custom_call.1} parent=1 // pred_fallthru
      _
    %v47 = vld [vmem:[%s0] sm:$0xff]
    %v48 = vld [vmem:[%s0 + $0x8] sm:$0xff]
    %v49 = vld [vmem:[#allocation2] sm:$0xff]
    %v50 = vld [vmem:[#allocation2 + $0x8] sm:$0xff]
    %vm51 = vcmp.eq.f32.partialorder %v49, 0.0
    %vm52 = vcmp.eq.f32.partialorder %v50, 0.0
    %v53 = vld [vmem:[%s2] sm:$0xff]
    %v54 = vld [vmem:[%s2 + $0x8] sm:$0xff]
    %v55 = vld [vmem:[%s2 + $0x10] sm:$0xff]
    %v56 = vld [vmem:[%s2 + $0x18] sm:$0xff]
    %v57 = vld [vmem:[%s3] sm:$0x1]
    %v58 = vld [vmem:[%s4] sm:$0xff]
    %v59 = vld [vmem:[%s4 + $0x8] sm:$0xff]
    %v60 = vld [vmem:[%s4 + $0x10] sm:$0xff]
    %v61 = vld [vmem:[%s4 + $0x18] sm:$0xff]
    %v62 = vld [vmem:[%s8] sm:$0x3f]
    %v64 = vlaneseq
    %v65 = vshrl.u32 %v64, 7
    %v66 = vsub.s32 0, %v65
    %v67 = vrot.slane %v57, %v66
    %vm69 = vcmask 261120
    %v71 = vsel %vm69, %v47, 0
    %v74 = vsel %vm69, %v48, 0
    %76 = vmatprep.subr.mxu0 0.0
    %77 = vmatpush1.msra.mxu0 %v53
    %78 = vmatprep.subr.mxu0 0.0
    %79 = vmatpush1.msra.mxu0 %v54
    %80 = vmatprep.subr.mxu0 0.0
    %81 = vmatpush1.msra.mxu0 %v55
    %82 = vmatprep.subr.mxu0 0.0
    %83 = vmatpush1.msra.mxu0 %v56
    %84 = vmatprep.subr.mxu0 0.0
    %85 = vmatpush1.msra.mxu0 0.0
    %86 = vmatprep.subr.mxu0 0.0
    %87 = vmatpush1.msra.mxu0 0.0
    %88 = vmatprep.subr.mxu0 0.0
    %89 = vmatpush1.msra.mxu0 0.0
    %90 = vmatprep.subr.mxu0 0.0
    %91 = vmatpush1.msra.mxu0 0.0
    %92 = vmatprep.subr.mxu0 0.0
    %93 = vmatpush1.msra.mxu0 0.0
    %94 = vmatprep.subr.mxu0 0.0
    %95 = vmatpush1.msra.mxu0 0.0
    %96 = vmatprep.subr.mxu0 0.0
    %97 = vmatpush1.msra.mxu0 0.0
    %98 = vmatprep.subr.mxu0 0.0
    %99 = vmatpush1.msra.mxu0 0.0
    %100 = vmatprep.subr.mxu0 0.0
    %101 = vmatpush1.msra.mxu0 0.0
    %102 = vmatprep.subr.mxu0 0.0
    %103 = vmatpush1.msra.mxu0 0.0
    %104 = vmatprep.subr.mxu0 0.0
    %105 = vmatpush1.msra.mxu0 0.0
    %106 = vmatprep.subr.mxu0 0.0
    %107 = vmatpush1.msra.mxu0 0.0
    %108 = vmatprep.subr.mxu0 0.0
    %109 = vmatpush1.msra.mxu0 0.0
    %110 = vmatprep.subr.mxu0 0.0
    %111 = vmatpush1.msra.mxu0 0.0
    %112 = vmatprep.subr.mxu0 0.0
    %113 = vmatpush1.msra.mxu0 0.0
    %114 = vmatprep.subr.mxu0 0.0
    %115 = vmatpush1.msra.mxu0 0.0
    %116 = vmatprep.subr.mxu0 0.0
    %117 = vmatpush1.msra.mxu0 0.0
    %118 = vmatprep.subr.mxu0 0.0
    %119 = vmatpush1.msra.mxu0 0.0
    %120 = vmatprep.subr.mxu0 0.0
    %121 = vmatpush1.msra.mxu0 0.0
    %122 = vmatprep.subr.mxu0 0.0
    %123 = vmatpush1.msra.mxu0 0.0
    %124 = vmatprep.subr.mxu0 0.0
    %125 = vmatpush1.msra.mxu0 0.0
    %126 = vmatprep.subr.mxu0 0.0
    %127 = vmatpush1.msra.mxu0 0.0
    %128 = vmatprep.subr.mxu0 0.0
    %129 = vmatpush1.msra.mxu0 0.0
    %130 = vmatprep.subr.mxu0 0.0
    %131 = vmatpush1.msra.mxu0 0.0
    %132 = vmatprep.subr.mxu0 0.0
    %133 = vmatpush1.msra.mxu0 0.0
    %134 = vmatprep.subr.mxu0 0.0
    %135 = vmatpush1.msra.mxu0 0.0
    %136 = vmatprep.subr.mxu0 0.0
    %137 = vmatpush1.msra.mxu0 0.0
    %138 = vmatprep.subr.mxu0 0.0
    %139 = vmatpush1.msra.mxu0 0.0
    %140 = vmatprep.mubr.f32.mxu0 0.0
    %141 = vmatmul.mubr.f32.gmra.mrb[0].mxu0 %v71
    %v142 = vpop.f32.mrb[0].mxu0
    %v143 = vadd.f32 %v67, %v142
    %v144 = vpop.f32.mrb[0].mxu0
    %145 = vmatprep.mubr.f32.mxu0 0.0
    %146 = vmatmul.mubr.f32.gmra.mrb[0].mxu0 %v74
    %v147 = vpop.f32.mrb[0].mxu0
    %v148 = vadd.f32 %v67, %v147
    %v149 = vpop.f32.mrb[0].mxu0
    %150 = vdwg.mxu0
    %153 = vrot.lane.b32.xlu0 %v143, 96
    %v154 = vpop.permute.xlu0 %153
    %155 = vrot.lane.b32.xlu0 %v148, 96
    %v156 = vpop.permute.xlu0 %155
    %vm157 = vcmask 64512
    %v158 = vsel %vm157, %v143, 0
    %v160 = vsel %vm157, %v148, 0
    %v162 = vsel %vm157, %v154, 0
    %v164 = vsel %vm157, %v156, 0
    %166 = vmatprep.subr.mxu0 0.0
    %167 = vmatpush1.xpose.msra.mxu0 %v162
    %168 = vmatprep.subr.mxu0 0.0
    %169 = vmatpush1.xpose.msra.mxu0 %v164
    %170 = vmatprep.subr.mxu0 0.0
    %171 = vmatpush1.xpose.msra.mxu0 0.0
    %172 = vmatprep.subr.mxu0 0.0
    %173 = vmatpush1.xpose.msra.mxu0 0.0
    %174 = vmatprep.subr.mxu0 0.0
    %175 = vmatpush1.xpose.msra.mxu0 0.0
    %176 = vmatprep.subr.mxu0 0.0
    %177 = vmatpush1.xpose.msra.mxu0 0.0
    %178 = vmatprep.subr.mxu0 0.0
    %179 = vmatpush1.xpose.msra.mxu0 0.0
    %180 = vmatprep.subr.mxu0 0.0
    %181 = vmatpush1.xpose.msra.mxu0 0.0
    %182 = vmatprep.subr.mxu0 0.0
    %183 = vmatpush1.xpose.msra.mxu0 0.0
    %184 = vmatprep.subr.mxu0 0.0
    %185 = vmatpush1.xpose.msra.mxu0 0.0
    %186 = vmatprep.subr.mxu0 0.0
    %187 = vmatpush1.xpose.msra.mxu0 0.0
    %188 = vmatprep.subr.mxu0 0.0
    %189 = vmatpush1.xpose.msra.mxu0 0.0
    %190 = vmatprep.subr.mxu0 0.0
    %191 = vmatpush1.xpose.msra.mxu0 0.0
    %192 = vmatprep.subr.mxu0 0.0
    %193 = vmatpush1.xpose.msra.mxu0 0.0
    %194 = vmatprep.subr.mxu0 0.0
    %195 = vmatpush1.xpose.msra.mxu0 0.0
    %196 = vmatprep.subr.mxu0 0.0
    %197 = vmatpush1.xpose.msra.mxu0 0.0
    %198 = vmatprep.subr.mxu0 0.0
    %199 = vmatpush1.xpose.msra.mxu0 0.0
    %200 = vmatprep.subr.mxu0 0.0
    %201 = vmatpush1.xpose.msra.mxu0 0.0
    %202 = vmatprep.subr.mxu0 0.0
    %203 = vmatpush1.xpose.msra.mxu0 0.0
    %204 = vmatprep.subr.mxu0 0.0
    %205 = vmatpush1.xpose.msra.mxu0 0.0
    %206 = vmatprep.subr.mxu0 0.0
    %207 = vmatpush1.xpose.msra.mxu0 0.0
    %208 = vmatprep.subr.mxu0 0.0
    %209 = vmatpush1.xpose.msra.mxu0 0.0
    %210 = vmatprep.subr.mxu0 0.0
    %211 = vmatpush1.xpose.msra.mxu0 0.0
    %212 = vmatprep.subr.mxu0 0.0
    %213 = vmatpush1.xpose.msra.mxu0 0.0
    %214 = vmatprep.subr.mxu0 0.0
    %215 = vmatpush1.xpose.msra.mxu0 0.0
    %216 = vmatprep.subr.mxu0 0.0
    %217 = vmatpush1.xpose.msra.mxu0 0.0
    %218 = vmatprep.subr.mxu0 0.0
    %219 = vmatpush1.xpose.msra.mxu0 0.0
    %220 = vmatprep.subr.mxu0 0.0
    %221 = vmatpush1.xpose.msra.mxu0 0.0
    %222 = vmatprep.subr.mxu0 0.0
    %223 = vmatpush1.xpose.msra.mxu0 0.0
    %224 = vmatprep.subr.mxu0 0.0
    %225 = vmatpush1.xpose.msra.mxu0 0.0
    %226 = vmatprep.subr.mxu0 0.0
    %227 = vmatpush1.xpose.msra.mxu0 0.0
    %228 = vmatprep.subr.mxu0 0.0
    %229 = vmatpush1.xpose.msra.mxu0 0.0
    %230 = vmatprep.mubr.f32.mxu0 0.0
    %231 = vmatmul.mubr.f32.gmra.mrb[0].mxu0 %v158
    %v232 = vpop.f32.mrb[0].mxu0
    %v233 = vadd.f32 0.0, %v232
    %v234 = vpop.f32.mrb[0].mxu0
    %235 = vmatprep.mubr.f32.mxu0 0.0
    %236 = vmatmul.mubr.f32.gmra.mrb[0].mxu0 %v160
    %v237 = vpop.f32.mrb[0].mxu0
    %v238 = vadd.f32 0.0, %v237
    %v239 = vpop.f32.mrb[0].mxu0
    %240 = vdwg.mxu0
    %v241 = vmul.f32 %v233, 0.35355338
    %v242 = vmul.f32 %v238, 0.35355338
    %v243 = vsel %vm51, %v241, %v49
    %v244 = vsel %vm52, %v242, %v50
    %vm245 = vcmask 130048
    %v246 = vsel %vm245, %v243, -inf
    %247 = vmax.xlane.f32.xlu0 %v246
    %v248 = vpop.xlane.xlu0 %247
    %v249 = vsel %vm245, %v244, -inf
    %250 = vmax.xlane.f32.xlu0 %v249
    %v251 = vpop.xlane.xlu0 %250
    %v252 = vsub.f32 %v243, %v248
    %v253 = vsub.f32 %v244, %v251
    %v254 = vmul.f32 %v252, 1.442695
    %v255 = vpow.pop %v254
    %v256 = vmul.f32 %v253, 1.442695
    %v257 = vpow.pop %v256
    %v258 = vsel %vm245, %v255, 0.0
    %259 = vadd.xlane.f32.xlu0 %v258
    %v260 = vpop.xlane.xlu0 %259
    %v261 = vsel %vm245, %v257, 0.0
    %262 = vadd.xlane.f32.xlu0 %v261
    %v263 = vpop.xlane.xlu0 %262
    %v264 = vrcp.pop %v260
    %v265 = vmul.f32 %v255, %v264
    %v266 = vrcp.pop %v263
    %v267 = vmul.f32 %v257, %v266
    %268 = vrot.lane.b32.xlu0 %v143, 64
    %v269 = vpop.permute.xlu0 %268
    %270 = vrot.lane.b32.xlu0 %v148, 64
    %v271 = vpop.permute.xlu0 %270
    %v275 = vsel %vm245, %v265, 0
    %v278 = vsel %vm245, %v267, 0
    %280 = vmatprep.subr.mxu0 0.0
    %281 = vmatpush1.msra.mxu0 %v269
    %282 = vmatprep.subr.mxu0 0.0
    %283 = vmatpush1.msra.mxu0 %v271
    %284 = vmatprep.subr.mxu0 0.0
    %285 = vmatpush1.msra.mxu0 0.0
    %286 = vmatprep.subr.mxu0 0.0
    %287 = vmatpush1.msra.mxu0 0.0
    %288 = vmatprep.subr.mxu0 0.0
    %289 = vmatpush1.msra.mxu0 0.0
    %290 = vmatprep.subr.mxu0 0.0
    %291 = vmatpush1.msra.mxu0 0.0
    %292 = vmatprep.subr.mxu0 0.0
    %293 = vmatpush1.msra.mxu0 0.0
    %294 = vmatprep.subr.mxu0 0.0
    %295 = vmatpush1.msra.mxu0 0.0
    %296 = vmatprep.subr.mxu0 0.0
    %297 = vmatpush1.msra.mxu0 0.0
    %298 = vmatprep.subr.mxu0 0.0
    %299 = vmatpush1.msra.mxu0 0.0
    %300 = vmatprep.subr.mxu0 0.0
    %301 = vmatpush1.msra.mxu0 0.0
    %302 = vmatprep.subr.mxu0 0.0
    %303 = vmatpush1.msra.mxu0 0.0
    %304 = vmatprep.subr.mxu0 0.0
    %305 = vmatpush1.msra.mxu0 0.0
    %306 = vmatprep.subr.mxu0 0.0
    %307 = vmatpush1.msra.mxu0 0.0
    %308 = vmatprep.subr.mxu0 0.0
    %309 = vmatpush1.msra.mxu0 0.0
    %310 = vmatprep.subr.mxu0 0.0
    %311 = vmatpush1.msra.mxu0 0.0
    %312 = vmatprep.subr.mxu0 0.0
    %313 = vmatpush1.msra.mxu0 0.0
    %314 = vmatprep.subr.mxu0 0.0
    %315 = vmatpush1.msra.mxu0 0.0
    %316 = vmatprep.subr.mxu0 0.0
    %317 = vmatpush1.msra.mxu0 0.0
    %318 = vmatprep.subr.mxu0 0.0
    %319 = vmatpush1.msra.mxu0 0.0
    %320 = vmatprep.subr.mxu0 0.0
    %321 = vmatpush1.msra.mxu0 0.0
    %322 = vmatprep.subr.mxu0 0.0
    %323 = vmatpush1.msra.mxu0 0.0
    %324 = vmatprep.subr.mxu0 0.0
    %325 = vmatpush1.msra.mxu0 0.0
    %326 = vmatprep.subr.mxu0 0.0
    %327 = vmatpush1.msra.mxu0 0.0
    %328 = vmatprep.subr.mxu0 0.0
    %329 = vmatpush1.msra.mxu0 0.0
    %330 = vmatprep.subr.mxu0 0.0
    %331 = vmatpush1.msra.mxu0 0.0
    %332 = vmatprep.subr.mxu0 0.0
    %333 = vmatpush1.msra.mxu0 0.0
    %334 = vmatprep.subr.mxu0 0.0
    %335 = vmatpush1.msra.mxu0 0.0
    %336 = vmatprep.subr.mxu0 0.0
    %337 = vmatpush1.msra.mxu0 0.0
    %338 = vmatprep.subr.mxu0 0.0
    %339 = vmatpush1.msra.mxu0 0.0
    %340 = vmatprep.subr.mxu0 0.0
    %341 = vmatpush1.msra.mxu0 0.0
    %342 = vmatprep.subr.mxu0 0.0
    %343 = vmatpush1.msra.mxu0 0.0
    %344 = vmatprep.mubr.f32.mxu0 0.0
    %345 = vmatmul.mubr.f32.gmra.mrb[0].mxu0 %v275
    %v346 = vpop.f32.mrb[0].mxu0
    %v347 = vadd.f32 0.0, %v346
    %v348 = vpop.f32.mrb[0].mxu0
    %349 = vmatprep.mubr.f32.mxu0 0.0
    %350 = vmatmul.mubr.f32.gmra.mrb[0].mxu0 %v278
    %v351 = vpop.f32.mrb[0].mxu0
    %v352 = vadd.f32 0.0, %v351
    %v353 = vpop.f32.mrb[0].mxu0
    %354 = vdwg.mxu0
    %355 = vrot.lane.b32.xlu0 %v143, 120
    %v356 = vpop.permute.xlu0 %355
    %357 = vrot.lane.b32.xlu0 %v148, 120
    %v358 = vpop.permute.xlu0 %357
    %359 = vrot.lane.b32.xlu0 %v143, 88
    %v360 = vpop.permute.xlu0 %359
    %361 = vrot.lane.b32.xlu0 %v148, 88
    %v362 = vpop.permute.xlu0 %361
    %v363 = vsel %vm157, %v356, 0
    %v365 = vsel %vm157, %v358, 0
    %v367 = vsel %vm157, %v360, 0
    %v369 = vsel %vm157, %v362, 0
    %371 = vmatprep.subr.mxu0 0.0
    %372 = vmatpush1.xpose.msra.mxu0 %v367
    %373 = vmatprep.subr.mxu0 0.0
    %374 = vmatpush1.xpose.msra.mxu0 %v369
    %375 = vmatprep.subr.mxu0 0.0
    %376 = vmatpush1.xpose.msra.mxu0 0.0
    %377 = vmatprep.subr.mxu0 0.0
    %378 = vmatpush1.xpose.msra.mxu0 0.0
    %379 = vmatprep.subr.mxu0 0.0
    %380 = vmatpush1.xpose.msra.mxu0 0.0
    %381 = vmatprep.subr.mxu0 0.0
    %382 = vmatpush1.xpose.msra.mxu0 0.0
    %383 = vmatprep.subr.mxu0 0.0
    %384 = vmatpush1.xpose.msra.mxu0 0.0
    %385 = vmatprep.subr.mxu0 0.0
    %386 = vmatpush1.xpose.msra.mxu0 0.0
    %387 = vmatprep.subr.mxu0 0.0
    %388 = vmatpush1.xpose.msra.mxu0 0.0
    %389 = vmatprep.subr.mxu0 0.0
    %390 = vmatpush1.xpose.msra.mxu0 0.0
    %391 = vmatprep.subr.mxu0 0.0
    %392 = vmatpush1.xpose.msra.mxu0 0.0
    %393 = vmatprep.subr.mxu0 0.0
    %394 = vmatpush1.xpose.msra.mxu0 0.0
    %395 = vmatprep.subr.mxu0 0.0
    %396 = vmatpush1.xpose.msra.mxu0 0.0
    %397 = vmatprep.subr.mxu0 0.0
    %398 = vmatpush1.xpose.msra.mxu0 0.0
    %399 = vmatprep.subr.mxu0 0.0
    %400 = vmatpush1.xpose.msra.mxu0 0.0
    %401 = vmatprep.subr.mxu0 0.0
    %402 = vmatpush1.xpose.msra.mxu0 0.0
    %403 = vmatprep.subr.mxu0 0.0
    %404 = vmatpush1.xpose.msra.mxu0 0.0
    %405 = vmatprep.subr.mxu0 0.0
    %406 = vmatpush1.xpose.msra.mxu0 0.0
    %407 = vmatprep.subr.mxu0 0.0
    %408 = vmatpush1.xpose.msra.mxu0 0.0
    %409 = vmatprep.subr.mxu0 0.0
    %410 = vmatpush1.xpose.msra.mxu0 0.0
    %411 = vmatprep.subr.mxu0 0.0
    %412 = vmatpush1.xpose.msra.mxu0 0.0
    %413 = vmatprep.subr.mxu0 0.0
    %414 = vmatpush1.xpose.msra.mxu0 0.0
    %415 = vmatprep.subr.mxu0 0.0
    %416 = vmatpush1.xpose.msra.mxu0 0.0
    %417 = vmatprep.subr.mxu0 0.0
    %418 = vmatpush1.xpose.msra.mxu0 0.0
    %419 = vmatprep.subr.mxu0 0.0
    %420 = vmatpush1.xpose.msra.mxu0 0.0
    %421 = vmatprep.subr.mxu0 0.0
    %422 = vmatpush1.xpose.msra.mxu0 0.0
    %423 = vmatprep.subr.mxu0 0.0
    %424 = vmatpush1.xpose.msra.mxu0 0.0
    %425 = vmatprep.subr.mxu0 0.0
    %426 = vmatpush1.xpose.msra.mxu0 0.0
    %427 = vmatprep.subr.mxu0 0.0
    %428 = vmatpush1.xpose.msra.mxu0 0.0
    %429 = vmatprep.subr.mxu0 0.0
    %430 = vmatpush1.xpose.msra.mxu0 0.0
    %431 = vmatprep.subr.mxu0 0.0
    %432 = vmatpush1.xpose.msra.mxu0 0.0
    %433 = vmatprep.subr.mxu0 0.0
    %434 = vmatpush1.xpose.msra.mxu0 0.0
    %435 = vmatprep.mubr.f32.mxu0 0.0
    %436 = vmatmul.mubr.f32.gmra.mrb[0].mxu0 %v363
    %v437 = vpop.f32.mrb[0].mxu0
    %v438 = vadd.f32 0.0, %v437
    %v439 = vpop.f32.mrb[0].mxu0
    %440 = vmatprep.mubr.f32.mxu0 0.0
    %441 = vmatmul.mubr.f32.gmra.mrb[0].mxu0 %v365
    %v442 = vpop.f32.mrb[0].mxu0
    %v443 = vadd.f32 0.0, %v442
    %v444 = vpop.f32.mrb[0].mxu0
    %445 = vdwg.mxu0
    %v446 = vmul.f32 %v438, 0.35355338
    %v447 = vmul.f32 %v443, 0.35355338
    %v448 = vsel %vm51, %v446, %v49
    %v449 = vsel %vm52, %v447, %v50
    %v450 = vsel %vm245, %v448, -inf
    %451 = vmax.xlane.f32.xlu0 %v450
    %v452 = vpop.xlane.xlu0 %451
    %v453 = vsel %vm245, %v449, -inf
    %454 = vmax.xlane.f32.xlu0 %v453
    %v455 = vpop.xlane.xlu0 %454
    %v456 = vsub.f32 %v448, %v452
    %v457 = vsub.f32 %v449, %v455
    %v458 = vmul.f32 %v456, 1.442695
    %v459 = vpow.pop %v458
    %v460 = vmul.f32 %v457, 1.442695
    %v461 = vpow.pop %v460
    %v462 = vsel %vm245, %v459, 0.0
    %463 = vadd.xlane.f32.xlu0 %v462
    %v464 = vpop.xlane.xlu0 %463
    %v465 = vsel %vm245, %v461, 0.0
    %466 = vadd.xlane.f32.xlu0 %v465
    %v467 = vpop.xlane.xlu0 %466
    %v468 = vrcp.pop %v464
    %v469 = vmul.f32 %v459, %v468
    %v470 = vrcp.pop %v467
    %v471 = vmul.f32 %v461, %v470
    %472 = vrot.lane.b32.xlu0 %v143, 56
    %v473 = vpop.permute.xlu0 %472
    %474 = vrot.lane.b32.xlu0 %v148, 56
    %v475 = vpop.permute.xlu0 %474
    %v479 = vsel %vm245, %v469, 0
    %v482 = vsel %vm245, %v471, 0
    %484 = vmatprep.subr.mxu0 0.0
    %485 = vmatpush1.msra.mxu0 %v473
    %486 = vmatprep.subr.mxu0 0.0
    %487 = vmatpush1.msra.mxu0 %v475
    %488 = vmatprep.subr.mxu0 0.0
    %489 = vmatpush1.msra.mxu0 0.0
    %490 = vmatprep.subr.mxu0 0.0
    %491 = vmatpush1.msra.mxu0 0.0
    %492 = vmatprep.subr.mxu0 0.0
    %493 = vmatpush1.msra.mxu0 0.0
    %494 = vmatprep.subr.mxu0 0.0
    %495 = vmatpush1.msra.mxu0 0.0
    %496 = vmatprep.subr.mxu0 0.0
    %497 = vmatpush1.msra.mxu0 0.0
    %498 = vmatprep.subr.mxu0 0.0
    %499 = vmatpush1.msra.mxu0 0.0
    %500 = vmatprep.subr.mxu0 0.0
    %501 = vmatpush1.msra.mxu0 0.0
    %502 = vmatprep.subr.mxu0 0.0
    %503 = vmatpush1.msra.mxu0 0.0
    %504 = vmatprep.subr.mxu0 0.0
    %505 = vmatpush1.msra.mxu0 0.0
    %506 = vmatprep.subr.mxu0 0.0
    %507 = vmatpush1.msra.mxu0 0.0
    %508 = vmatprep.subr.mxu0 0.0
    %509 = vmatpush1.msra.mxu0 0.0
    %510 = vmatprep.subr.mxu0 0.0
    %511 = vmatpush1.msra.mxu0 0.0
    %512 = vmatprep.subr.mxu0 0.0
    %513 = vmatpush1.msra.mxu0 0.0
    %514 = vmatprep.subr.mxu0 0.0
    %515 = vmatpush1.msra.mxu0 0.0
    %516 = vmatprep.subr.mxu0 0.0
    %517 = vmatpush1.msra.mxu0 0.0
    %518 = vmatprep.subr.mxu0 0.0
    %519 = vmatpush1.msra.mxu0 0.0
    %520 = vmatprep.subr.mxu0 0.0
    %521 = vmatpush1.msra.mxu0 0.0
    %522 = vmatprep.subr.mxu0 0.0
    %523 = vmatpush1.msra.mxu0 0.0
    %524 = vmatprep.subr.mxu0 0.0
    %525 = vmatpush1.msra.mxu0 0.0
    %526 = vmatprep.subr.mxu0 0.0
    %527 = vmatpush1.msra.mxu0 0.0
    %528 = vmatprep.subr.mxu0 0.0
    %529 = vmatpush1.msra.mxu0 0.0
    %530 = vmatprep.subr.mxu0 0.0
    %531 = vmatpush1.msra.mxu0 0.0
    %532 = vmatprep.subr.mxu0 0.0
    %533 = vmatpush1.msra.mxu0 0.0
    %534 = vmatprep.subr.mxu0 0.0
    %535 = vmatpush1.msra.mxu0 0.0
    %536 = vmatprep.subr.mxu0 0.0
    %537 = vmatpush1.msra.mxu0 0.0
    %538 = vmatprep.subr.mxu0 0.0
    %539 = vmatpush1.msra.mxu0 0.0
    %540 = vmatprep.subr.mxu0 0.0
    %541 = vmatpush1.msra.mxu0 0.0
    %542 = vmatprep.subr.mxu0 0.0
    %543 = vmatpush1.msra.mxu0 0.0
    %544 = vmatprep.subr.mxu0 0.0
    %545 = vmatpush1.msra.mxu0 0.0
    %546 = vmatprep.subr.mxu0 0.0
    %547 = vmatpush1.msra.mxu0 0.0
    %548 = vmatprep.mubr.f32.mxu0 0.0
    %549 = vmatmul.mubr.f32.gmra.mrb[0].mxu0 %v479
    %v550 = vpop.f32.mrb[0].mxu0
    %v551 = vadd.f32 0.0, %v550
    %v552 = vpop.f32.mrb[0].mxu0
    %553 = vmatprep.mubr.f32.mxu0 0.0
    %554 = vmatmul.mubr.f32.gmra.mrb[0].mxu0 %v482
    %v555 = vpop.f32.mrb[0].mxu0
    %v556 = vadd.f32 0.0, %v555
    %v557 = vpop.f32.mrb[0].mxu0
    %558 = vdwg.mxu0
    %v560 = vsel %vm157, %v551, 0
    %v563 = vsel %vm157, %v556, 0
    %565 = vmatprep.subr.mxu0 0.0
    %566 = vmatpush1.msra.mxu0 %v59
    %567 = vmatprep.subr.mxu0 0.0
    %568 = vmatpush1.msra.mxu0 0.0
    %569 = vmatprep.subr.mxu0 0.0
    %570 = vmatpush1.msra.mxu0 0.0
    %571 = vmatprep.subr.mxu0 0.0
    %572 = vmatpush1.msra.mxu0 0.0
    %573 = vmatprep.subr.mxu0 0.0
    %574 = vmatpush1.msra.mxu0 0.0
    %575 = vmatprep.subr.mxu0 0.0
    %576 = vmatpush1.msra.mxu0 0.0
    %577 = vmatprep.subr.mxu0 0.0
    %578 = vmatpush1.msra.mxu0 0.0
    %579 = vmatprep.subr.mxu0 0.0
    %580 = vmatpush1.msra.mxu0 0.0
    %581 = vmatprep.subr.mxu0 0.0
    %582 = vmatpush1.msra.mxu0 0.0
    %583 = vmatprep.subr.mxu0 0.0
    %584 = vmatpush1.msra.mxu0 0.0
    %585 = vmatprep.subr.mxu0 0.0
    %586 = vmatpush1.msra.mxu0 0.0
    %587 = vmatprep.subr.mxu0 0.0
    %588 = vmatpush1.msra.mxu0 0.0
    %589 = vmatprep.subr.mxu0 0.0
    %590 = vmatpush1.msra.mxu0 0.0
    %591 = vmatprep.subr.mxu0 0.0
    %592 = vmatpush1.msra.mxu0 0.0
    %593 = vmatprep.subr.mxu0 0.0
    %594 = vmatpush1.msra.mxu0 0.0
    %595 = vmatprep.subr.mxu0 0.0
    %596 = vmatpush1.msra.mxu0 0.0
    %597 = vmatprep.subr.mxu0 0.0
    %598 = vmatpush1.msra.mxu0 0.0
    %599 = vmatprep.subr.mxu0 0.0
    %600 = vmatpush1.msra.mxu0 0.0
    %601 = vmatprep.subr.mxu0 0.0
    %602 = vmatpush1.msra.mxu0 0.0
    %603 = vmatprep.subr.mxu0 0.0
    %604 = vmatpush1.msra.mxu0 0.0
    %605 = vmatprep.subr.mxu0 0.0
    %606 = vmatpush1.msra.mxu0 0.0
    %607 = vmatprep.subr.mxu0 0.0
    %608 = vmatpush1.msra.mxu0 0.0
    %609 = vmatprep.subr.mxu0 0.0
    %610 = vmatpush1.msra.mxu0 0.0
    %611 = vmatprep.subr.mxu0 0.0
    %612 = vmatpush1.msra.mxu0 0.0
    %613 = vmatprep.subr.mxu0 0.0
    %614 = vmatpush1.msra.mxu0 0.0
    %615 = vmatprep.subr.mxu0 0.0
    %616 = vmatpush1.msra.mxu0 0.0
    %617 = vmatprep.subr.mxu0 0.0
    %618 = vmatpush1.msra.mxu0 0.0
    %619 = vmatprep.subr.mxu0 0.0
    %620 = vmatpush1.msra.mxu0 0.0
    %621 = vmatprep.subr.mxu0 0.0
    %622 = vmatpush1.msra.mxu0 0.0
    %623 = vmatprep.subr.mxu0 0.0
    %624 = vmatpush1.msra.mxu0 0.0
    %625 = vmatprep.subr.mxu0 0.0
    %626 = vmatpush1.msra.mxu0 0.0
    %627 = vmatprep.subr.mxu0 0.0
    %628 = vmatpush1.msra.mxu0 0.0
    %629 = vmatprep.mubr.f32.mxu0 0.0
    %630 = vmatmul.mubr.f32.gmra.mrb[0].mxu0 %v560
    %v631 = vpop.f32.mrb[0].mxu0
    %v632 = vadd.f32 0.0, %v631
    %v633 = vpop.f32.mrb[0].mxu0
    %634 = vmatprep.mubr.f32.mxu0 0.0
    %635 = vmatmul.mubr.f32.gmra.mrb[0].mxu0 %v563
    %v636 = vpop.f32.mrb[0].mxu0
    %v637 = vadd.f32 0.0, %v636
    %v638 = vpop.f32.mrb[0].mxu0
    %639 = vdwg.mxu0
    %v641 = vsel %vm157, %v347, 0
    %v644 = vsel %vm157, %v352, 0
    %646 = vmatprep.subr.mxu0 0.0
    %647 = vmatpush1.msra.mxu0 %v58
    %648 = vmatprep.subr.mxu0 0.0
    %649 = vmatpush1.msra.mxu0 0.0
    %650 = vmatprep.subr.mxu0 0.0
    %651 = vmatpush1.msra.mxu0 0.0
    %652 = vmatprep.subr.mxu0 0.0
    %653 = vmatpush1.msra.mxu0 0.0
    %654 = vmatprep.subr.mxu0 0.0
    %655 = vmatpush1.msra.mxu0 0.0
    %656 = vmatprep.subr.mxu0 0.0
    %657 = vmatpush1.msra.mxu0 0.0
    %658 = vmatprep.subr.mxu0 0.0
    %659 = vmatpush1.msra.mxu0 0.0
    %660 = vmatprep.subr.mxu0 0.0
    %661 = vmatpush1.msra.mxu0 0.0
    %662 = vmatprep.subr.mxu0 0.0
    %663 = vmatpush1.msra.mxu0 0.0
    %664 = vmatprep.subr.mxu0 0.0
    %665 = vmatpush1.msra.mxu0 0.0
    %666 = vmatprep.subr.mxu0 0.0
    %667 = vmatpush1.msra.mxu0 0.0
    %668 = vmatprep.subr.mxu0 0.0
    %669 = vmatpush1.msra.mxu0 0.0
    %670 = vmatprep.subr.mxu0 0.0
    %671 = vmatpush1.msra.mxu0 0.0
    %672 = vmatprep.subr.mxu0 0.0
    %673 = vmatpush1.msra.mxu0 0.0
    %674 = vmatprep.subr.mxu0 0.0
    %675 = vmatpush1.msra.mxu0 0.0
    %676 = vmatprep.subr.mxu0 0.0
    %677 = vmatpush1.msra.mxu0 0.0
    %678 = vmatprep.subr.mxu0 0.0
    %679 = vmatpush1.msra.mxu0 0.0
    %680 = vmatprep.subr.mxu0 0.0
    %681 = vmatpush1.msra.mxu0 0.0
    %682 = vmatprep.subr.mxu0 0.0
    %683 = vmatpush1.msra.mxu0 0.0
    %684 = vmatprep.subr.mxu0 0.0
    %685 = vmatpush1.msra.mxu0 0.0
    %686 = vmatprep.subr.mxu0 0.0
    %687 = vmatpush1.msra.mxu0 0.0
    %688 = vmatprep.subr.mxu0 0.0
    %689 = vmatpush1.msra.mxu0 0.0
    %690 = vmatprep.subr.mxu0 0.0
    %691 = vmatpush1.msra.mxu0 0.0
    %692 = vmatprep.subr.mxu0 0.0
    %693 = vmatpush1.msra.mxu0 0.0
    %694 = vmatprep.subr.mxu0 0.0
    %695 = vmatpush1.msra.mxu0 0.0
    %696 = vmatprep.subr.mxu0 0.0
    %697 = vmatpush1.msra.mxu0 0.0
    %698 = vmatprep.subr.mxu0 0.0
    %699 = vmatpush1.msra.mxu0 0.0
    %700 = vmatprep.subr.mxu0 0.0
    %701 = vmatpush1.msra.mxu0 0.0
    %702 = vmatprep.subr.mxu0 0.0
    %703 = vmatpush1.msra.mxu0 0.0
    %704 = vmatprep.subr.mxu0 0.0
    %705 = vmatpush1.msra.mxu0 0.0
    %706 = vmatprep.subr.mxu0 0.0
    %707 = vmatpush1.msra.mxu0 0.0
    %708 = vmatprep.subr.mxu0 0.0
    %709 = vmatpush1.msra.mxu0 0.0
    %710 = vmatprep.mubr.f32.mxu0 0.0
    %711 = vmatmul.mubr.f32.gmra.mrb[0].mxu0 %v641
    %v712 = vpop.f32.mrb[0].mxu0
    %v713 = vadd.f32 %v632, %v712
    %v714 = vpop.f32.mrb[0].mxu0
    %715 = vmatprep.mubr.f32.mxu0 0.0
    %716 = vmatmul.mubr.f32.gmra.mrb[0].mxu0 %v644
    %v717 = vpop.f32.mrb[0].mxu0
    %v718 = vadd.f32 %v637, %v717
    %v719 = vpop.f32.mrb[0].mxu0
    %720 = vdwg.mxu0
    %721 = vrot.lane.b32.xlu0 %v143, 112
    %v722 = vpop.permute.xlu0 %721
    %723 = vrot.lane.b32.xlu0 %v148, 112
    %v724 = vpop.permute.xlu0 %723
    %725 = vrot.lane.b32.xlu0 %v143, 80
    %v726 = vpop.permute.xlu0 %725
    %727 = vrot.lane.b32.xlu0 %v148, 80
    %v728 = vpop.permute.xlu0 %727
    %v729 = vsel %vm157, %v722, 0
    %v731 = vsel %vm157, %v724, 0
    %v733 = vsel %vm157, %v726, 0
    %v735 = vsel %vm157, %v728, 0
    %737 = vmatprep.subr.mxu0 0.0
    %738 = vmatpush1.xpose.msra.mxu0 %v733
    %739 = vmatprep.subr.mxu0 0.0
    %740 = vmatpush1.xpose.msra.mxu0 %v735
    %741 = vmatprep.subr.mxu0 0.0
    %742 = vmatpush1.xpose.msra.mxu0 0.0
    %743 = vmatprep.subr.mxu0 0.0
    %744 = vmatpush1.xpose.msra.mxu0 0.0
    %745 = vmatprep.subr.mxu0 0.0
    %746 = vmatpush1.xpose.msra.mxu0 0.0
    %747 = vmatprep.subr.mxu0 0.0
    %748 = vmatpush1.xpose.msra.mxu0 0.0
    %749 = vmatprep.subr.mxu0 0.0
    %750 = vmatpush1.xpose.msra.mxu0 0.0
    %751 = vmatprep.subr.mxu0 0.0
    %752 = vmatpush1.xpose.msra.mxu0 0.0
    %753 = vmatprep.subr.mxu0 0.0
    %754 = vmatpush1.xpose.msra.mxu0 0.0
    %755 = vmatprep.subr.mxu0 0.0
    %756 = vmatpush1.xpose.msra.mxu0 0.0
    %757 = vmatprep.subr.mxu0 0.0
    %758 = vmatpush1.xpose.msra.mxu0 0.0
    %759 = vmatprep.subr.mxu0 0.0
    %760 = vmatpush1.xpose.msra.mxu0 0.0
    %761 = vmatprep.subr.mxu0 0.0
    %762 = vmatpush1.xpose.msra.mxu0 0.0
    %763 = vmatprep.subr.mxu0 0.0
    %764 = vmatpush1.xpose.msra.mxu0 0.0
    %765 = vmatprep.subr.mxu0 0.0
    %766 = vmatpush1.xpose.msra.mxu0 0.0
    %767 = vmatprep.subr.mxu0 0.0
    %768 = vmatpush1.xpose.msra.mxu0 0.0
    %769 = vmatprep.subr.mxu0 0.0
    %770 = vmatpush1.xpose.msra.mxu0 0.0
    %771 = vmatprep.subr.mxu0 0.0
    %772 = vmatpush1.xpose.msra.mxu0 0.0
    %773 = vmatprep.subr.mxu0 0.0
    %774 = vmatpush1.xpose.msra.mxu0 0.0
    %775 = vmatprep.subr.mxu0 0.0
    %776 = vmatpush1.xpose.msra.mxu0 0.0
    %777 = vmatprep.subr.mxu0 0.0
    %778 = vmatpush1.xpose.msra.mxu0 0.0
    %779 = vmatprep.subr.mxu0 0.0
    %780 = vmatpush1.xpose.msra.mxu0 0.0
    %781 = vmatprep.subr.mxu0 0.0
    %782 = vmatpush1.xpose.msra.mxu0 0.0
    %783 = vmatprep.subr.mxu0 0.0
    %784 = vmatpush1.xpose.msra.mxu0 0.0
    %785 = vmatprep.subr.mxu0 0.0
    %786 = vmatpush1.xpose.msra.mxu0 0.0
    %787 = vmatprep.subr.mxu0 0.0
    %788 = vmatpush1.xpose.msra.mxu0 0.0
    %789 = vmatprep.subr.mxu0 0.0
    %790 = vmatpush1.xpose.msra.mxu0 0.0
    %791 = vmatprep.subr.mxu0 0.0
    %792 = vmatpush1.xpose.msra.mxu0 0.0
    %793 = vmatprep.subr.mxu0 0.0
    %794 = vmatpush1.xpose.msra.mxu0 0.0
    %795 = vmatprep.subr.mxu0 0.0
    %796 = vmatpush1.xpose.msra.mxu0 0.0
    %797 = vmatprep.subr.mxu0 0.0
    %798 = vmatpush1.xpose.msra.mxu0 0.0
    %799 = vmatprep.subr.mxu0 0.0
    %800 = vmatpush1.xpose.msra.mxu0 0.0
    %801 = vmatprep.mubr.f32.mxu0 0.0
    %802 = vmatmul.mubr.f32.gmra.mrb[0].mxu0 %v729
    %v803 = vpop.f32.mrb[0].mxu0
    %v804 = vadd.f32 0.0, %v803
    %v805 = vpop.f32.mrb[0].mxu0
    %806 = vmatprep.mubr.f32.mxu0 0.0
    %807 = vmatmul.mubr.f32.gmra.mrb[0].mxu0 %v731
    %v808 = vpop.f32.mrb[0].mxu0
    %v809 = vadd.f32 0.0, %v808
    %v810 = vpop.f32.mrb[0].mxu0
    %811 = vdwg.mxu0
    %v812 = vmul.f32 %v804, 0.35355338
    %v813 = vmul.f32 %v809, 0.35355338
    %v814 = vsel %vm51, %v812, %v49
    %v815 = vsel %vm52, %v813, %v50
    %v816 = vsel %vm245, %v814, -inf
    %817 = vmax.xlane.f32.xlu0 %v816
    %v818 = vpop.xlane.xlu0 %817
    %v819 = vsel %vm245, %v815, -inf
    %820 = vmax.xlane.f32.xlu0 %v819
    %v821 = vpop.xlane.xlu0 %820
    %v822 = vsub.f32 %v814, %v818
    %v823 = vsub.f32 %v815, %v821
    %v824 = vmul.f32 %v822, 1.442695
    %v825 = vpow.pop %v824
    %v826 = vmul.f32 %v823, 1.442695
    %v827 = vpow.pop %v826
    %v828 = vsel %vm245, %v825, 0.0
    %829 = vadd.xlane.f32.xlu0 %v828
    %v830 = vpop.xlane.xlu0 %829
    %v831 = vsel %vm245, %v827, 0.0
    %832 = vadd.xlane.f32.xlu0 %v831
    %v833 = vpop.xlane.xlu0 %832
    %v834 = vrcp.pop %v830
    %v835 = vmul.f32 %v825, %v834
    %v836 = vrcp.pop %v833
    %v837 = vmul.f32 %v827, %v836
    %838 = vrot.lane.b32.xlu0 %v143, 48
    %v839 = vpop.permute.xlu0 %838
    %840 = vrot.lane.b32.xlu0 %v148, 48
    %v841 = vpop.permute.xlu0 %840
    %v845 = vsel %vm245, %v835, 0
    %v848 = vsel %vm245, %v837, 0
    %850 = vmatprep.subr.mxu0 0.0
    %851 = vmatpush1.msra.mxu0 %v839
    %852 = vmatprep.subr.mxu0 0.0
    %853 = vmatpush1.msra.mxu0 %v841
    %854 = vmatprep.subr.mxu0 0.0
    %855 = vmatpush1.msra.mxu0 0.0
    %856 = vmatprep.subr.mxu0 0.0
    %857 = vmatpush1.msra.mxu0 0.0
    %858 = vmatprep.subr.mxu0 0.0
    %859 = vmatpush1.msra.mxu0 0.0
    %860 = vmatprep.subr.mxu0 0.0
    %861 = vmatpush1.msra.mxu0 0.0
    %862 = vmatprep.subr.mxu0 0.0
    %863 = vmatpush1.msra.mxu0 0.0
    %864 = vmatprep.subr.mxu0 0.0
    %865 = vmatpush1.msra.mxu0 0.0
    %866 = vmatprep.subr.mxu0 0.0
    %867 = vmatpush1.msra.mxu0 0.0
    %868 = vmatprep.subr.mxu0 0.0
    %869 = vmatpush1.msra.mxu0 0.0
    %870 = vmatprep.subr.mxu0 0.0
    %871 = vmatpush1.msra.mxu0 0.0
    %872 = vmatprep.subr.mxu0 0.0
    %873 = vmatpush1.msra.mxu0 0.0
    %874 = vmatprep.subr.mxu0 0.0
    %875 = vmatpush1.msra.mxu0 0.0
    %876 = vmatprep.subr.mxu0 0.0
    %877 = vmatpush1.msra.mxu0 0.0
    %878 = vmatprep.subr.mxu0 0.0
    %879 = vmatpush1.msra.mxu0 0.0
    %880 = vmatprep.subr.mxu0 0.0
    %881 = vmatpush1.msra.mxu0 0.0
    %882 = vmatprep.subr.mxu0 0.0
    %883 = vmatpush1.msra.mxu0 0.0
    %884 = vmatprep.subr.mxu0 0.0
    %885 = vmatpush1.msra.mxu0 0.0
    %886 = vmatprep.subr.mxu0 0.0
    %887 = vmatpush1.msra.mxu0 0.0
    %888 = vmatprep.subr.mxu0 0.0
    %889 = vmatpush1.msra.mxu0 0.0
    %890 = vmatprep.subr.mxu0 0.0
    %891 = vmatpush1.msra.mxu0 0.0
    %892 = vmatprep.subr.mxu0 0.0
    %893 = vmatpush1.msra.mxu0 0.0
    %894 = vmatprep.subr.mxu0 0.0
    %895 = vmatpush1.msra.mxu0 0.0
    %896 = vmatprep.subr.mxu0 0.0
    %897 = vmatpush1.msra.mxu0 0.0
    %898 = vmatprep.subr.mxu0 0.0
    %899 = vmatpush1.msra.mxu0 0.0
    %900 = vmatprep.subr.mxu0 0.0
    %901 = vmatpush1.msra.mxu0 0.0
    %902 = vmatprep.subr.mxu0 0.0
    %903 = vmatpush1.msra.mxu0 0.0
    %904 = vmatprep.subr.mxu0 0.0
    %905 = vmatpush1.msra.mxu0 0.0
    %906 = vmatprep.subr.mxu0 0.0
    %907 = vmatpush1.msra.mxu0 0.0
    %908 = vmatprep.subr.mxu0 0.0
    %909 = vmatpush1.msra.mxu0 0.0
    %910 = vmatprep.subr.mxu0 0.0
    %911 = vmatpush1.msra.mxu0 0.0
    %912 = vmatprep.subr.mxu0 0.0
    %913 = vmatpush1.msra.mxu0 0.0
    %914 = vmatprep.mubr.f32.mxu0 0.0
    %915 = vmatmul.mubr.f32.gmra.mrb[0].mxu0 %v845
    %v916 = vpop.f32.mrb[0].mxu0
    %v917 = vadd.f32 0.0, %v916
    %v918 = vpop.f32.mrb[0].mxu0
    %919 = vmatprep.mubr.f32.mxu0 0.0
    %920 = vmatmul.mubr.f32.gmra.mrb[0].mxu0 %v848
    %v921 = vpop.f32.mrb[0].mxu0
    %v922 = vadd.f32 0.0, %v921
    %v923 = vpop.f32.mrb[0].mxu0
    %924 = vdwg.mxu0
    %v926 = vsel %vm157, %v917, 0
    %v929 = vsel %vm157, %v922, 0
    %931 = vmatprep.subr.mxu0 0.0
    %932 = vmatpush1.msra.mxu0 %v60
    %933 = vmatprep.subr.mxu0 0.0
    %934 = vmatpush1.msra.mxu0 0.0
    %935 = vmatprep.subr.mxu0 0.0
    %936 = vmatpush1.msra.mxu0 0.0
    %937 = vmatprep.subr.mxu0 0.0
    %938 = vmatpush1.msra.mxu0 0.0
    %939 = vmatprep.subr.mxu0 0.0
    %940 = vmatpush1.msra.mxu0 0.0
    %941 = vmatprep.subr.mxu0 0.0
    %942 = vmatpush1.msra.mxu0 0.0
    %943 = vmatprep.subr.mxu0 0.0
    %944 = vmatpush1.msra.mxu0 0.0
    %945 = vmatprep.subr.mxu0 0.0
    %946 = vmatpush1.msra.mxu0 0.0
    %947 = vmatprep.subr.mxu0 0.0
    %948 = vmatpush1.msra.mxu0 0.0
    %949 = vmatprep.subr.mxu0 0.0
    %950 = vmatpush1.msra.mxu0 0.0
    %951 = vmatprep.subr.mxu0 0.0
    %952 = vmatpush1.msra.mxu0 0.0
    %953 = vmatprep.subr.mxu0 0.0
    %954 = vmatpush1.msra.mxu0 0.0
    %955 = vmatprep.subr.mxu0 0.0
    %956 = vmatpush1.msra.mxu0 0.0
    %957 = vmatprep.subr.mxu0 0.0
    %958 = vmatpush1.msra.mxu0 0.0
    %959 = vmatprep.subr.mxu0 0.0
    %960 = vmatpush1.msra.mxu0 0.0
    %961 = vmatprep.subr.mxu0 0.0
    %962 = vmatpush1.msra.mxu0 0.0
    %963 = vmatprep.subr.mxu0 0.0
    %964 = vmatpush1.msra.mxu0 0.0
    %965 = vmatprep.subr.mxu0 0.0
    %966 = vmatpush1.msra.mxu0 0.0
    %967 = vmatprep.subr.mxu0 0.0
    %968 = vmatpush1.msra.mxu0 0.0
    %969 = vmatprep.subr.mxu0 0.0
    %970 = vmatpush1.msra.mxu0 0.0
    %971 = vmatprep.subr.mxu0 0.0
    %972 = vmatpush1.msra.mxu0 0.0
    %973 = vmatprep.subr.mxu0 0.0
    %974 = vmatpush1.msra.mxu0 0.0
    %975 = vmatprep.subr.mxu0 0.0
    %976 = vmatpush1.msra.mxu0 0.0
    %977 = vmatprep.subr.mxu0 0.0
    %978 = vmatpush1.msra.mxu0 0.0
    %979 = vmatprep.subr.mxu0 0.0
    %980 = vmatpush1.msra.mxu0 0.0
    %981 = vmatprep.subr.mxu0 0.0
    %982 = vmatpush1.msra.mxu0 0.0
    %983 = vmatprep.subr.mxu0 0.0
    %984 = vmatpush1.msra.mxu0 0.0
    %985 = vmatprep.subr.mxu0 0.0
    %986 = vmatpush1.msra.mxu0 0.0
    %987 = vmatprep.subr.mxu0 0.0
    %988 = vmatpush1.msra.mxu0 0.0
    %989 = vmatprep.subr.mxu0 0.0
    %990 = vmatpush1.msra.mxu0 0.0
    %991 = vmatprep.subr.mxu0 0.0
    %992 = vmatpush1.msra.mxu0 0.0
    %993 = vmatprep.subr.mxu0 0.0
    %994 = vmatpush1.msra.mxu0 0.0
    %995 = vmatprep.mubr.f32.mxu0 0.0
    %996 = vmatmul.mubr.f32.gmra.mrb[0].mxu0 %v926
    %v997 = vpop.f32.mrb[0].mxu0
    %v998 = vadd.f32 0.0, %v997
    %v999 = vpop.f32.mrb[0].mxu0
    %1000 = vmatprep.mubr.f32.mxu0 0.0
    %1001 = vmatmul.mubr.f32.gmra.mrb[0].mxu0 %v929
    %v1002 = vpop.f32.mrb[0].mxu0
    %v1003 = vadd.f32 0.0, %v1002
    %v1004 = vpop.f32.mrb[0].mxu0
    %1005 = vdwg.mxu0
    %v1006 = vadd.f32 %v713, %v998
    %v1007 = vadd.f32 %v718, %v1003
    %1008 = vrot.lane.b32.xlu0 %v143, 104
    %v1009 = vpop.permute.xlu0 %1008
    %1010 = vrot.lane.b32.xlu0 %v148, 104
    %v1011 = vpop.permute.xlu0 %1010
    %1012 = vrot.lane.b32.xlu0 %v143, 72
    %v1013 = vpop.permute.xlu0 %1012
    %1014 = vrot.lane.b32.xlu0 %v148, 72
    %v1015 = vpop.permute.xlu0 %1014
    %v1016 = vsel %vm157, %v1009, 0
    %v1018 = vsel %vm157, %v1011, 0
    %v1020 = vsel %vm157, %v1013, 0
    %v1022 = vsel %vm157, %v1015, 0
    %1024 = vmatprep.subr.mxu0 0.0
    %1025 = vmatpush1.xpose.msra.mxu0 %v1020
    %1026 = vmatprep.subr.mxu0 0.0
    %1027 = vmatpush1.xpose.msra.mxu0 %v1022
    %1028 = vmatprep.subr.mxu0 0.0
    %1029 = vmatpush1.xpose.msra.mxu0 0.0
    %1030 = vmatprep.subr.mxu0 0.0
    %1031 = vmatpush1.xpose.msra.mxu0 0.0
    %1032 = vmatprep.subr.mxu0 0.0
    %1033 = vmatpush1.xpose.msra.mxu0 0.0
    %1034 = vmatprep.subr.mxu0 0.0
    %1035 = vmatpush1.xpose.msra.mxu0 0.0
    %1036 = vmatprep.subr.mxu0 0.0
    %1037 = vmatpush1.xpose.msra.mxu0 0.0
    %1038 = vmatprep.subr.mxu0 0.0
    %1039 = vmatpush1.xpose.msra.mxu0 0.0
    %1040 = vmatprep.subr.mxu0 0.0
    %1041 = vmatpush1.xpose.msra.mxu0 0.0
    %1042 = vmatprep.subr.mxu0 0.0
    %1043 = vmatpush1.xpose.msra.mxu0 0.0
    %1044 = vmatprep.subr.mxu0 0.0
    %1045 = vmatpush1.xpose.msra.mxu0 0.0
    %1046 = vmatprep.subr.mxu0 0.0
    %1047 = vmatpush1.xpose.msra.mxu0 0.0
    %1048 = vmatprep.subr.mxu0 0.0
    %1049 = vmatpush1.xpose.msra.mxu0 0.0
    %1050 = vmatprep.subr.mxu0 0.0
    %1051 = vmatpush1.xpose.msra.mxu0 0.0
    %1052 = vmatprep.subr.mxu0 0.0
    %1053 = vmatpush1.xpose.msra.mxu0 0.0
    %1054 = vmatprep.subr.mxu0 0.0
    %1055 = vmatpush1.xpose.msra.mxu0 0.0
    %1056 = vmatprep.subr.mxu0 0.0
    %1057 = vmatpush1.xpose.msra.mxu0 0.0
    %1058 = vmatprep.subr.mxu0 0.0
    %1059 = vmatpush1.xpose.msra.mxu0 0.0
    %1060 = vmatprep.subr.mxu0 0.0
    %1061 = vmatpush1.xpose.msra.mxu0 0.0
    %1062 = vmatprep.subr.mxu0 0.0
    %1063 = vmatpush1.xpose.msra.mxu0 0.0
    %1064 = vmatprep.subr.mxu0 0.0
    %1065 = vmatpush1.xpose.msra.mxu0 0.0
    %1066 = vmatprep.subr.mxu0 0.0
    %1067 = vmatpush1.xpose.msra.mxu0 0.0
    %1068 = vmatprep.subr.mxu0 0.0
    %1069 = vmatpush1.xpose.msra.mxu0 0.0
    %1070 = vmatprep.subr.mxu0 0.0
    %1071 = vmatpush1.xpose.msra.mxu0 0.0
    %1072 = vmatprep.subr.mxu0 0.0
    %1073 = vmatpush1.xpose.msra.mxu0 0.0
    %1074 = vmatprep.subr.mxu0 0.0
    %1075 = vmatpush1.xpose.msra.mxu0 0.0
    %1076 = vmatprep.subr.mxu0 0.0
    %1077 = vmatpush1.xpose.msra.mxu0 0.0
    %1078 = vmatprep.subr.mxu0 0.0
    %1079 = vmatpush1.xpose.msra.mxu0 0.0
    %1080 = vmatprep.subr.mxu0 0.0
    %1081 = vmatpush1.xpose.msra.mxu0 0.0
    %1082 = vmatprep.subr.mxu0 0.0
    %1083 = vmatpush1.xpose.msra.mxu0 0.0
    %1084 = vmatprep.subr.mxu0 0.0
    %1085 = vmatpush1.xpose.msra.mxu0 0.0
    %1086 = vmatprep.subr.mxu0 0.0
    %1087 = vmatpush1.xpose.msra.mxu0 0.0
    %1088 = vmatprep.mubr.f32.mxu0 0.0
    %1089 = vmatmul.mubr.f32.gmra.mrb[0].mxu0 %v1016
    %v1090 = vpop.f32.mrb[0].mxu0
    %v1091 = vadd.f32 0.0, %v1090
    %v1092 = vpop.f32.mrb[0].mxu0
    %1093 = vmatprep.mubr.f32.mxu0 0.0
    %1094 = vmatmul.mubr.f32.gmra.mrb[0].mxu0 %v1018
    %v1095 = vpop.f32.mrb[0].mxu0
    %v1096 = vadd.f32 0.0, %v1095
    %v1097 = vpop.f32.mrb[0].mxu0
    %1098 = vdwg.mxu0
    %v1099 = vmul.f32 %v1091, 0.35355338
    %v1100 = vmul.f32 %v1096, 0.35355338
    %v1101 = vsel %vm51, %v1099, %v49
    %v1102 = vsel %vm52, %v1100, %v50
    %v1103 = vsel %vm245, %v1101, -inf
    %1104 = vmax.xlane.f32.xlu0 %v1103
    %v1105 = vpop.xlane.xlu0 %1104
    %v1106 = vsel %vm245, %v1102, -inf
    %1107 = vmax.xlane.f32.xlu0 %v1106
    %v1108 = vpop.xlane.xlu0 %1107
    %v1109 = vsub.f32 %v1101, %v1105
    %v1110 = vsub.f32 %v1102, %v1108
    %v1111 = vmul.f32 %v1109, 1.442695
    %v1112 = vpow.pop %v1111
    %v1113 = vmul.f32 %v1110, 1.442695
    %v1114 = vpow.pop %v1113
    %v1115 = vsel %vm245, %v1112, 0.0
    %1116 = vadd.xlane.f32.xlu0 %v1115
    %v1117 = vpop.xlane.xlu0 %1116
    %v1118 = vsel %vm245, %v1114, 0.0
    %1119 = vadd.xlane.f32.xlu0 %v1118
    %v1120 = vpop.xlane.xlu0 %1119
    %v1121 = vrcp.pop %v1117
    %v1122 = vmul.f32 %v1112, %v1121
    %v1123 = vrcp.pop %v1120
    %v1124 = vmul.f32 %v1114, %v1123
    %1125 = vrot.lane.b32.xlu0 %v143, 40
    %v1126 = vpop.permute.xlu0 %1125
    %1127 = vrot.lane.b32.xlu0 %v148, 40
    %v1128 = vpop.permute.xlu0 %1127
    %v1132 = vsel %vm245, %v1122, 0
    %v1135 = vsel %vm245, %v1124, 0
    %1137 = vmatprep.subr.mxu0 0.0
    %1138 = vmatpush1.msra.mxu0 %v1126
    %1139 = vmatprep.subr.mxu0 0.0
    %1140 = vmatpush1.msra.mxu0 %v1128
    %1141 = vmatprep.subr.mxu0 0.0
    %1142 = vmatpush1.msra.mxu0 0.0
    %1143 = vmatprep.subr.mxu0 0.0
    %1144 = vmatpush1.msra.mxu0 0.0
    %1145 = vmatprep.subr.mxu0 0.0
    %1146 = vmatpush1.msra.mxu0 0.0
    %1147 = vmatprep.subr.mxu0 0.0
    %1148 = vmatpush1.msra.mxu0 0.0
    %1149 = vmatprep.subr.mxu0 0.0
    %1150 = vmatpush1.msra.mxu0 0.0
    %1151 = vmatprep.subr.mxu0 0.0
    %1152 = vmatpush1.msra.mxu0 0.0
    %1153 = vmatprep.subr.mxu0 0.0
    %1154 = vmatpush1.msra.mxu0 0.0
    %1155 = vmatprep.subr.mxu0 0.0
    %1156 = vmatpush1.msra.mxu0 0.0
    %1157 = vmatprep.subr.mxu0 0.0
    %1158 = vmatpush1.msra.mxu0 0.0
    %1159 = vmatprep.subr.mxu0 0.0
    %1160 = vmatpush1.msra.mxu0 0.0
    %1161 = vmatprep.subr.mxu0 0.0
    %1162 = vmatpush1.msra.mxu0 0.0
    %1163 = vmatprep.subr.mxu0 0.0
    %1164 = vmatpush1.msra.mxu0 0.0
    %1165 = vmatprep.subr.mxu0 0.0
    %1166 = vmatpush1.msra.mxu0 0.0
    %1167 = vmatprep.subr.mxu0 0.0
    %1168 = vmatpush1.msra.mxu0 0.0
    %1169 = vmatprep.subr.mxu0 0.0
    %1170 = vmatpush1.msra.mxu0 0.0
    %1171 = vmatprep.subr.mxu0 0.0
    %1172 = vmatpush1.msra.mxu0 0.0
    %1173 = vmatprep.subr.mxu0 0.0
    %1174 = vmatpush1.msra.mxu0 0.0
    %1175 = vmatprep.subr.mxu0 0.0
    %1176 = vmatpush1.msra.mxu0 0.0
    %1177 = vmatprep.subr.mxu0 0.0
    %1178 = vmatpush1.msra.mxu0 0.0
    %1179 = vmatprep.subr.mxu0 0.0
    %1180 = vmatpush1.msra.mxu0 0.0
    %1181 = vmatprep.subr.mxu0 0.0
    %1182 = vmatpush1.msra.mxu0 0.0
    %1183 = vmatprep.subr.mxu0 0.0
    %1184 = vmatpush1.msra.mxu0 0.0
    %1185 = vmatprep.subr.mxu0 0.0
    %1186 = vmatpush1.msra.mxu0 0.0
    %1187 = vmatprep.subr.mxu0 0.0
    %1188 = vmatpush1.msra.mxu0 0.0
    %1189 = vmatprep.subr.mxu0 0.0
    %1190 = vmatpush1.msra.mxu0 0.0
    %1191 = vmatprep.subr.mxu0 0.0
    %1192 = vmatpush1.msra.mxu0 0.0
    %1193 = vmatprep.subr.mxu0 0.0
    %1194 = vmatpush1.msra.mxu0 0.0
    %1195 = vmatprep.subr.mxu0 0.0
    %1196 = vmatpush1.msra.mxu0 0.0
    %1197 = vmatprep.subr.mxu0 0.0
    %1198 = vmatpush1.msra.mxu0 0.0
    %1199 = vmatprep.subr.mxu0 0.0
    %1200 = vmatpush1.msra.mxu0 0.0
    %1201 = vmatprep.mubr.f32.mxu0 0.0
    %1202 = vmatmul.mubr.f32.gmra.mrb[0].mxu0 %v1132
    %v1203 = vpop.f32.mrb[0].mxu0
    %v1204 = vadd.f32 0.0, %v1203
    %v1205 = vpop.f32.mrb[0].mxu0
    %1206 = vmatprep.mubr.f32.mxu0 0.0
    %1207 = vmatmul.mubr.f32.gmra.mrb[0].mxu0 %v1135
    %v1208 = vpop.f32.mrb[0].mxu0
    %v1209 = vadd.f32 0.0, %v1208
    %v1210 = vpop.f32.mrb[0].mxu0
    %1211 = vdwg.mxu0
    %v1213 = vsel %vm157, %v1204, 0
    %v1216 = vsel %vm157, %v1209, 0
    %1218 = vmatprep.subr.mxu0 0.0
    %1219 = vmatpush1.msra.mxu0 %v61
    %1220 = vmatprep.subr.mxu0 0.0
    %1221 = vmatpush1.msra.mxu0 0.0
    %1222 = vmatprep.subr.mxu0 0.0
    %1223 = vmatpush1.msra.mxu0 0.0
    %1224 = vmatprep.subr.mxu0 0.0
    %1225 = vmatpush1.msra.mxu0 0.0
    %1226 = vmatprep.subr.mxu0 0.0
    %1227 = vmatpush1.msra.mxu0 0.0
    %1228 = vmatprep.subr.mxu0 0.0
    %1229 = vmatpush1.msra.mxu0 0.0
    %1230 = vmatprep.subr.mxu0 0.0
    %1231 = vmatpush1.msra.mxu0 0.0
    %1232 = vmatprep.subr.mxu0 0.0
    %1233 = vmatpush1.msra.mxu0 0.0
    %1234 = vmatprep.subr.mxu0 0.0
    %1235 = vmatpush1.msra.mxu0 0.0
    %1236 = vmatprep.subr.mxu0 0.0
    %1237 = vmatpush1.msra.mxu0 0.0
    %1238 = vmatprep.subr.mxu0 0.0
    %1239 = vmatpush1.msra.mxu0 0.0
    %1240 = vmatprep.subr.mxu0 0.0
    %1241 = vmatpush1.msra.mxu0 0.0
    %1242 = vmatprep.subr.mxu0 0.0
    %1243 = vmatpush1.msra.mxu0 0.0
    %1244 = vmatprep.subr.mxu0 0.0
    %1245 = vmatpush1.msra.mxu0 0.0
    %1246 = vmatprep.subr.mxu0 0.0
    %1247 = vmatpush1.msra.mxu0 0.0
    %1248 = vmatprep.subr.mxu0 0.0
    %1249 = vmatpush1.msra.mxu0 0.0
    %1250 = vmatprep.subr.mxu0 0.0
    %1251 = vmatpush1.msra.mxu0 0.0
    %1252 = vmatprep.subr.mxu0 0.0
    %1253 = vmatpush1.msra.mxu0 0.0
    %1254 = vmatprep.subr.mxu0 0.0
    %1255 = vmatpush1.msra.mxu0 0.0
    %1256 = vmatprep.subr.mxu0 0.0
    %1257 = vmatpush1.msra.mxu0 0.0
    %1258 = vmatprep.subr.mxu0 0.0
    %1259 = vmatpush1.msra.mxu0 0.0
    %1260 = vmatprep.subr.mxu0 0.0
    %1261 = vmatpush1.msra.mxu0 0.0
    %1262 = vmatprep.subr.mxu0 0.0
    %1263 = vmatpush1.msra.mxu0 0.0
    %1264 = vmatprep.subr.mxu0 0.0
    %1265 = vmatpush1.msra.mxu0 0.0
    %1266 = vmatprep.subr.mxu0 0.0
    %1267 = vmatpush1.msra.mxu0 0.0
    %1268 = vmatprep.subr.mxu0 0.0
    %1269 = vmatpush1.msra.mxu0 0.0
    %1270 = vmatprep.subr.mxu0 0.0
    %1271 = vmatpush1.msra.mxu0 0.0
    %1272 = vmatprep.subr.mxu0 0.0
    %1273 = vmatpush1.msra.mxu0 0.0
    %1274 = vmatprep.subr.mxu0 0.0
    %1275 = vmatpush1.msra.mxu0 0.0
    %1276 = vmatprep.subr.mxu0 0.0
    %1277 = vmatpush1.msra.mxu0 0.0
    %1278 = vmatprep.subr.mxu0 0.0
    %1279 = vmatpush1.msra.mxu0 0.0
    %1280 = vmatprep.subr.mxu0 0.0
    %1281 = vmatpush1.msra.mxu0 0.0
    %1282 = vmatprep.mubr.f32.mxu0 0.0
    %1283 = vmatmul.mubr.f32.gmra.mrb[0].mxu0 %v1213
    %v1284 = vpop.f32.mrb[0].mxu0
    %v1285 = vadd.f32 0.0, %v1284
    %v1286 = vpop.f32.mrb[0].mxu0
    %1287 = vmatprep.mubr.f32.mxu0 0.0
    %1288 = vmatmul.mubr.f32.gmra.mrb[0].mxu0 %v1216
    %v1289 = vpop.f32.mrb[0].mxu0
    %v1290 = vadd.f32 0.0, %v1289
    %v1291 = vpop.f32.mrb[0].mxu0
    %1292 = vdwg.mxu0
    %v1293 = vadd.f32 %v1006, %v1285
    %v1294 = vadd.f32 %v1007, %v1290
    %v1295 = vlaneseq
    %v1296 = vshrl.u32 %v1295, 7
    %v1297 = vsub.s32 0, %v1296
    %v1298 = vrot.slane %v62, %v1297
    %v1299 = vadd.f32 %v1293, %v1298
    %v1300 = vadd.f32 %v1294, %v1298
    %v1301 = vadd.f32 %v47, %v1299
    %v1302 = vadd.f32 %v48, %v1300
    %v1303 = vsel %vm69, %v1301, 0.0
    %1304 = vadd.xlane.f32.xlu0 %v1303
    %v1305 = vpop.xlane.xlu0 %1304
    %v1306 = vsel %vm69, %v1302, 0.0
    %1307 = vadd.xlane.f32.xlu0 %v1306
    %v1308 = vpop.xlane.xlu0 %1307
    %v1309 = vrcp.pop 32.0
    %v1310 = vmul.f32 %v1305, %v1309
    %v1311 = vmul.f32 %v1308, %v1309
    %v1312 = vsub.f32 %v1301, %v1310
    %v1313 = vsub.f32 %v1302, %v1311
    %v1314 = vmul.f32 %v1312, %v1312
    %v1315 = vmul.f32 %v1313, %v1313
    %v1316 = vsel %vm69, %v1314, 0.0
    %1317 = vadd.xlane.f32.xlu0 %v1316
    %v1318 = vpop.xlane.xlu0 %1317
    %v1319 = vsel %vm69, %v1315, 0.0
    %1320 = vadd.xlane.f32.xlu0 %v1319
    %v1321 = vpop.xlane.xlu0 %1320
    %v1322 = vmul.f32 %v1318, %v1309
    %v1323 = vmul.f32 %v1321, %v1309
    %v1324 = vadd.f32 %v1322, 1e-05
    %v1325 = vadd.f32 %v1323, 1e-05
    %v1326 = vrsqrt.pop %v1324
    %v1327 = vrsqrt.pop %v1325
    %v1328 = vmul.f32 %v1312, %v1326
    %v1329 = vmul.f32 %v1313, %v1327
    %v1330 = vlaneseq
    %v1331 = vshrl.u32 %v1330, 7
    %v1332 = vsub.s32 1, %v1331
    %v1333 = vrot.slane %v62, %v1332
    %v1334 = vmul.f32 %v1328, %v1333
    %v1335 = vmul.f32 %v1329, %v1333
    %v1336 = vlaneseq
    %v1337 = vshrl.u32 %v1336, 7
    %v1338 = vsub.s32 2, %v1337
    %v1339 = vrot.slane %v62, %v1338
    %v1340 = vadd.f32 %v1334, %v1339
    %v1341 = vadd.f32 %v1335, %v1339
    %v1342 = vld [vmem:[%s5] sm:$0xff]
    %v1343 = vld [vmem:[%s5 + $0x8] sm:$0xff]
    %v1344 = vld [vmem:[%s5 + $0x10] sm:$0xff]
    %v1345 = vld [vmem:[%s5 + $0x18] sm:$0xff]
    %v1346 = vld [vmem:[%s6] sm:$0x1]
    %v1348 = vlaneseq
    %v1349 = vshrl.u32 %v1348, 7
    %v1350 = vsub.s32 0, %v1349
    %v1351 = vrot.slane %v1346, %v1350
    %v1354 = vsel %vm69, %v1340, 0
    %v1357 = vsel %vm69, %v1341, 0
    %1359 = vmatprep.subr.mxu0 0.0
    %1360 = vmatpush1.msra.mxu0 %v1342
    %1361 = vmatprep.subr.mxu0 0.0
    %1362 = vmatpush1.msra.mxu0 %v1343
    %1363 = vmatprep.subr.mxu0 0.0
    %1364 = vmatpush1.msra.mxu0 %v1344
    %1365 = vmatprep.subr.mxu0 0.0
    %1366 = vmatpush1.msra.mxu0 %v1345
    %1367 = vmatprep.subr.mxu0 0.0
    %1368 = vmatpush1.msra.mxu0 0.0
    %1369 = vmatprep.subr.mxu0 0.0
    %1370 = vmatpush1.msra.mxu0 0.0
    %1371 = vmatprep.subr.mxu0 0.0
    %1372 = vmatpush1.msra.mxu0 0.0
    %1373 = vmatprep.subr.mxu0 0.0
    %1374 = vmatpush1.msra.mxu0 0.0
    %1375 = vmatprep.subr.mxu0 0.0
    %1376 = vmatpush1.msra.mxu0 0.0
    %1377 = vmatprep.subr.mxu0 0.0
    %1378 = vmatpush1.msra.mxu0 0.0
    %1379 = vmatprep.subr.mxu0 0.0
    %1380 = vmatpush1.msra.mxu0 0.0
    %1381 = vmatprep.subr.mxu0 0.0
    %1382 = vmatpush1.msra.mxu0 0.0
    %1383 = vmatprep.subr.mxu0 0.0
    %1384 = vmatpush1.msra.mxu0 0.0
    %1385 = vmatprep.subr.mxu0 0.0
    %1386 = vmatpush1.msra.mxu0 0.0
    %1387 = vmatprep.subr.mxu0 0.0
    %1388 = vmatpush1.msra.mxu0 0.0
    %1389 = vmatprep.subr.mxu0 0.0
    %1390 = vmatpush1.msra.mxu0 0.0
    %1391 = vmatprep.subr.mxu0 0.0
    %1392 = vmatpush1.msra.mxu0 0.0
    %1393 = vmatprep.subr.mxu0 0.0
    %1394 = vmatpush1.msra.mxu0 0.0
    %1395 = vmatprep.subr.mxu0 0.0
    %1396 = vmatpush1.msra.mxu0 0.0
    %1397 = vmatprep.subr.mxu0 0.0
    %1398 = vmatpush1.msra.mxu0 0.0
    %1399 = vmatprep.subr.mxu0 0.0
    %1400 = vmatpush1.msra.mxu0 0.0
    %1401 = vmatprep.subr.mxu0 0.0
    %1402 = vmatpush1.msra.mxu0 0.0
    %1403 = vmatprep.subr.mxu0 0.0
    %1404 = vmatpush1.msra.mxu0 0.0
    %1405 = vmatprep.subr.mxu0 0.0
    %1406 = vmatpush1.msra.mxu0 0.0
    %1407 = vmatprep.subr.mxu0 0.0
    %1408 = vmatpush1.msra.mxu0 0.0
    %1409 = vmatprep.subr.mxu0 0.0
    %1410 = vmatpush1.msra.mxu0 0.0
    %1411 = vmatprep.subr.mxu0 0.0
    %1412 = vmatpush1.msra.mxu0 0.0
    %1413 = vmatprep.subr.mxu0 0.0
    %1414 = vmatpush1.msra.mxu0 0.0
    %1415 = vmatprep.subr.mxu0 0.0
    %1416 = vmatpush1.msra.mxu0 0.0
    %1417 = vmatprep.subr.mxu0 0.0
    %1418 = vmatpush1.msra.mxu0 0.0
    %1419 = vmatprep.subr.mxu0 0.0
    %1420 = vmatpush1.msra.mxu0 0.0
    %1421 = vmatprep.subr.mxu0 0.0
    %1422 = vmatpush1.msra.mxu0 0.0
    %1423 = vmatprep.mubr.f32.mxu0 0.0
    %1424 = vmatmul.mubr.f32.gmra.mrb[0].mxu0 %v1354
    %v1425 = vpop.f32.mrb[0].mxu0
    %v1426 = vadd.f32 %v1351, %v1425
    %v1427 = vpop.f32.mrb[0].mxu0
    %1428 = vmatprep.mubr.f32.mxu0 0.0
    %1429 = vmatmul.mubr.f32.gmra.mrb[0].mxu0 %v1357
    %v1430 = vpop.f32.mrb[0].mxu0
    %v1431 = vadd.f32 %v1351, %v1430
    %v1432 = vpop.f32.mrb[0].mxu0
    %1433 = vdwg.mxu0
    %v1434 = vmax.f32 %v1426, 0.0
    %v1435 = vmax.f32 %v1431, 0.0
    %v1436 = vld [vmem:[%s7] sm:$0xff]
    %v1437 = vld [vmem:[%s7 + $0x8] sm:$0xff]
    %v1438 = vld [vmem:[%s7 + $0x10] sm:$0xff]
    %v1439 = vld [vmem:[%s7 + $0x18] sm:$0xff]
    %v1440 = vld [vmem:[%s7 + $0x20] sm:$0xff]
    %v1441 = vld [vmem:[%s7 + $0x28] sm:$0xff]
    %v1442 = vld [vmem:[%s7 + $0x30] sm:$0xff]
    %v1443 = vld [vmem:[%s7 + $0x38] sm:$0xff]
    %v1444 = vlaneseq
    %v1445 = vshrl.u32 %v1444, 7
    %v1446 = vsub.s32 3, %v1445
    %v1447 = vrot.slane %v62, %v1446
    %vm1448 = vcmask 523264
    %v1450 = vsel %vm1448, %v1434, 0
    %v1453 = vsel %vm1448, %v1435, 0
    %1455 = vmatprep.subr.mxu0 0.0
    %1456 = vmatpush1.msra.mxu0 %v1436
    %1457 = vmatprep.subr.mxu0 0.0
    %1458 = vmatpush1.msra.mxu0 %v1437
    %1459 = vmatprep.subr.mxu0 0.0
    %1460 = vmatpush1.msra.mxu0 %v1438
    %1461 = vmatprep.subr.mxu0 0.0
    %1462 = vmatpush1.msra.mxu0 %v1439
    %1463 = vmatprep.subr.mxu0 0.0
    %1464 = vmatpush1.msra.mxu0 %v1440
    %1465 = vmatprep.subr.mxu0 0.0
    %1466 = vmatpush1.msra.mxu0 %v1441
    %1467 = vmatprep.subr.mxu0 0.0
    %1468 = vmatpush1.msra.mxu0 %v1442
    %1469 = vmatprep.subr.mxu0 0.0
    %1470 = vmatpush1.msra.mxu0 %v1443
    %1471 = vmatprep.subr.mxu0 0.0
    %1472 = vmatpush1.msra.mxu0 0.0
    %1473 = vmatprep.subr.mxu0 0.0
    %1474 = vmatpush1.msra.mxu0 0.0
    %1475 = vmatprep.subr.mxu0 0.0
    %1476 = vmatpush1.msra.mxu0 0.0
    %1477 = vmatprep.subr.mxu0 0.0
    %1478 = vmatpush1.msra.mxu0 0.0
    %1479 = vmatprep.subr.mxu0 0.0
    %1480 = vmatpush1.msra.mxu0 0.0
    %1481 = vmatprep.subr.mxu0 0.0
    %1482 = vmatpush1.msra.mxu0 0.0
    %1483 = vmatprep.subr.mxu0 0.0
    %1484 = vmatpush1.msra.mxu0 0.0
    %1485 = vmatprep.subr.mxu0 0.0
    %1486 = vmatpush1.msra.mxu0 0.0
    %1487 = vmatprep.subr.mxu0 0.0
    %1488 = vmatpush1.msra.mxu0 0.0
    %1489 = vmatprep.subr.mxu0 0.0
    %1490 = vmatpush1.msra.mxu0 0.0
    %1491 = vmatprep.subr.mxu0 0.0
    %1492 = vmatpush1.msra.mxu0 0.0
    %1493 = vmatprep.subr.mxu0 0.0
    %1494 = vmatpush1.msra.mxu0 0.0
    %1495 = vmatprep.subr.mxu0 0.0
    %1496 = vmatpush1.msra.mxu0 0.0
    %1497 = vmatprep.subr.mxu0 0.0
    %1498 = vmatpush1.msra.mxu0 0.0
    %1499 = vmatprep.subr.mxu0 0.0
    %1500 = vmatpush1.msra.mxu0 0.0
    %1501 = vmatprep.subr.mxu0 0.0
    %1502 = vmatpush1.msra.mxu0 0.0
    %1503 = vmatprep.subr.mxu0 0.0
    %1504 = vmatpush1.msra.mxu0 0.0
    %1505 = vmatprep.subr.mxu0 0.0
    %1506 = vmatpush1.msra.mxu0 0.0
    %1507 = vmatprep.subr.mxu0 0.0
    %1508 = vmatpush1.msra.mxu0 0.0
    %1509 = vmatprep.subr.mxu0 0.0
    %1510 = vmatpush1.msra.mxu0 0.0
    %1511 = vmatprep.subr.mxu0 0.0
    %1512 = vmatpush1.msra.mxu0 0.0
    %1513 = vmatprep.subr.mxu0 0.0
    %1514 = vmatpush1.msra.mxu0 0.0
    %1515 = vmatprep.subr.mxu0 0.0
    %1516 = vmatpush1.msra.mxu0 0.0
    %1517 = vmatprep.subr.mxu0 0.0
    %1518 = vmatpush1.msra.mxu0 0.0
    %1519 = vmatprep.mubr.f32.mxu0 0.0
    %1520 = vmatmul.mubr.f32.gmra.mrb[0].mxu0 %v1450
    %v1521 = vpop.f32.mrb[0].mxu0
    %v1522 = vadd.f32 %v1447, %v1521
    %v1523 = vpop.f32.mrb[0].mxu0
    %1524 = vmatprep.mubr.f32.mxu0 0.0
    %1525 = vmatmul.mubr.f32.gmra.mrb[0].mxu0 %v1453
    %v1526 = vpop.f32.mrb[0].mxu0
    %v1527 = vadd.f32 %v1447, %v1526
    %v1528 = vpop.f32.mrb[0].mxu0
    %1529 = vdwg.mxu0
    %v1530 = vadd.f32 %v1340, %v1522
    %v1531 = vadd.f32 %v1341, %v1527
    %v1532 = vsel %vm69, %v1530, 0.0
    %1533 = vadd.xlane.f32.xlu0 %v1532
    %v1534 = vpop.xlane.xlu0 %1533
    %v1535 = vsel %vm69, %v1531, 0.0
    %1536 = vadd.xlane.f32.xlu0 %v1535
    %v1537 = vpop.xlane.xlu0 %1536
    %v1538 = vmul.f32 %v1534, %v1309
    %v1539 = vmul.f32 %v1537, %v1309
    %v1540 = vsub.f32 %v1530, %v1538
    %v1541 = vsub.f32 %v1531, %v1539
    %v1542 = vmul.f32 %v1540, %v1540
    %v1543 = vmul.f32 %v1541, %v1541
    %v1544 = vsel %vm69, %v1542, 0.0
    %1545 = vadd.xlane.f32.xlu0 %v1544
    %v1546 = vpop.xlane.xlu0 %1545
    %v1547 = vsel %vm69, %v1543, 0.0
    %1548 = vadd.xlane.f32.xlu0 %v1547
    %v1549 = vpop.xlane.xlu0 %1548
    %v1550 = vmul.f32 %v1546, %v1309
    %v1551 = vmul.f32 %v1549, %v1309
    %v1552 = vadd.f32 %v1550, 1e-05
    %v1553 = vadd.f32 %v1551, 1e-05
    %v1554 = vrsqrt.pop %v1552
    %v1555 = vrsqrt.pop %v1553
    %v1556 = vmul.f32 %v1540, %v1554
    %v1557 = vmul.f32 %v1541, %v1555
    %v1558 = vlaneseq
    %v1559 = vshrl.u32 %v1558, 7
    %v1560 = vsub.s32 4, %v1559
    %v1561 = vrot.slane %v62, %v1560
    %v1562 = vmul.f32 %v1556, %v1561
    %v1563 = vmul.f32 %v1557, %v1561
    %v1564 = vlaneseq
    %v1565 = vshrl.u32 %v1564, 7
    %v1566 = vsub.s32 5, %v1565
    %v1567 = vrot.slane %v62, %v1566
    %v1568 = vadd.f32 %v1562, %v1567
    %v1569 = vadd.f32 %v1563, %v1567
    %s1570 = scalar_lea.vmem %s2, 32
    %v1571 = vld [vmem:[%s1570] sm:$0xff]
    %v1572 = vld [vmem:[%s1570 + $0x8] sm:$0xff]
    %v1573 = vld [vmem:[%s1570 + $0x10] sm:$0xff]
    %v1574 = vld [vmem:[%s1570 + $0x18] sm:$0xff]
    %s1575 = scalar_lea.vmem %s3, 1
    %v1576 = vld [vmem:[%s1575] sm:$0x1]
    %s1577 = scalar_lea.vmem %s4, 32
    %v1578 = vld [vmem:[%s1577] sm:$0xff]
    %v1579 = vld [vmem:[%s1577 + $0x8] sm:$0xff]
    %v1580 = vld [vmem:[%s1577 + $0x10] sm:$0xff]
    %v1581 = vld [vmem:[%s1577 + $0x18] sm:$0xff]
    %s1582 = scalar_lea.vmem %s8, 8
    %v1583 = vld [vmem:[%s1582] sm:$0x3f]
    %v1585 = vlaneseq
    %v1586 = vshrl.u32 %v1585, 7
    %v1587 = vsub.s32 0, %v1586
    %v1588 = vrot.slane %v1576, %v1587
    %v1591 = vsel %vm69, %v1568, 0
    %v1594 = vsel %vm69, %v1569, 0
    %1596 = vmatprep.subr.mxu0 0.0
    %1597 = vmatpush1.msra.mxu0 %v1571
    %1598 = vmatprep.subr.mxu0 0.0
    %1599 = vmatpush1.msra.mxu0 %v1572
    %1600 = vmatprep.subr.mxu0 0.0
    %1601 = vmatpush1.msra.mxu0 %v1573
    %1602 = vmatprep.subr.mxu0 0.0
    %1603 = vmatpush1.msra.mxu0 %v1574
    %1604 = vmatprep.subr.mxu0 0.0
    %1605 = vmatpush1.msra.mxu0 0.0
    %1606 = vmatprep.subr.mxu0 0.0
    %1607 = vmatpush1.msra.mxu0 0.0
    %1608 = vmatprep.subr.mxu0 0.0
    %1609 = vmatpush1.msra.mxu0 0.0
    %1610 = vmatprep.subr.mxu0 0.0
    %1611 = vmatpush1.msra.mxu0 0.0
    %1612 = vmatprep.subr.mxu0 0.0
    %1613 = vmatpush1.msra.mxu0 0.0
    %1614 = vmatprep.subr.mxu0 0.0
    %1615 = vmatpush1.msra.mxu0 0.0
    %1616 = vmatprep.subr.mxu0 0.0
    %1617 = vmatpush1.msra.mxu0 0.0
    %1618 = vmatprep.subr.mxu0 0.0
    %1619 = vmatpush1.msra.mxu0 0.0
    %1620 = vmatprep.subr.mxu0 0.0
    %1621 = vmatpush1.msra.mxu0 0.0
    %1622 = vmatprep.subr.mxu0 0.0
    %1623 = vmatpush1.msra.mxu0 0.0
    %1624 = vmatprep.subr.mxu0 0.0
    %1625 = vmatpush1.msra.mxu0 0.0
    %1626 = vmatprep.subr.mxu0 0.0
    %1627 = vmatpush1.msra.mxu0 0.0
    %1628 = vmatprep.subr.mxu0 0.0
    %1629 = vmatpush1.msra.mxu0 0.0
    %1630 = vmatprep.subr.mxu0 0.0
    %1631 = vmatpush1.msra.mxu0 0.0
    %1632 = vmatprep.subr.mxu0 0.0
    %1633 = vmatpush1.msra.mxu0 0.0
    %1634 = vmatprep.subr.mxu0 0.0
    %1635 = vmatpush1.msra.mxu0 0.0
    %1636 = vmatprep.subr.mxu0 0.0
    %1637 = vmatpush1.msra.mxu0 0.0
    %1638 = vmatprep.subr.mxu0 0.0
    %1639 = vmatpush1.msra.mxu0 0.0
    %1640 = vmatprep.subr.mxu0 0.0
    %1641 = vmatpush1.msra.mxu0 0.0
    %1642 = vmatprep.subr.mxu0 0.0
    %1643 = vmatpush1.msra.mxu0 0.0
    %1644 = vmatprep.subr.mxu0 0.0
    %1645 = vmatpush1.msra.mxu0 0.0
    %1646 = vmatprep.subr.mxu0 0.0
    %1647 = vmatpush1.msra.mxu0 0.0
    %1648 = vmatprep.subr.mxu0 0.0
    %1649 = vmatpush1.msra.mxu0 0.0
    %1650 = vmatprep.subr.mxu0 0.0
    %1651 = vmatpush1.msra.mxu0 0.0
    %1652 = vmatprep.subr.mxu0 0.0
    %1653 = vmatpush1.msra.mxu0 0.0
    %1654 = vmatprep.subr.mxu0 0.0
    %1655 = vmatpush1.msra.mxu0 0.0
    %1656 = vmatprep.subr.mxu0 0.0
    %1657 = vmatpush1.msra.mxu0 0.0
    %1658 = vmatprep.subr.mxu0 0.0
    %1659 = vmatpush1.msra.mxu0 0.0
    %1660 = vmatprep.mubr.f32.mxu0 0.0
    %1661 = vmatmul.mubr.f32.gmra.mrb[0].mxu0 %v1591
    %v1662 = vpop.f32.mrb[0].mxu0
    %v1663 = vadd.f32 %v1588, %v1662
    %v1664 = vpop.f32.mrb[0].mxu0
    %1665 = vmatprep.mubr.f32.mxu0 0.0
    %1666 = vmatmul.mubr.f32.gmra.mrb[0].mxu0 %v1594
    %v1667 = vpop.f32.mrb[0].mxu0
    %v1668 = vadd.f32 %v1588, %v1667
    %v1669 = vpop.f32.mrb[0].mxu0
    %1670 = vdwg.mxu0
    %1673 = vrot.lane.b32.xlu0 %v1663, 96
    %v1674 = vpop.permute.xlu0 %1673
    %1675 = vrot.lane.b32.xlu0 %v1668, 96
    %v1676 = vpop.permute.xlu0 %1675
    %v1677 = vsel %vm157, %v1663, 0
    %v1679 = vsel %vm157, %v1668, 0
    %v1681 = vsel %vm157, %v1674, 0
    %v1683 = vsel %vm157, %v1676, 0
    %1685 = vmatprep.subr.mxu0 0.0
    %1686 = vmatpush1.xpose.msra.mxu0 %v1681
    %1687 = vmatprep.subr.mxu0 0.0
    %1688 = vmatpush1.xpose.msra.mxu0 %v1683
    %1689 = vmatprep.subr.mxu0 0.0
    %1690 = vmatpush1.xpose.msra.mxu0 0.0
    %1691 = vmatprep.subr.mxu0 0.0
    %1692 = vmatpush1.xpose.msra.mxu0 0.0
    %1693 = vmatprep.subr.mxu0 0.0
    %1694 = vmatpush1.xpose.msra.mxu0 0.0
    %1695 = vmatprep.subr.mxu0 0.0
    %1696 = vmatpush1.xpose.msra.mxu0 0.0
    %1697 = vmatprep.subr.mxu0 0.0
    %1698 = vmatpush1.xpose.msra.mxu0 0.0
    %1699 = vmatprep.subr.mxu0 0.0
    %1700 = vmatpush1.xpose.msra.mxu0 0.0
    %1701 = vmatprep.subr.mxu0 0.0
    %1702 = vmatpush1.xpose.msra.mxu0 0.0
    %1703 = vmatprep.subr.mxu0 0.0
    %1704 = vmatpush1.xpose.msra.mxu0 0.0
    %1705 = vmatprep.subr.mxu0 0.0
    %1706 = vmatpush1.xpose.msra.mxu0 0.0
    %1707 = vmatprep.subr.mxu0 0.0
    %1708 = vmatpush1.xpose.msra.mxu0 0.0
    %1709 = vmatprep.subr.mxu0 0.0
    %1710 = vmatpush1.xpose.msra.mxu0 0.0
    %1711 = vmatprep.subr.mxu0 0.0
    %1712 = vmatpush1.xpose.msra.mxu0 0.0
    %1713 = vmatprep.subr.mxu0 0.0
    %1714 = vmatpush1.xpose.msra.mxu0 0.0
    %1715 = vmatprep.subr.mxu0 0.0
    %1716 = vmatpush1.xpose.msra.mxu0 0.0
    %1717 = vmatprep.subr.mxu0 0.0
    %1718 = vmatpush1.xpose.msra.mxu0 0.0
    %1719 = vmatprep.subr.mxu0 0.0
    %1720 = vmatpush1.xpose.msra.mxu0 0.0
    %1721 = vmatprep.subr.mxu0 0.0
    %1722 = vmatpush1.xpose.msra.mxu0 0.0
    %1723 = vmatprep.subr.mxu0 0.0
    %1724 = vmatpush1.xpose.msra.mxu0 0.0
    %1725 = vmatprep.subr.mxu0 0.0
    %1726 = vmatpush1.xpose.msra.mxu0 0.0
    %1727 = vmatprep.subr.mxu0 0.0
    %1728 = vmatpush1.xpose.msra.mxu0 0.0
    %1729 = vmatprep.subr.mxu0 0.0
    %1730 = vmatpush1.xpose.msra.mxu0 0.0
    %1731 = vmatprep.subr.mxu0 0.0
    %1732 = vmatpush1.xpose.msra.mxu0 0.0
    %1733 = vmatprep.subr.mxu0 0.0
    %1734 = vmatpush1.xpose.msra.mxu0 0.0
    %1735 = vmatprep.subr.mxu0 0.0
    %1736 = vmatpush1.xpose.msra.mxu0 0.0
    %1737 = vmatprep.subr.mxu0 0.0
    %1738 = vmatpush1.xpose.msra.mxu0 0.0
    %1739 = vmatprep.subr.mxu0 0.0
    %1740 = vmatpush1.xpose.msra.mxu0 0.0
    %1741 = vmatprep.subr.mxu0 0.0
    %1742 = vmatpush1.xpose.msra.mxu0 0.0
    %1743 = vmatprep.subr.mxu0 0.0
    %1744 = vmatpush1.xpose.msra.mxu0 0.0
    %1745 = vmatprep.subr.mxu0 0.0
    %1746 = vmatpush1.xpose.msra.mxu0 0.0
    %1747 = vmatprep.subr.mxu0 0.0
    %1748 = vmatpush1.xpose.msra.mxu0 0.0
    %1749 = vmatprep.mubr.f32.mxu0 0.0
    %1750 = vmatmul.mubr.f32.gmra.mrb[0].mxu0 %v1677
    %v1751 = vpop.f32.mrb[0].mxu0
    %v1752 = vadd.f32 0.0, %v1751
    %v1753 = vpop.f32.mrb[0].mxu0
    %1754 = vmatprep.mubr.f32.mxu0 0.0
    %1755 = vmatmul.mubr.f32.gmra.mrb[0].mxu0 %v1679
    %v1756 = vpop.f32.mrb[0].mxu0
    %v1757 = vadd.f32 0.0, %v1756
    %v1758 = vpop.f32.mrb[0].mxu0
    %1759 = vdwg.mxu0
    %v1760 = vmul.f32 %v1752, 0.35355338
    %v1761 = vmul.f32 %v1757, 0.35355338
    %v1762 = vsel %vm51, %v1760, %v49
    %v1763 = vsel %vm52, %v1761, %v50
    %v1764 = vsel %vm245, %v1762, -inf
    %1765 = vmax.xlane.f32.xlu0 %v1764
    %v1766 = vpop.xlane.xlu0 %1765
    %v1767 = vsel %vm245, %v1763, -inf
    %1768 = vmax.xlane.f32.xlu0 %v1767
    %v1769 = vpop.xlane.xlu0 %1768
    %v1770 = vsub.f32 %v1762, %v1766
    %v1771 = vsub.f32 %v1763, %v1769
    %v1772 = vmul.f32 %v1770, 1.442695
    %v1773 = vpow.pop %v1772
    %v1774 = vmul.f32 %v1771, 1.442695
    %v1775 = vpow.pop %v1774
    %v1776 = vsel %vm245, %v1773, 0.0
    %1777 = vadd.xlane.f32.xlu0 %v1776
    %v1778 = vpop.xlane.xlu0 %1777
    %v1779 = vsel %vm245, %v1775, 0.0
    %1780 = vadd.xlane.f32.xlu0 %v1779
    %v1781 = vpop.xlane.xlu0 %1780
    %v1782 = vrcp.pop %v1778
    %v1783 = vmul.f32 %v1773, %v1782
    %v1784 = vrcp.pop %v1781
    %v1785 = vmul.f32 %v1775, %v1784
    %1786 = vrot.lane.b32.xlu0 %v1663, 64
    %v1787 = vpop.permute.xlu0 %1786
    %1788 = vrot.lane.b32.xlu0 %v1668, 64
    %v1789 = vpop.permute.xlu0 %1788
    %v1793 = vsel %vm245, %v1783, 0
    %v1796 = vsel %vm245, %v1785, 0
    %1798 = vmatprep.subr.mxu0 0.0
    %1799 = vmatpush1.msra.mxu0 %v1787
    %1800 = vmatprep.subr.mxu0 0.0
    %1801 = vmatpush1.msra.mxu0 %v1789
    %1802 = vmatprep.subr.mxu0 0.0
    %1803 = vmatpush1.msra.mxu0 0.0
    %1804 = vmatprep.subr.mxu0 0.0
    %1805 = vmatpush1.msra.mxu0 0.0
    %1806 = vmatprep.subr.mxu0 0.0
    %1807 = vmatpush1.msra.mxu0 0.0
    %1808 = vmatprep.subr.mxu0 0.0
    %1809 = vmatpush1.msra.mxu0 0.0
    %1810 = vmatprep.subr.mxu0 0.0
    %1811 = vmatpush1.msra.mxu0 0.0
    %1812 = vmatprep.subr.mxu0 0.0
    %1813 = vmatpush1.msra.mxu0 0.0
    %1814 = vmatprep.subr.mxu0 0.0
    %1815 = vmatpush1.msra.mxu0 0.0
    %1816 = vmatprep.subr.mxu0 0.0
    %1817 = vmatpush1.msra.mxu0 0.0
    %1818 = vmatprep.subr.mxu0 0.0
    %1819 = vmatpush1.msra.mxu0 0.0
    %1820 = vmatprep.subr.mxu0 0.0
    %1821 = vmatpush1.msra.mxu0 0.0
    %1822 = vmatprep.subr.mxu0 0.0
    %1823 = vmatpush1.msra.mxu0 0.0
    %1824 = vmatprep.subr.mxu0 0.0
    %1825 = vmatpush1.msra.mxu0 0.0
    %1826 = vmatprep.subr.mxu0 0.0
    %1827 = vmatpush1.msra.mxu0 0.0
    %1828 = vmatprep.subr.mxu0 0.0
    %1829 = vmatpush1.msra.mxu0 0.0
    %1830 = vmatprep.subr.mxu0 0.0
    %1831 = vmatpush1.msra.mxu0 0.0
    %1832 = vmatprep.subr.mxu0 0.0
    %1833 = vmatpush1.msra.mxu0 0.0
    %1834 = vmatprep.subr.mxu0 0.0
    %1835 = vmatpush1.msra.mxu0 0.0
    %1836 = vmatprep.subr.mxu0 0.0
    %1837 = vmatpush1.msra.mxu0 0.0
    %1838 = vmatprep.subr.mxu0 0.0
    %1839 = vmatpush1.msra.mxu0 0.0
    %1840 = vmatprep.subr.mxu0 0.0
    %1841 = vmatpush1.msra.mxu0 0.0
    %1842 = vmatprep.subr.mxu0 0.0
    %1843 = vmatpush1.msra.mxu0 0.0
    %1844 = vmatprep.subr.mxu0 0.0
    %1845 = vmatpush1.msra.mxu0 0.0
    %1846 = vmatprep.subr.mxu0 0.0
    %1847 = vmatpush1.msra.mxu0 0.0
    %1848 = vmatprep.subr.mxu0 0.0
    %1849 = vmatpush1.msra.mxu0 0.0
    %1850 = vmatprep.subr.mxu0 0.0
    %1851 = vmatpush1.msra.mxu0 0.0
    %1852 = vmatprep.subr.mxu0 0.0
    %1853 = vmatpush1.msra.mxu0 0.0
    %1854 = vmatprep.subr.mxu0 0.0
    %1855 = vmatpush1.msra.mxu0 0.0
    %1856 = vmatprep.subr.mxu0 0.0
    %1857 = vmatpush1.msra.mxu0 0.0
    %1858 = vmatprep.subr.mxu0 0.0
    %1859 = vmatpush1.msra.mxu0 0.0
    %1860 = vmatprep.subr.mxu0 0.0
    %1861 = vmatpush1.msra.mxu0 0.0
    %1862 = vmatprep.mubr.f32.mxu0 0.0
    %1863 = vmatmul.mubr.f32.gmra.mrb[0].mxu0 %v1793
    %v1864 = vpop.f32.mrb[0].mxu0
    %v1865 = vadd.f32 0.0, %v1864
    %v1866 = vpop.f32.mrb[0].mxu0
    %1867 = vmatprep.mubr.f32.mxu0 0.0
    %1868 = vmatmul.mubr.f32.gmra.mrb[0].mxu0 %v1796
    %v1869 = vpop.f32.mrb[0].mxu0
    %v1870 = vadd.f32 0.0, %v1869
    %v1871 = vpop.f32.mrb[0].mxu0
    %1872 = vdwg.mxu0
    %1873 = vrot.lane.b32.xlu0 %v1663, 120
    %v1874 = vpop.permute.xlu0 %1873
    %1875 = vrot.lane.b32.xlu0 %v1668, 120
    %v1876 = vpop.permute.xlu0 %1875
    %1877 = vrot.lane.b32.xlu0 %v1663, 88
    %v1878 = vpop.permute.xlu0 %1877
    %1879 = vrot.lane.b32.xlu0 %v1668, 88
    %v1880 = vpop.permute.xlu0 %1879
    %v1881 = vsel %vm157, %v1874, 0
    %v1883 = vsel %vm157, %v1876, 0
    %v1885 = vsel %vm157, %v1878, 0
    %v1887 = vsel %vm157, %v1880, 0
    %1889 = vmatprep.subr.mxu0 0.0
    %1890 = vmatpush1.xpose.msra.mxu0 %v1885
    %1891 = vmatprep.subr.mxu0 0.0
    %1892 = vmatpush1.xpose.msra.mxu0 %v1887
    %1893 = vmatprep.subr.mxu0 0.0
    %1894 = vmatpush1.xpose.msra.mxu0 0.0
    %1895 = vmatprep.subr.mxu0 0.0
    %1896 = vmatpush1.xpose.msra.mxu0 0.0
    %1897 = vmatprep.subr.mxu0 0.0
    %1898 = vmatpush1.xpose.msra.mxu0 0.0
    %1899 = vmatprep.subr.mxu0 0.0
    %1900 = vmatpush1.xpose.msra.mxu0 0.0
    %1901 = vmatprep.subr.mxu0 0.0
    %1902 = vmatpush1.xpose.msra.mxu0 0.0
    %1903 = vmatprep.subr.mxu0 0.0
    %1904 = vmatpush1.xpose.msra.mxu0 0.0
    %1905 = vmatprep.subr.mxu0 0.0
    %1906 = vmatpush1.xpose.msra.mxu0 0.0
    %1907 = vmatprep.subr.mxu0 0.0
    %1908 = vmatpush1.xpose.msra.mxu0 0.0
    %1909 = vmatprep.subr.mxu0 0.0
    %1910 = vmatpush1.xpose.msra.mxu0 0.0
    %1911 = vmatprep.subr.mxu0 0.0
    %1912 = vmatpush1.xpose.msra.mxu0 0.0
    %1913 = vmatprep.subr.mxu0 0.0
    %1914 = vmatpush1.xpose.msra.mxu0 0.0
    %1915 = vmatprep.subr.mxu0 0.0
    %1916 = vmatpush1.xpose.msra.mxu0 0.0
    %1917 = vmatprep.subr.mxu0 0.0
    %1918 = vmatpush1.xpose.msra.mxu0 0.0
    %1919 = vmatprep.subr.mxu0 0.0
    %1920 = vmatpush1.xpose.msra.mxu0 0.0
    %1921 = vmatprep.subr.mxu0 0.0
    %1922 = vmatpush1.xpose.msra.mxu0 0.0
    %1923 = vmatprep.subr.mxu0 0.0
    %1924 = vmatpush1.xpose.msra.mxu0 0.0
    %1925 = vmatprep.subr.mxu0 0.0
    %1926 = vmatpush1.xpose.msra.mxu0 0.0
    %1927 = vmatprep.subr.mxu0 0.0
    %1928 = vmatpush1.xpose.msra.mxu0 0.0
    %1929 = vmatprep.subr.mxu0 0.0
    %1930 = vmatpush1.xpose.msra.mxu0 0.0
    %1931 = vmatprep.subr.mxu0 0.0
    %1932 = vmatpush1.xpose.msra.mxu0 0.0
    %1933 = vmatprep.subr.mxu0 0.0
    %1934 = vmatpush1.xpose.msra.mxu0 0.0
    %1935 = vmatprep.subr.mxu0 0.0
    %1936 = vmatpush1.xpose.msra.mxu0 0.0
    %1937 = vmatprep.subr.mxu0 0.0
    %1938 = vmatpush1.xpose.msra.mxu0 0.0
    %1939 = vmatprep.subr.mxu0 0.0
    %1940 = vmatpush1.xpose.msra.mxu0 0.0
    %1941 = vmatprep.subr.mxu0 0.0
    %1942 = vmatpush1.xpose.msra.mxu0 0.0
    %1943 = vmatprep.subr.mxu0 0.0
    %1944 = vmatpush1.xpose.msra.mxu0 0.0
    %1945 = vmatprep.subr.mxu0 0.0
    %1946 = vmatpush1.xpose.msra.mxu0 0.0
    %1947 = vmatprep.subr.mxu0 0.0
    %1948 = vmatpush1.xpose.msra.mxu0 0.0
    %1949 = vmatprep.subr.mxu0 0.0
    %1950 = vmatpush1.xpose.msra.mxu0 0.0
    %1951 = vmatprep.subr.mxu0 0.0
    %1952 = vmatpush1.xpose.msra.mxu0 0.0
    %1953 = vmatprep.mubr.f32.mxu0 0.0
    %1954 = vmatmul.mubr.f32.gmra.mrb[0].mxu0 %v1881
    %v1955 = vpop.f32.mrb[0].mxu0
    %v1956 = vadd.f32 0.0, %v1955
    %v1957 = vpop.f32.mrb[0].mxu0
    %1958 = vmatprep.mubr.f32.mxu0 0.0
    %1959 = vmatmul.mubr.f32.gmra.mrb[0].mxu0 %v1883
    %v1960 = vpop.f32.mrb[0].mxu0
    %v1961 = vadd.f32 0.0, %v1960
    %v1962 = vpop.f32.mrb[0].mxu0
    %1963 = vdwg.mxu0
    %v1964 = vmul.f32 %v1956, 0.35355338
    %v1965 = vmul.f32 %v1961, 0.35355338
    %v1966 = vsel %vm51, %v1964, %v49
    %v1967 = vsel %vm52, %v1965, %v50
    %v1968 = vsel %vm245, %v1966, -inf
    %1969 = vmax.xlane.f32.xlu0 %v1968
    %v1970 = vpop.xlane.xlu0 %1969
    %v1971 = vsel %vm245, %v1967, -inf
    %1972 = vmax.xlane.f32.xlu0 %v1971
    %v1973 = vpop.xlane.xlu0 %1972
    %v1974 = vsub.f32 %v1966, %v1970
    %v1975 = vsub.f32 %v1967, %v1973
    %v1976 = vmul.f32 %v1974, 1.442695
    %v1977 = vpow.pop %v1976
    %v1978 = vmul.f32 %v1975, 1.442695
    %v1979 = vpow.pop %v1978
    %v1980 = vsel %vm245, %v1977, 0.0
    %1981 = vadd.xlane.f32.xlu0 %v1980
    %v1982 = vpop.xlane.xlu0 %1981
    %v1983 = vsel %vm245, %v1979, 0.0
    %1984 = vadd.xlane.f32.xlu0 %v1983
    %v1985 = vpop.xlane.xlu0 %1984
    %v1986 = vrcp.pop %v1982
    %v1987 = vmul.f32 %v1977, %v1986
    %v1988 = vrcp.pop %v1985
    %v1989 = vmul.f32 %v1979, %v1988
    %1990 = vrot.lane.b32.xlu0 %v1663, 56
    %v1991 = vpop.permute.xlu0 %1990
    %1992 = vrot.lane.b32.xlu0 %v1668, 56
    %v1993 = vpop.permute.xlu0 %1992
    %v1997 = vsel %vm245, %v1987, 0
    %v2000 = vsel %vm245, %v1989, 0
    %2002 = vmatprep.subr.mxu0 0.0
    %2003 = vmatpush1.msra.mxu0 %v1991
    %2004 = vmatprep.subr.mxu0 0.0
    %2005 = vmatpush1.msra.mxu0 %v1993
    %2006 = vmatprep.subr.mxu0 0.0
    %2007 = vmatpush1.msra.mxu0 0.0
    %2008 = vmatprep.subr.mxu0 0.0
    %2009 = vmatpush1.msra.mxu0 0.0
    %2010 = vmatprep.subr.mxu0 0.0
    %2011 = vmatpush1.msra.mxu0 0.0
    %2012 = vmatprep.subr.mxu0 0.0
    %2013 = vmatpush1.msra.mxu0 0.0
    %2014 = vmatprep.subr.mxu0 0.0
    %2015 = vmatpush1.msra.mxu0 0.0
    %2016 = vmatprep.subr.mxu0 0.0
    %2017 = vmatpush1.msra.mxu0 0.0
    %2018 = vmatprep.subr.mxu0 0.0
    %2019 = vmatpush1.msra.mxu0 0.0
    %2020 = vmatprep.subr.mxu0 0.0
    %2021 = vmatpush1.msra.mxu0 0.0
    %2022 = vmatprep.subr.mxu0 0.0
    %2023 = vmatpush1.msra.mxu0 0.0
    %2024 = vmatprep.subr.mxu0 0.0
    %2025 = vmatpush1.msra.mxu0 0.0
    %2026 = vmatprep.subr.mxu0 0.0
    %2027 = vmatpush1.msra.mxu0 0.0
    %2028 = vmatprep.subr.mxu0 0.0
    %2029 = vmatpush1.msra.mxu0 0.0
    %2030 = vmatprep.subr.mxu0 0.0
    %2031 = vmatpush1.msra.mxu0 0.0
    %2032 = vmatprep.subr.mxu0 0.0
    %2033 = vmatpush1.msra.mxu0 0.0
    %2034 = vmatprep.subr.mxu0 0.0
    %2035 = vmatpush1.msra.mxu0 0.0
    %2036 = vmatprep.subr.mxu0 0.0
    %2037 = vmatpush1.msra.mxu0 0.0
    %2038 = vmatprep.subr.mxu0 0.0
    %2039 = vmatpush1.msra.mxu0 0.0
    %2040 = vmatprep.subr.mxu0 0.0
    %2041 = vmatpush1.msra.mxu0 0.0
    %2042 = vmatprep.subr.mxu0 0.0
    %2043 = vmatpush1.msra.mxu0 0.0
    %2044 = vmatprep.subr.mxu0 0.0
    %2045 = vmatpush1.msra.mxu0 0.0
    %2046 = vmatprep.subr.mxu0 0.0
    %2047 = vmatpush1.msra.mxu0 0.0
    %2048 = vmatprep.subr.mxu0 0.0
    %2049 = vmatpush1.msra.mxu0 0.0
    %2050 = vmatprep.subr.mxu0 0.0
    %2051 = vmatpush1.msra.mxu0 0.0
    %2052 = vmatprep.subr.mxu0 0.0
    %2053 = vmatpush1.msra.mxu0 0.0
    %2054 = vmatprep.subr.mxu0 0.0
    %2055 = vmatpush1.msra.mxu0 0.0
    %2056 = vmatprep.subr.mxu0 0.0
    %2057 = vmatpush1.msra.mxu0 0.0
    %2058 = vmatprep.subr.mxu0 0.0
    %2059 = vmatpush1.msra.mxu0 0.0
    %2060 = vmatprep.subr.mxu0 0.0
    %2061 = vmatpush1.msra.mxu0 0.0
    %2062 = vmatprep.subr.mxu0 0.0
    %2063 = vmatpush1.msra.mxu0 0.0
    %2064 = vmatprep.subr.mxu0 0.0
    %2065 = vmatpush1.msra.mxu0 0.0
    %2066 = vmatprep.mubr.f32.mxu0 0.0
    %2067 = vmatmul.mubr.f32.gmra.mrb[0].mxu0 %v1997
    %v2068 = vpop.f32.mrb[0].mxu0
    %v2069 = vadd.f32 0.0, %v2068
    %v2070 = vpop.f32.mrb[0].mxu0
    %2071 = vmatprep.mubr.f32.mxu0 0.0
    %2072 = vmatmul.mubr.f32.gmra.mrb[0].mxu0 %v2000
    %v2073 = vpop.f32.mrb[0].mxu0
    %v2074 = vadd.f32 0.0, %v2073
    %v2075 = vpop.f32.mrb[0].mxu0
    %2076 = vdwg.mxu0
    %v2078 = vsel %vm157, %v2069, 0
    %v2081 = vsel %vm157, %v2074, 0
    %2083 = vmatprep.subr.mxu0 0.0
    %2084 = vmatpush1.msra.mxu0 %v1579
    %2085 = vmatprep.subr.mxu0 0.0
    %2086 = vmatpush1.msra.mxu0 0.0
    %2087 = vmatprep.subr.mxu0 0.0
    %2088 = vmatpush1.msra.mxu0 0.0
    %2089 = vmatprep.subr.mxu0 0.0
    %2090 = vmatpush1.msra.mxu0 0.0
    %2091 = vmatprep.subr.mxu0 0.0
    %2092 = vmatpush1.msra.mxu0 0.0
    %2093 = vmatprep.subr.mxu0 0.0
    %2094 = vmatpush1.msra.mxu0 0.0
    %2095 = vmatprep.subr.mxu0 0.0
    %2096 = vmatpush1.msra.mxu0 0.0
    %2097 = vmatprep.subr.mxu0 0.0
    %2098 = vmatpush1.msra.mxu0 0.0
    %2099 = vmatprep.subr.mxu0 0.0
    %2100 = vmatpush1.msra.mxu0 0.0
    %2101 = vmatprep.subr.mxu0 0.0
    %2102 = vmatpush1.msra.mxu0 0.0
    %2103 = vmatprep.subr.mxu0 0.0
    %2104 = vmatpush1.msra.mxu0 0.0
    %2105 = vmatprep.subr.mxu0 0.0
    %2106 = vmatpush1.msra.mxu0 0.0
    %2107 = vmatprep.subr.mxu0 0.0
    %2108 = vmatpush1.msra.mxu0 0.0
    %2109 = vmatprep.subr.mxu0 0.0
    %2110 = vmatpush1.msra.mxu0 0.0
    %2111 = vmatprep.subr.mxu0 0.0
    %2112 = vmatpush1.msra.mxu0 0.0
    %2113 = vmatprep.subr.mxu0 0.0
    %2114 = vmatpush1.msra.mxu0 0.0
    %2115 = vmatprep.subr.mxu0 0.0
    %2116 = vmatpush1.msra.mxu0 0.0
    %2117 = vmatprep.subr.mxu0 0.0
    %2118 = vmatpush1.msra.mxu0 0.0
    %2119 = vmatprep.subr.mxu0 0.0
    %2120 = vmatpush1.msra.mxu0 0.0
    %2121 = vmatprep.subr.mxu0 0.0
    %2122 = vmatpush1.msra.mxu0 0.0
    %2123 = vmatprep.subr.mxu0 0.0
    %2124 = vmatpush1.msra.mxu0 0.0
    %2125 = vmatprep.subr.mxu0 0.0
    %2126 = vmatpush1.msra.mxu0 0.0
    %2127 = vmatprep.subr.mxu0 0.0
    %2128 = vmatpush1.msra.mxu0 0.0
    %2129 = vmatprep.subr.mxu0 0.0
    %2130 = vmatpush1.msra.mxu0 0.0
    %2131 = vmatprep.subr.mxu0 0.0
    %2132 = vmatpush1.msra.mxu0 0.0
    %2133 = vmatprep.subr.mxu0 0.0
    %2134 = vmatpush1.msra.mxu0 0.0
    %2135 = vmatprep.subr.mxu0 0.0
    %2136 = vmatpush1.msra.mxu0 0.0
    %2137 = vmatprep.subr.mxu0 0.0
    %2138 = vmatpush1.msra.mxu0 0.0
    %2139 = vmatprep.subr.mxu0 0.0
    %2140 = vmatpush1.msra.mxu0 0.0
    %2141 = vmatprep.subr.mxu0 0.0
    %2142 = vmatpush1.msra.mxu0 0.0
    %2143 = vmatprep.subr.mxu0 0.0
    %2144 = vmatpush1.msra.mxu0 0.0
    %2145 = vmatprep.subr.mxu0 0.0
    %2146 = vmatpush1.msra.mxu0 0.0
    %2147 = vmatprep.mubr.f32.mxu0 0.0
    %2148 = vmatmul.mubr.f32.gmra.mrb[0].mxu0 %v2078
    %v2149 = vpop.f32.mrb[0].mxu0
    %v2150 = vadd.f32 0.0, %v2149
    %v2151 = vpop.f32.mrb[0].mxu0
    %2152 = vmatprep.mubr.f32.mxu0 0.0
    %2153 = vmatmul.mubr.f32.gmra.mrb[0].mxu0 %v2081
    %v2154 = vpop.f32.mrb[0].mxu0
    %v2155 = vadd.f32 0.0, %v2154
    %v2156 = vpop.f32.mrb[0].mxu0
    %2157 = vdwg.mxu0
    %v2159 = vsel %vm157, %v1865, 0
    %v2162 = vsel %vm157, %v1870, 0
    %2164 = vmatprep.subr.mxu0 0.0
    %2165 = vmatpush1.msra.mxu0 %v1578
    %2166 = vmatprep.subr.mxu0 0.0
    %2167 = vmatpush1.msra.mxu0 0.0
    %2168 = vmatprep.subr.mxu0 0.0
    %2169 = vmatpush1.msra.mxu0 0.0
    %2170 = vmatprep.subr.mxu0 0.0
    %2171 = vmatpush1.msra.mxu0 0.0
    %2172 = vmatprep.subr.mxu0 0.0
    %2173 = vmatpush1.msra.mxu0 0.0
    %2174 = vmatprep.subr.mxu0 0.0
    %2175 = vmatpush1.msra.mxu0 0.0
    %2176 = vmatprep.subr.mxu0 0.0
    %2177 = vmatpush1.msra.mxu0 0.0
    %2178 = vmatprep.subr.mxu0 0.0
    %2179 = vmatpush1.msra.mxu0 0.0
    %2180 = vmatprep.subr.mxu0 0.0
    %2181 = vmatpush1.msra.mxu0 0.0
    %2182 = vmatprep.subr.mxu0 0.0
    %2183 = vmatpush1.msra.mxu0 0.0
    %2184 = vmatprep.subr.mxu0 0.0
    %2185 = vmatpush1.msra.mxu0 0.0
    %2186 = vmatprep.subr.mxu0 0.0
    %2187 = vmatpush1.msra.mxu0 0.0
    %2188 = vmatprep.subr.mxu0 0.0
    %2189 = vmatpush1.msra.mxu0 0.0
    %2190 = vmatprep.subr.mxu0 0.0
    %2191 = vmatpush1.msra.mxu0 0.0
    %2192 = vmatprep.subr.mxu0 0.0
    %2193 = vmatpush1.msra.mxu0 0.0
    %2194 = vmatprep.subr.mxu0 0.0
    %2195 = vmatpush1.msra.mxu0 0.0
    %2196 = vmatprep.subr.mxu0 0.0
    %2197 = vmatpush1.msra.mxu0 0.0
    %2198 = vmatprep.subr.mxu0 0.0
    %2199 = vmatpush1.msra.mxu0 0.0
    %2200 = vmatprep.subr.mxu0 0.0
    %2201 = vmatpush1.msra.mxu0 0.0
    %2202 = vmatprep.subr.mxu0 0.0
    %2203 = vmatpush1.msra.mxu0 0.0
    %2204 = vmatprep.subr.mxu0 0.0
    %2205 = vmatpush1.msra.mxu0 0.0
    %2206 = vmatprep.subr.mxu0 0.0
    %2207 = vmatpush1.msra.mxu0 0.0
    %2208 = vmatprep.subr.mxu0 0.0
    %2209 = vmatpush1.msra.mxu0 0.0
    %2210 = vmatprep.subr.mxu0 0.0
    %2211 = vmatpush1.msra.mxu0 0.0
    %2212 = vmatprep.subr.mxu0 0.0
    %2213 = vmatpush1.msra.mxu0 0.0
    %2214 = vmatprep.subr.mxu0 0.0
    %2215 = vmatpush1.msra.mxu0 0.0
    %2216 = vmatprep.subr.mxu0 0.0
    %2217 = vmatpush1.msra.mxu0 0.0
    %2218 = vmatprep.subr.mxu0 0.0
    %2219 = vmatpush1.msra.mxu0 0.0
    %2220 = vmatprep.subr.mxu0 0.0
    %2221 = vmatpush1.msra.mxu0 0.0
    %2222 = vmatprep.subr.mxu0 0.0
    %2223 = vmatpush1.msra.mxu0 0.0
    %2224 = vmatprep.subr.mxu0 0.0
    %2225 = vmatpush1.msra.mxu0 0.0
    %2226 = vmatprep.subr.mxu0 0.0
    %2227 = vmatpush1.msra.mxu0 0.0
    %2228 = vmatprep.mubr.f32.mxu0 0.0
    %2229 = vmatmul.mubr.f32.gmra.mrb[0].mxu0 %v2159
    %v2230 = vpop.f32.mrb[0].mxu0
    %v2231 = vadd.f32 %v2150, %v2230
    %v2232 = vpop.f32.mrb[0].mxu0
    %2233 = vmatprep.mubr.f32.mxu0 0.0
    %2234 = vmatmul.mubr.f32.gmra.mrb[0].mxu0 %v2162
    %v2235 = vpop.f32.mrb[0].mxu0
    %v2236 = vadd.f32 %v2155, %v2235
    %v2237 = vpop.f32.mrb[0].mxu0
    %2238 = vdwg.mxu0
    %2239 = vrot.lane.b32.xlu0 %v1663, 112
    %v2240 = vpop.permute.xlu0 %2239
    %2241 = vrot.lane.b32.xlu0 %v1668, 112
    %v2242 = vpop.permute.xlu0 %2241
    %2243 = vrot.lane.b32.xlu0 %v1663, 80
    %v2244 = vpop.permute.xlu0 %2243
    %2245 = vrot.lane.b32.xlu0 %v1668, 80
    %v2246 = vpop.permute.xlu0 %2245
    %v2247 = vsel %vm157, %v2240, 0
    %v2249 = vsel %vm157, %v2242, 0
    %v2251 = vsel %vm157, %v2244, 0
    %v2253 = vsel %vm157, %v2246, 0
    %2255 = vmatprep.subr.mxu0 0.0
    %2256 = vmatpush1.xpose.msra.mxu0 %v2251
    %2257 = vmatprep.subr.mxu0 0.0
    %2258 = vmatpush1.xpose.msra.mxu0 %v2253
    %2259 = vmatprep.subr.mxu0 0.0
    %2260 = vmatpush1.xpose.msra.mxu0 0.0
    %2261 = vmatprep.subr.mxu0 0.0
    %2262 = vmatpush1.xpose.msra.mxu0 0.0
    %2263 = vmatprep.subr.mxu0 0.0
    %2264 = vmatpush1.xpose.msra.mxu0 0.0
    %2265 = vmatprep.subr.mxu0 0.0
    %2266 = vmatpush1.xpose.msra.mxu0 0.0
    %2267 = vmatprep.subr.mxu0 0.0
    %2268 = vmatpush1.xpose.msra.mxu0 0.0
    %2269 = vmatprep.subr.mxu0 0.0
    %2270 = vmatpush1.xpose.msra.mxu0 0.0
    %2271 = vmatprep.subr.mxu0 0.0
    %2272 = vmatpush1.xpose.msra.mxu0 0.0
    %2273 = vmatprep.subr.mxu0 0.0
    %2274 = vmatpush1.xpose.msra.mxu0 0.0
    %2275 = vmatprep.subr.mxu0 0.0
    %2276 = vmatpush1.xpose.msra.mxu0 0.0
    %2277 = vmatprep.subr.mxu0 0.0
    %2278 = vmatpush1.xpose.msra.mxu0 0.0
    %2279 = vmatprep.subr.mxu0 0.0
    %2280 = vmatpush1.xpose.msra.mxu0 0.0
    %2281 = vmatprep.subr.mxu0 0.0
    %2282 = vmatpush1.xpose.msra.mxu0 0.0
    %2283 = vmatprep.subr.mxu0 0.0
    %2284 = vmatpush1.xpose.msra.mxu0 0.0
    %2285 = vmatprep.subr.mxu0 0.0
    %2286 = vmatpush1.xpose.msra.mxu0 0.0
    %2287 = vmatprep.subr.mxu0 0.0
    %2288 = vmatpush1.xpose.msra.mxu0 0.0
    %2289 = vmatprep.subr.mxu0 0.0
    %2290 = vmatpush1.xpose.msra.mxu0 0.0
    %2291 = vmatprep.subr.mxu0 0.0
    %2292 = vmatpush1.xpose.msra.mxu0 0.0
    %2293 = vmatprep.subr.mxu0 0.0
    %2294 = vmatpush1.xpose.msra.mxu0 0.0
    %2295 = vmatprep.subr.mxu0 0.0
    %2296 = vmatpush1.xpose.msra.mxu0 0.0
    %2297 = vmatprep.subr.mxu0 0.0
    %2298 = vmatpush1.xpose.msra.mxu0 0.0
    %2299 = vmatprep.subr.mxu0 0.0
    %2300 = vmatpush1.xpose.msra.mxu0 0.0
    %2301 = vmatprep.subr.mxu0 0.0
    %2302 = vmatpush1.xpose.msra.mxu0 0.0
    %2303 = vmatprep.subr.mxu0 0.0
    %2304 = vmatpush1.xpose.msra.mxu0 0.0
    %2305 = vmatprep.subr.mxu0 0.0
    %2306 = vmatpush1.xpose.msra.mxu0 0.0
    %2307 = vmatprep.subr.mxu0 0.0
    %2308 = vmatpush1.xpose.msra.mxu0 0.0
    %2309 = vmatprep.subr.mxu0 0.0
    %2310 = vmatpush1.xpose.msra.mxu0 0.0
    %2311 = vmatprep.subr.mxu0 0.0
    %2312 = vmatpush1.xpose.msra.mxu0 0.0
    %2313 = vmatprep.subr.mxu0 0.0
    %2314 = vmatpush1.xpose.msra.mxu0 0.0
    %2315 = vmatprep.subr.mxu0 0.0
    %2316 = vmatpush1.xpose.msra.mxu0 0.0
    %2317 = vmatprep.subr.mxu0 0.0
    %2318 = vmatpush1.xpose.msra.mxu0 0.0
    %2319 = vmatprep.mubr.f32.mxu0 0.0
    %2320 = vmatmul.mubr.f32.gmra.mrb[0].mxu0 %v2247
    %v2321 = vpop.f32.mrb[0].mxu0
    %v2322 = vadd.f32 0.0, %v2321
    %v2323 = vpop.f32.mrb[0].mxu0
    %2324 = vmatprep.mubr.f32.mxu0 0.0
    %2325 = vmatmul.mubr.f32.gmra.mrb[0].mxu0 %v2249
    %v2326 = vpop.f32.mrb[0].mxu0
    %v2327 = vadd.f32 0.0, %v2326
    %v2328 = vpop.f32.mrb[0].mxu0
    %2329 = vdwg.mxu0
    %v2330 = vmul.f32 %v2322, 0.35355338
    %v2331 = vmul.f32 %v2327, 0.35355338
    %v2332 = vsel %vm51, %v2330, %v49
    %v2333 = vsel %vm52, %v2331, %v50
    %v2334 = vsel %vm245, %v2332, -inf
    %2335 = vmax.xlane.f32.xlu0 %v2334
    %v2336 = vpop.xlane.xlu0 %2335
    %v2337 = vsel %vm245, %v2333, -inf
    %2338 = vmax.xlane.f32.xlu0 %v2337
    %v2339 = vpop.xlane.xlu0 %2338
    %v2340 = vsub.f32 %v2332, %v2336
    %v2341 = vsub.f32 %v2333, %v2339
    %v2342 = vmul.f32 %v2340, 1.442695
    %v2343 = vpow.pop %v2342
    %v2344 = vmul.f32 %v2341, 1.442695
    %v2345 = vpow.pop %v2344
    %v2346 = vsel %vm245, %v2343, 0.0
    %2347 = vadd.xlane.f32.xlu0 %v2346
    %v2348 = vpop.xlane.xlu0 %2347
    %v2349 = vsel %vm245, %v2345, 0.0
    %2350 = vadd.xlane.f32.xlu0 %v2349
    %v2351 = vpop.xlane.xlu0 %2350
    %v2352 = vrcp.pop %v2348
    %v2353 = vmul.f32 %v2343, %v2352
    %v2354 = vrcp.pop %v2351
    %v2355 = vmul.f32 %v2345, %v2354
    %2356 = vrot.lane.b32.xlu0 %v1663, 48
    %v2357 = vpop.permute.xlu0 %2356
    %2358 = vrot.lane.b32.xlu0 %v1668, 48
    %v2359 = vpop.permute.xlu0 %2358
    %v2363 = vsel %vm245, %v2353, 0
    %v2366 = vsel %vm245, %v2355, 0
    %2368 = vmatprep.subr.mxu0 0.0
    %2369 = vmatpush1.msra.mxu0 %v2357
    %2370 = vmatprep.subr.mxu0 0.0
    %2371 = vmatpush1.msra.mxu0 %v2359
    %2372 = vmatprep.subr.mxu0 0.0
    %2373 = vmatpush1.msra.mxu0 0.0
    %2374 = vmatprep.subr.mxu0 0.0
    %2375 = vmatpush1.msra.mxu0 0.0
    %2376 = vmatprep.subr.mxu0 0.0
    %2377 = vmatpush1.msra.mxu0 0.0
    %2378 = vmatprep.subr.mxu0 0.0
    %2379 = vmatpush1.msra.mxu0 0.0
    %2380 = vmatprep.subr.mxu0 0.0
    %2381 = vmatpush1.msra.mxu0 0.0
    %2382 = vmatprep.subr.mxu0 0.0
    %2383 = vmatpush1.msra.mxu0 0.0
    %2384 = vmatprep.subr.mxu0 0.0
    %2385 = vmatpush1.msra.mxu0 0.0
    %2386 = vmatprep.subr.mxu0 0.0
    %2387 = vmatpush1.msra.mxu0 0.0
    %2388 = vmatprep.subr.mxu0 0.0
    %2389 = vmatpush1.msra.mxu0 0.0
    %2390 = vmatprep.subr.mxu0 0.0
    %2391 = vmatpush1.msra.mxu0 0.0
    %2392 = vmatprep.subr.mxu0 0.0
    %2393 = vmatpush1.msra.mxu0 0.0
    %2394 = vmatprep.subr.mxu0 0.0
    %2395 = vmatpush1.msra.mxu0 0.0
    %2396 = vmatprep.subr.mxu0 0.0
    %2397 = vmatpush1.msra.mxu0 0.0
    %2398 = vmatprep.subr.mxu0 0.0
    %2399 = vmatpush1.msra.mxu0 0.0
    %2400 = vmatprep.subr.mxu0 0.0
    %2401 = vmatpush1.msra.mxu0 0.0
    %2402 = vmatprep.subr.mxu0 0.0
    %2403 = vmatpush1.msra.mxu0 0.0
    %2404 = vmatprep.subr.mxu0 0.0
    %2405 = vmatpush1.msra.mxu0 0.0
    %2406 = vmatprep.subr.mxu0 0.0
    %2407 = vmatpush1.msra.mxu0 0.0
    %2408 = vmatprep.subr.mxu0 0.0
    %2409 = vmatpush1.msra.mxu0 0.0
    %2410 = vmatprep.subr.mxu0 0.0
    %2411 = vmatpush1.msra.mxu0 0.0
    %2412 = vmatprep.subr.mxu0 0.0
    %2413 = vmatpush1.msra.mxu0 0.0
    %2414 = vmatprep.subr.mxu0 0.0
    %2415 = vmatpush1.msra.mxu0 0.0
    %2416 = vmatprep.subr.mxu0 0.0
    %2417 = vmatpush1.msra.mxu0 0.0
    %2418 = vmatprep.subr.mxu0 0.0
    %2419 = vmatpush1.msra.mxu0 0.0
    %2420 = vmatprep.subr.mxu0 0.0
    %2421 = vmatpush1.msra.mxu0 0.0
    %2422 = vmatprep.subr.mxu0 0.0
    %2423 = vmatpush1.msra.mxu0 0.0
    %2424 = vmatprep.subr.mxu0 0.0
    %2425 = vmatpush1.msra.mxu0 0.0
    %2426 = vmatprep.subr.mxu0 0.0
    %2427 = vmatpush1.msra.mxu0 0.0
    %2428 = vmatprep.subr.mxu0 0.0
    %2429 = vmatpush1.msra.mxu0 0.0
    %2430 = vmatprep.subr.mxu0 0.0
    %2431 = vmatpush1.msra.mxu0 0.0
    %2432 = vmatprep.mubr.f32.mxu0 0.0
    %2433 = vmatmul.mubr.f32.gmra.mrb[0].mxu0 %v2363
    %v2434 = vpop.f32.mrb[0].mxu0
    %v2435 = vadd.f32 0.0, %v2434
    %v2436 = vpop.f32.mrb[0].mxu0
    %2437 = vmatprep.mubr.f32.mxu0 0.0
    %2438 = vmatmul.mubr.f32.gmra.mrb[0].mxu0 %v2366
    %v2439 = vpop.f32.mrb[0].mxu0
    %v2440 = vadd.f32 0.0, %v2439
    %v2441 = vpop.f32.mrb[0].mxu0
    %2442 = vdwg.mxu0
    %v2444 = vsel %vm157, %v2435, 0
    %v2447 = vsel %vm157, %v2440, 0
    %2449 = vmatprep.subr.mxu0 0.0
    %2450 = vmatpush1.msra.mxu0 %v1580
    %2451 = vmatprep.subr.mxu0 0.0
    %2452 = vmatpush1.msra.mxu0 0.0
    %2453 = vmatprep.subr.mxu0 0.0
    %2454 = vmatpush1.msra.mxu0 0.0
    %2455 = vmatprep.subr.mxu0 0.0
    %2456 = vmatpush1.msra.mxu0 0.0
    %2457 = vmatprep.subr.mxu0 0.0
    %2458 = vmatpush1.msra.mxu0 0.0
    %2459 = vmatprep.subr.mxu0 0.0
    %2460 = vmatpush1.msra.mxu0 0.0
    %2461 = vmatprep.subr.mxu0 0.0
    %2462 = vmatpush1.msra.mxu0 0.0
    %2463 = vmatprep.subr.mxu0 0.0
    %2464 = vmatpush1.msra.mxu0 0.0
    %2465 = vmatprep.subr.mxu0 0.0
    %2466 = vmatpush1.msra.mxu0 0.0
    %2467 = vmatprep.subr.mxu0 0.0
    %2468 = vmatpush1.msra.mxu0 0.0
    %2469 = vmatprep.subr.mxu0 0.0
    %2470 = vmatpush1.msra.mxu0 0.0
    %2471 = vmatprep.subr.mxu0 0.0
    %2472 = vmatpush1.msra.mxu0 0.0
    %2473 = vmatprep.subr.mxu0 0.0
    %2474 = vmatpush1.msra.mxu0 0.0
    %2475 = vmatprep.subr.mxu0 0.0
    %2476 = vmatpush1.msra.mxu0 0.0
    %2477 = vmatprep.subr.mxu0 0.0
    %2478 = vmatpush1.msra.mxu0 0.0
    %2479 = vmatprep.subr.mxu0 0.0
    %2480 = vmatpush1.msra.mxu0 0.0
    %2481 = vmatprep.subr.mxu0 0.0
    %2482 = vmatpush1.msra.mxu0 0.0
    %2483 = vmatprep.subr.mxu0 0.0
    %2484 = vmatpush1.msra.mxu0 0.0
    %2485 = vmatprep.subr.mxu0 0.0
    %2486 = vmatpush1.msra.mxu0 0.0
    %2487 = vmatprep.subr.mxu0 0.0
    %2488 = vmatpush1.msra.mxu0 0.0
    %2489 = vmatprep.subr.mxu0 0.0
    %2490 = vmatpush1.msra.mxu0 0.0
    %2491 = vmatprep.subr.mxu0 0.0
    %2492 = vmatpush1.msra.mxu0 0.0
    %2493 = vmatprep.subr.mxu0 0.0
    %2494 = vmatpush1.msra.mxu0 0.0
    %2495 = vmatprep.subr.mxu0 0.0
    %2496 = vmatpush1.msra.mxu0 0.0
    %2497 = vmatprep.subr.mxu0 0.0
    %2498 = vmatpush1.msra.mxu0 0.0
    %2499 = vmatprep.subr.mxu0 0.0
    %2500 = vmatpush1.msra.mxu0 0.0
    %2501 = vmatprep.subr.mxu0 0.0
    %2502 = vmatpush1.msra.mxu0 0.0
    %2503 = vmatprep.subr.mxu0 0.0
    %2504 = vmatpush1.msra.mxu0 0.0
    %2505 = vmatprep.subr.mxu0 0.0
    %2506 = vmatpush1.msra.mxu0 0.0
    %2507 = vmatprep.subr.mxu0 0.0
    %2508 = vmatpush1.msra.mxu0 0.0
    %2509 = vmatprep.subr.mxu0 0.0
    %2510 = vmatpush1.msra.mxu0 0.0
    %2511 = vmatprep.subr.mxu0 0.0
    %2512 = vmatpush1.msra.mxu0 0.0
    %2513 = vmatprep.mubr.f32.mxu0 0.0
    %2514 = vmatmul.mubr.f32.gmra.mrb[0].mxu0 %v2444
    %v2515 = vpop.f32.mrb[0].mxu0
    %v2516 = vadd.f32 0.0, %v2515
    %v2517 = vpop.f32.mrb[0].mxu0
    %2518 = vmatprep.mubr.f32.mxu0 0.0
    %2519 = vmatmul.mubr.f32.gmra.mrb[0].mxu0 %v2447
    %v2520 = vpop.f32.mrb[0].mxu0
    %v2521 = vadd.f32 0.0, %v2520
    %v2522 = vpop.f32.mrb[0].mxu0
    %2523 = vdwg.mxu0
    %v2524 = vadd.f32 %v2231, %v2516
    %v2525 = vadd.f32 %v2236, %v2521
    %2526 = vrot.lane.b32.xlu0 %v1663, 104
    %v2527 = vpop.permute.xlu0 %2526
    %2528 = vrot.lane.b32.xlu0 %v1668, 104
    %v2529 = vpop.permute.xlu0 %2528
    %2530 = vrot.lane.b32.xlu0 %v1663, 72
    %v2531 = vpop.permute.xlu0 %2530
    %2532 = vrot.lane.b32.xlu0 %v1668, 72
    %v2533 = vpop.permute.xlu0 %2532
    %v2534 = vsel %vm157, %v2527, 0
    %v2536 = vsel %vm157, %v2529, 0
    %v2538 = vsel %vm157, %v2531, 0
    %v2540 = vsel %vm157, %v2533, 0
    %2542 = vmatprep.subr.mxu0 0.0
    %2543 = vmatpush1.xpose.msra.mxu0 %v2538
    %2544 = vmatprep.subr.mxu0 0.0
    %2545 = vmatpush1.xpose.msra.mxu0 %v2540
    %2546 = vmatprep.subr.mxu0 0.0
    %2547 = vmatpush1.xpose.msra.mxu0 0.0
    %2548 = vmatprep.subr.mxu0 0.0
    %2549 = vmatpush1.xpose.msra.mxu0 0.0
    %2550 = vmatprep.subr.mxu0 0.0
    %2551 = vmatpush1.xpose.msra.mxu0 0.0
    %2552 = vmatprep.subr.mxu0 0.0
    %2553 = vmatpush1.xpose.msra.mxu0 0.0
    %2554 = vmatprep.subr.mxu0 0.0
    %2555 = vmatpush1.xpose.msra.mxu0 0.0
    %2556 = vmatprep.subr.mxu0 0.0
    %2557 = vmatpush1.xpose.msra.mxu0 0.0
    %2558 = vmatprep.subr.mxu0 0.0
    %2559 = vmatpush1.xpose.msra.mxu0 0.0
    %2560 = vmatprep.subr.mxu0 0.0
    %2561 = vmatpush1.xpose.msra.mxu0 0.0
    %2562 = vmatprep.subr.mxu0 0.0
    %2563 = vmatpush1.xpose.msra.mxu0 0.0
    %2564 = vmatprep.subr.mxu0 0.0
    %2565 = vmatpush1.xpose.msra.mxu0 0.0
    %2566 = vmatprep.subr.mxu0 0.0
    %2567 = vmatpush1.xpose.msra.mxu0 0.0
    %2568 = vmatprep.subr.mxu0 0.0
    %2569 = vmatpush1.xpose.msra.mxu0 0.0
    %2570 = vmatprep.subr.mxu0 0.0
    %2571 = vmatpush1.xpose.msra.mxu0 0.0
    %2572 = vmatprep.subr.mxu0 0.0
    %2573 = vmatpush1.xpose.msra.mxu0 0.0
    %2574 = vmatprep.subr.mxu0 0.0
    %2575 = vmatpush1.xpose.msra.mxu0 0.0
    %2576 = vmatprep.subr.mxu0 0.0
    %2577 = vmatpush1.xpose.msra.mxu0 0.0
    %2578 = vmatprep.subr.mxu0 0.0
    %2579 = vmatpush1.xpose.msra.mxu0 0.0
    %2580 = vmatprep.subr.mxu0 0.0
    %2581 = vmatpush1.xpose.msra.mxu0 0.0
    %2582 = vmatprep.subr.mxu0 0.0
    %2583 = vmatpush1.xpose.msra.mxu0 0.0
    %2584 = vmatprep.subr.mxu0 0.0
    %2585 = vmatpush1.xpose.msra.mxu0 0.0
    %2586 = vmatprep.subr.mxu0 0.0
    %2587 = vmatpush1.xpose.msra.mxu0 0.0
    %2588 = vmatprep.subr.mxu0 0.0
    %2589 = vmatpush1.xpose.msra.mxu0 0.0
    %2590 = vmatprep.subr.mxu0 0.0
    %2591 = vmatpush1.xpose.msra.mxu0 0.0
    %2592 = vmatprep.subr.mxu0 0.0
    %2593 = vmatpush1.xpose.msra.mxu0 0.0
    %2594 = vmatprep.subr.mxu0 0.0
    %2595 = vmatpush1.xpose.msra.mxu0 0.0
    %2596 = vmatprep.subr.mxu0 0.0
    %2597 = vmatpush1.xpose.msra.mxu0 0.0
    %2598 = vmatprep.subr.mxu0 0.0
    %2599 = vmatpush1.xpose.msra.mxu0 0.0
    %2600 = vmatprep.subr.mxu0 0.0
    %2601 = vmatpush1.xpose.msra.mxu0 0.0
    %2602 = vmatprep.subr.mxu0 0.0
    %2603 = vmatpush1.xpose.msra.mxu0 0.0
    %2604 = vmatprep.subr.mxu0 0.0
    %2605 = vmatpush1.xpose.msra.mxu0 0.0
    %2606 = vmatprep.mubr.f32.mxu0 0.0
    %2607 = vmatmul.mubr.f32.gmra.mrb[0].mxu0 %v2534
    %v2608 = vpop.f32.mrb[0].mxu0
    %v2609 = vadd.f32 0.0, %v2608
    %v2610 = vpop.f32.mrb[0].mxu0
    %2611 = vmatprep.mubr.f32.mxu0 0.0
    %2612 = vmatmul.mubr.f32.gmra.mrb[0].mxu0 %v2536
    %v2613 = vpop.f32.mrb[0].mxu0
    %v2614 = vadd.f32 0.0, %v2613
    %v2615 = vpop.f32.mrb[0].mxu0
    %2616 = vdwg.mxu0
    %v2617 = vmul.f32 %v2609, 0.35355338
    %v2618 = vmul.f32 %v2614, 0.35355338
    %v2619 = vsel %vm51, %v2617, %v49
    %v2620 = vsel %vm52, %v2618, %v50
    %v2621 = vsel %vm245, %v2619, -inf
    %2622 = vmax.xlane.f32.xlu0 %v2621
    %v2623 = vpop.xlane.xlu0 %2622
    %v2624 = vsel %vm245, %v2620, -inf
    %2625 = vmax.xlane.f32.xlu0 %v2624
    %v2626 = vpop.xlane.xlu0 %2625
    %v2627 = vsub.f32 %v2619, %v2623
    %v2628 = vsub.f32 %v2620, %v2626
    %v2629 = vmul.f32 %v2627, 1.442695
    %v2630 = vpow.pop %v2629
    %v2631 = vmul.f32 %v2628, 1.442695
    %v2632 = vpow.pop %v2631
    %v2633 = vsel %vm245, %v2630, 0.0
    %2634 = vadd.xlane.f32.xlu0 %v2633
    %v2635 = vpop.xlane.xlu0 %2634
    %v2636 = vsel %vm245, %v2632, 0.0
    %2637 = vadd.xlane.f32.xlu0 %v2636
    %v2638 = vpop.xlane.xlu0 %2637
    %v2639 = vrcp.pop %v2635
    %v2640 = vmul.f32 %v2630, %v2639
    %v2641 = vrcp.pop %v2638
    %v2642 = vmul.f32 %v2632, %v2641
    %2643 = vrot.lane.b32.xlu0 %v1663, 40
    %v2644 = vpop.permute.xlu0 %2643
    %2645 = vrot.lane.b32.xlu0 %v1668, 40
    %v2646 = vpop.permute.xlu0 %2645
    %v2650 = vsel %vm245, %v2640, 0
    %v2653 = vsel %vm245, %v2642, 0
    %2655 = vmatprep.subr.mxu0 0.0
    %2656 = vmatpush1.msra.mxu0 %v2644
    %2657 = vmatprep.subr.mxu0 0.0
    %2658 = vmatpush1.msra.mxu0 %v2646
    %2659 = vmatprep.subr.mxu0 0.0
    %2660 = vmatpush1.msra.mxu0 0.0
    %2661 = vmatprep.subr.mxu0 0.0
    %2662 = vmatpush1.msra.mxu0 0.0
    %2663 = vmatprep.subr.mxu0 0.0
    %2664 = vmatpush1.msra.mxu0 0.0
    %2665 = vmatprep.subr.mxu0 0.0
    %2666 = vmatpush1.msra.mxu0 0.0
    %2667 = vmatprep.subr.mxu0 0.0
    %2668 = vmatpush1.msra.mxu0 0.0
    %2669 = vmatprep.subr.mxu0 0.0
    %2670 = vmatpush1.msra.mxu0 0.0
    %2671 = vmatprep.subr.mxu0 0.0
    %2672 = vmatpush1.msra.mxu0 0.0
    %2673 = vmatprep.subr.mxu0 0.0
    %2674 = vmatpush1.msra.mxu0 0.0
    %2675 = vmatprep.subr.mxu0 0.0
    %2676 = vmatpush1.msra.mxu0 0.0
    %2677 = vmatprep.subr.mxu0 0.0
    %2678 = vmatpush1.msra.mxu0 0.0
    %2679 = vmatprep.subr.mxu0 0.0
    %2680 = vmatpush1.msra.mxu0 0.0
    %2681 = vmatprep.subr.mxu0 0.0
    %2682 = vmatpush1.msra.mxu0 0.0
    %2683 = vmatprep.subr.mxu0 0.0
    %2684 = vmatpush1.msra.mxu0 0.0
    %2685 = vmatprep.subr.mxu0 0.0
    %2686 = vmatpush1.msra.mxu0 0.0
    %2687 = vmatprep.subr.mxu0 0.0
    %2688 = vmatpush1.msra.mxu0 0.0
    %2689 = vmatprep.subr.mxu0 0.0
    %2690 = vmatpush1.msra.mxu0 0.0
    %2691 = vmatprep.subr.mxu0 0.0
    %2692 = vmatpush1.msra.mxu0 0.0
    %2693 = vmatprep.subr.mxu0 0.0
    %2694 = vmatpush1.msra.mxu0 0.0
    %2695 = vmatprep.subr.mxu0 0.0
    %2696 = vmatpush1.msra.mxu0 0.0
    %2697 = vmatprep.subr.mxu0 0.0
    %2698 = vmatpush1.msra.mxu0 0.0
    %2699 = vmatprep.subr.mxu0 0.0
    %2700 = vmatpush1.msra.mxu0 0.0
    %2701 = vmatprep.subr.mxu0 0.0
    %2702 = vmatpush1.msra.mxu0 0.0
    %2703 = vmatprep.subr.mxu0 0.0
    %2704 = vmatpush1.msra.mxu0 0.0
    %2705 = vmatprep.subr.mxu0 0.0
    %2706 = vmatpush1.msra.mxu0 0.0
    %2707 = vmatprep.subr.mxu0 0.0
    %2708 = vmatpush1.msra.mxu0 0.0
    %2709 = vmatprep.subr.mxu0 0.0
    %2710 = vmatpush1.msra.mxu0 0.0
    %2711 = vmatprep.subr.mxu0 0.0
    %2712 = vmatpush1.msra.mxu0 0.0
    %2713 = vmatprep.subr.mxu0 0.0
    %2714 = vmatpush1.msra.mxu0 0.0
    %2715 = vmatprep.subr.mxu0 0.0
    %2716 = vmatpush1.msra.mxu0 0.0
    %2717 = vmatprep.subr.mxu0 0.0
    %2718 = vmatpush1.msra.mxu0 0.0
    %2719 = vmatprep.mubr.f32.mxu0 0.0
    %2720 = vmatmul.mubr.f32.gmra.mrb[0].mxu0 %v2650
    %v2721 = vpop.f32.mrb[0].mxu0
    %v2722 = vadd.f32 0.0, %v2721
    %v2723 = vpop.f32.mrb[0].mxu0
    %2724 = vmatprep.mubr.f32.mxu0 0.0
    %2725 = vmatmul.mubr.f32.gmra.mrb[0].mxu0 %v2653
    %v2726 = vpop.f32.mrb[0].mxu0
    %v2727 = vadd.f32 0.0, %v2726
    %v2728 = vpop.f32.mrb[0].mxu0
    %2729 = vdwg.mxu0
    %v2731 = vsel %vm157, %v2722, 0
    %v2734 = vsel %vm157, %v2727, 0
    %2736 = vmatprep.subr.mxu0 0.0
    %2737 = vmatpush1.msra.mxu0 %v1581
    %2738 = vmatprep.subr.mxu0 0.0
    %2739 = vmatpush1.msra.mxu0 0.0
    %2740 = vmatprep.subr.mxu0 0.0
    %2741 = vmatpush1.msra.mxu0 0.0
    %2742 = vmatprep.subr.mxu0 0.0
    %2743 = vmatpush1.msra.mxu0 0.0
    %2744 = vmatprep.subr.mxu0 0.0
    %2745 = vmatpush1.msra.mxu0 0.0
    %2746 = vmatprep.subr.mxu0 0.0
    %2747 = vmatpush1.msra.mxu0 0.0
    %2748 = vmatprep.subr.mxu0 0.0
    %2749 = vmatpush1.msra.mxu0 0.0
    %2750 = vmatprep.subr.mxu0 0.0
    %2751 = vmatpush1.msra.mxu0 0.0
    %2752 = vmatprep.subr.mxu0 0.0
    %2753 = vmatpush1.msra.mxu0 0.0
    %2754 = vmatprep.subr.mxu0 0.0
    %2755 = vmatpush1.msra.mxu0 0.0
    %2756 = vmatprep.subr.mxu0 0.0
    %2757 = vmatpush1.msra.mxu0 0.0
    %2758 = vmatprep.subr.mxu0 0.0
    %2759 = vmatpush1.msra.mxu0 0.0
    %2760 = vmatprep.subr.mxu0 0.0
    %2761 = vmatpush1.msra.mxu0 0.0
    %2762 = vmatprep.subr.mxu0 0.0
    %2763 = vmatpush1.msra.mxu0 0.0
    %2764 = vmatprep.subr.mxu0 0.0
    %2765 = vmatpush1.msra.mxu0 0.0
    %2766 = vmatprep.subr.mxu0 0.0
    %2767 = vmatpush1.msra.mxu0 0.0
    %2768 = vmatprep.subr.mxu0 0.0
    %2769 = vmatpush1.msra.mxu0 0.0
    %2770 = vmatprep.subr.mxu0 0.0
    %2771 = vmatpush1.msra.mxu0 0.0
    %2772 = vmatprep.subr.mxu0 0.0
    %2773 = vmatpush1.msra.mxu0 0.0
    %2774 = vmatprep.subr.mxu0 0.0
    %2775 = vmatpush1.msra.mxu0 0.0
    %2776 = vmatprep.subr.mxu0 0.0
    %2777 = vmatpush1.msra.mxu0 0.0
    %2778 = vmatprep.subr.mxu0 0.0
    %2779 = vmatpush1.msra.mxu0 0.0
    %2780 = vmatprep.subr.mxu0 0.0
    %2781 = vmatpush1.msra.mxu0 0.0
    %2782 = vmatprep.subr.mxu0 0.0
    %2783 = vmatpush1.msra.mxu0 0.0
    %2784 = vmatprep.subr.mxu0 0.0
    %2785 = vmatpush1.msra.mxu0 0.0
    %2786 = vmatprep.subr.mxu0 0.0
    %2787 = vmatpush1.msra.mxu0 0.0
    %2788 = vmatprep.subr.mxu0 0.0
    %2789 = vmatpush1.msra.mxu0 0.0
    %2790 = vmatprep.subr.mxu0 0.0
    %2791 = vmatpush1.msra.mxu0 0.0
    %2792 = vmatprep.subr.mxu0 0.0
    %2793 = vmatpush1.msra.mxu0 0.0
    %2794 = vmatprep.subr.mxu0 0.0
    %2795 = vmatpush1.msra.mxu0 0.0
    %2796 = vmatprep.subr.mxu0 0.0
    %2797 = vmatpush1.msra.mxu0 0.0
    %2798 = vmatprep.subr.mxu0 0.0
    %2799 = vmatpush1.msra.mxu0 0.0
    %2800 = vmatprep.mubr.f32.mxu0 0.0
    %2801 = vmatmul.mubr.f32.gmra.mrb[0].mxu0 %v2731
    %v2802 = vpop.f32.mrb[0].mxu0
    %v2803 = vadd.f32 0.0, %v2802
    %v2804 = vpop.f32.mrb[0].mxu0
    %2805 = vmatprep.mubr.f32.mxu0 0.0
    %2806 = vmatmul.mubr.f32.gmra.mrb[0].mxu0 %v2734
    %v2807 = vpop.f32.mrb[0].mxu0
    %v2808 = vadd.f32 0.0, %v2807
    %v2809 = vpop.f32.mrb[0].mxu0
    %2810 = vdwg.mxu0
    %v2811 = vadd.f32 %v2524, %v2803
    %v2812 = vadd.f32 %v2525, %v2808
    %v2813 = vlaneseq
    %v2814 = vshrl.u32 %v2813, 7
    %v2815 = vsub.s32 0, %v2814
    %v2816 = vrot.slane %v1583, %v2815
    %v2817 = vadd.f32 %v2811, %v2816
    %v2818 = vadd.f32 %v2812, %v2816
    %v2819 = vadd.f32 %v1568, %v2817
    %v2820 = vadd.f32 %v1569, %v2818
    %v2821 = vsel %vm69, %v2819, 0.0
    %2822 = vadd.xlane.f32.xlu0 %v2821
    %v2823 = vpop.xlane.xlu0 %2822
    %v2824 = vsel %vm69, %v2820, 0.0
    %2825 = vadd.xlane.f32.xlu0 %v2824
    %v2826 = vpop.xlane.xlu0 %2825
    %v2827 = vmul.f32 %v2823, %v1309
    %v2828 = vmul.f32 %v2826, %v1309
    %v2829 = vsub.f32 %v2819, %v2827
    %v2830 = vsub.f32 %v2820, %v2828
    %v2831 = vmul.f32 %v2829, %v2829
    %v2832 = vmul.f32 %v2830, %v2830
    %v2833 = vsel %vm69, %v2831, 0.0
    %2834 = vadd.xlane.f32.xlu0 %v2833
    %v2835 = vpop.xlane.xlu0 %2834
    %v2836 = vsel %vm69, %v2832, 0.0
    %2837 = vadd.xlane.f32.xlu0 %v2836
    %v2838 = vpop.xlane.xlu0 %2837
    %v2839 = vmul.f32 %v2835, %v1309
    %v2840 = vmul.f32 %v2838, %v1309
    %v2841 = vadd.f32 %v2839, 1e-05
    %v2842 = vadd.f32 %v2840, 1e-05
    %v2843 = vrsqrt.pop %v2841
    %v2844 = vrsqrt.pop %v2842
    %v2845 = vmul.f32 %v2829, %v2843
    %v2846 = vmul.f32 %v2830, %v2844
    %v2847 = vlaneseq
    %v2848 = vshrl.u32 %v2847, 7
    %v2849 = vsub.s32 1, %v2848
    %v2850 = vrot.slane %v1583, %v2849
    %v2851 = vmul.f32 %v2845, %v2850
    %v2852 = vmul.f32 %v2846, %v2850
    %v2853 = vlaneseq
    %v2854 = vshrl.u32 %v2853, 7
    %v2855 = vsub.s32 2, %v2854
    %v2856 = vrot.slane %v1583, %v2855
    %v2857 = vadd.f32 %v2851, %v2856
    %v2858 = vadd.f32 %v2852, %v2856
    %s2859 = scalar_lea.vmem %s5, 32
    %v2860 = vld [vmem:[%s2859] sm:$0xff]
    %v2861 = vld [vmem:[%s2859 + $0x8] sm:$0xff]
    %v2862 = vld [vmem:[%s2859 + $0x10] sm:$0xff]
    %v2863 = vld [vmem:[%s2859 + $0x18] sm:$0xff]
    %s2864 = scalar_lea.vmem %s6, 1
    %v2865 = vld [vmem:[%s2864] sm:$0x1]
    %v2867 = vlaneseq
    %v2868 = vshrl.u32 %v2867, 7
    %v2869 = vsub.s32 0, %v2868
    %v2870 = vrot.slane %v2865, %v2869
    %v2873 = vsel %vm69, %v2857, 0
    %v2876 = vsel %vm69, %v2858, 0
    %2878 = vmatprep.subr.mxu0 0.0
    %2879 = vmatpush1.msra.mxu0 %v2860
    %2880 = vmatprep.subr.mxu0 0.0
    %2881 = vmatpush1.msra.mxu0 %v2861
    %2882 = vmatprep.subr.mxu0 0.0
    %2883 = vmatpush1.msra.mxu0 %v2862
    %2884 = vmatprep.subr.mxu0 0.0
    %2885 = vmatpush1.msra.mxu0 %v2863
    %2886 = vmatprep.subr.mxu0 0.0
    %2887 = vmatpush1.msra.mxu0 0.0
    %2888 = vmatprep.subr.mxu0 0.0
    %2889 = vmatpush1.msra.mxu0 0.0
    %2890 = vmatprep.subr.mxu0 0.0
    %2891 = vmatpush1.msra.mxu0 0.0
    %2892 = vmatprep.subr.mxu0 0.0
    %2893 = vmatpush1.msra.mxu0 0.0
    %2894 = vmatprep.subr.mxu0 0.0
    %2895 = vmatpush1.msra.mxu0 0.0
    %2896 = vmatprep.subr.mxu0 0.0
    %2897 = vmatpush1.msra.mxu0 0.0
    %2898 = vmatprep.subr.mxu0 0.0
    %2899 = vmatpush1.msra.mxu0 0.0
    %2900 = vmatprep.subr.mxu0 0.0
    %2901 = vmatpush1.msra.mxu0 0.0
    %2902 = vmatprep.subr.mxu0 0.0
    %2903 = vmatpush1.msra.mxu0 0.0
    %2904 = vmatprep.subr.mxu0 0.0
    %2905 = vmatpush1.msra.mxu0 0.0
    %2906 = vmatprep.subr.mxu0 0.0
    %2907 = vmatpush1.msra.mxu0 0.0
    %2908 = vmatprep.subr.mxu0 0.0
    %2909 = vmatpush1.msra.mxu0 0.0
    %2910 = vmatprep.subr.mxu0 0.0
    %2911 = vmatpush1.msra.mxu0 0.0
    %2912 = vmatprep.subr.mxu0 0.0
    %2913 = vmatpush1.msra.mxu0 0.0
    %2914 = vmatprep.subr.mxu0 0.0
    %2915 = vmatpush1.msra.mxu0 0.0
    %2916 = vmatprep.subr.mxu0 0.0
    %2917 = vmatpush1.msra.mxu0 0.0
    %2918 = vmatprep.subr.mxu0 0.0
    %2919 = vmatpush1.msra.mxu0 0.0
    %2920 = vmatprep.subr.mxu0 0.0
    %2921 = vmatpush1.msra.mxu0 0.0
    %2922 = vmatprep.subr.mxu0 0.0
    %2923 = vmatpush1.msra.mxu0 0.0
    %2924 = vmatprep.subr.mxu0 0.0
    %2925 = vmatpush1.msra.mxu0 0.0
    %2926 = vmatprep.subr.mxu0 0.0
    %2927 = vmatpush1.msra.mxu0 0.0
    %2928 = vmatprep.subr.mxu0 0.0
    %2929 = vmatpush1.msra.mxu0 0.0
    %2930 = vmatprep.subr.mxu0 0.0
    %2931 = vmatpush1.msra.mxu0 0.0
    %2932 = vmatprep.subr.mxu0 0.0
    %2933 = vmatpush1.msra.mxu0 0.0
    %2934 = vmatprep.subr.mxu0 0.0
    %2935 = vmatpush1.msra.mxu0 0.0
    %2936 = vmatprep.subr.mxu0 0.0
    %2937 = vmatpush1.msra.mxu0 0.0
    %2938 = vmatprep.subr.mxu0 0.0
    %2939 = vmatpush1.msra.mxu0 0.0
    %2940 = vmatprep.subr.mxu0 0.0
    %2941 = vmatpush1.msra.mxu0 0.0
    %2942 = vmatprep.mubr.f32.mxu0 0.0
    %2943 = vmatmul.mubr.f32.gmra.mrb[0].mxu0 %v2873
    %v2944 = vpop.f32.mrb[0].mxu0
    %v2945 = vadd.f32 %v2870, %v2944
    %v2946 = vpop.f32.mrb[0].mxu0
    %2947 = vmatprep.mubr.f32.mxu0 0.0
    %2948 = vmatmul.mubr.f32.gmra.mrb[0].mxu0 %v2876
    %v2949 = vpop.f32.mrb[0].mxu0
    %v2950 = vadd.f32 %v2870, %v2949
    %v2951 = vpop.f32.mrb[0].mxu0
    %2952 = vdwg.mxu0
    %v2953 = vmax.f32 %v2945, 0.0
    %v2954 = vmax.f32 %v2950, 0.0
    %s2955 = scalar_lea.vmem %s7, 64
    %v2956 = vld [vmem:[%s2955] sm:$0xff]
    %v2957 = vld [vmem:[%s2955 + $0x8] sm:$0xff]
    %v2958 = vld [vmem:[%s2955 + $0x10] sm:$0xff]
    %v2959 = vld [vmem:[%s2955 + $0x18] sm:$0xff]
    %v2960 = vld [vmem:[%s2955 + $0x20] sm:$0xff]
    %v2961 = vld [vmem:[%s2955 + $0x28] sm:$0xff]
    %v2962 = vld [vmem:[%s2955 + $0x30] sm:$0xff]
    %v2963 = vld [vmem:[%s2955 + $0x38] sm:$0xff]
    %v2964 = vlaneseq
    %v2965 = vshrl.u32 %v2964, 7
    %v2966 = vsub.s32 3, %v2965
    %v2967 = vrot.slane %v1583, %v2966
    %v2969 = vsel %vm1448, %v2953, 0
    %v2972 = vsel %vm1448, %v2954, 0
    %2974 = vmatprep.subr.mxu0 0.0
    %2975 = vmatpush1.msra.mxu0 %v2956
    %2976 = vmatprep.subr.mxu0 0.0
    %2977 = vmatpush1.msra.mxu0 %v2957
    %2978 = vmatprep.subr.mxu0 0.0
    %2979 = vmatpush1.msra.mxu0 %v2958
    %2980 = vmatprep.subr.mxu0 0.0
    %2981 = vmatpush1.msra.mxu0 %v2959
    %2982 = vmatprep.subr.mxu0 0.0
    %2983 = vmatpush1.msra.mxu0 %v2960
    %2984 = vmatprep.subr.mxu0 0.0
    %2985 = vmatpush1.msra.mxu0 %v2961
    %2986 = vmatprep.subr.mxu0 0.0
    %2987 = vmatpush1.msra.mxu0 %v2962
    %2988 = vmatprep.subr.mxu0 0.0
    %2989 = vmatpush1.msra.mxu0 %v2963
    %2990 = vmatprep.subr.mxu0 0.0
    %2991 = vmatpush1.msra.mxu0 0.0
    %2992 = vmatprep.subr.mxu0 0.0
    %2993 = vmatpush1.msra.mxu0 0.0
    %2994 = vmatprep.subr.mxu0 0.0
    %2995 = vmatpush1.msra.mxu0 0.0
    %2996 = vmatprep.subr.mxu0 0.0
    %2997 = vmatpush1.msra.mxu0 0.0
    %2998 = vmatprep.subr.mxu0 0.0
    %2999 = vmatpush1.msra.mxu0 0.0
    %3000 = vmatprep.subr.mxu0 0.0
    %3001 = vmatpush1.msra.mxu0 0.0
    %3002 = vmatprep.subr.mxu0 0.0
    %3003 = vmatpush1.msra.mxu0 0.0
    %3004 = vmatprep.subr.mxu0 0.0
    %3005 = vmatpush1.msra.mxu0 0.0
    %3006 = vmatprep.subr.mxu0 0.0
    %3007 = vmatpush1.msra.mxu0 0.0
    %3008 = vmatprep.subr.mxu0 0.0
    %3009 = vmatpush1.msra.mxu0 0.0
    %3010 = vmatprep.subr.mxu0 0.0
    %3011 = vmatpush1.msra.mxu0 0.0
    %3012 = vmatprep.subr.mxu0 0.0
    %3013 = vmatpush1.msra.mxu0 0.0
    %3014 = vmatprep.subr.mxu0 0.0
    %3015 = vmatpush1.msra.mxu0 0.0
    %3016 = vmatprep.subr.mxu0 0.0
    %3017 = vmatpush1.msra.mxu0 0.0
    %3018 = vmatprep.subr.mxu0 0.0
    %3019 = vmatpush1.msra.mxu0 0.0
    %3020 = vmatprep.subr.mxu0 0.0
    %3021 = vmatpush1.msra.mxu0 0.0
    %3022 = vmatprep.subr.mxu0 0.0
    %3023 = vmatpush1.msra.mxu0 0.0
    %3024 = vmatprep.subr.mxu0 0.0
    %3025 = vmatpush1.msra.mxu0 0.0
    %3026 = vmatprep.subr.mxu0 0.0
    %3027 = vmatpush1.msra.mxu0 0.0
    %3028 = vmatprep.subr.mxu0 0.0
    %3029 = vmatpush1.msra.mxu0 0.0
    %3030 = vmatprep.subr.mxu0 0.0
    %3031 = vmatpush1.msra.mxu0 0.0
    %3032 = vmatprep.subr.mxu0 0.0
    %3033 = vmatpush1.msra.mxu0 0.0
    %3034 = vmatprep.subr.mxu0 0.0
    %3035 = vmatpush1.msra.mxu0 0.0
    %3036 = vmatprep.subr.mxu0 0.0
    %3037 = vmatpush1.msra.mxu0 0.0
    %3038 = vmatprep.mubr.f32.mxu0 0.0
    %3039 = vmatmul.mubr.f32.gmra.mrb[0].mxu0 %v2969
    %v3040 = vpop.f32.mrb[0].mxu0
    %v3041 = vadd.f32 %v2967, %v3040
    %v3042 = vpop.f32.mrb[0].mxu0
    %3043 = vmatprep.mubr.f32.mxu0 0.0
    %3044 = vmatmul.mubr.f32.gmra.mrb[0].mxu0 %v2972
    %v3045 = vpop.f32.mrb[0].mxu0
    %v3046 = vadd.f32 %v2967, %v3045
    %v3047 = vpop.f32.mrb[0].mxu0
    %3048 = vdwg.mxu0
    %v3049 = vadd.f32 %v2857, %v3041
    %v3050 = vadd.f32 %v2858, %v3046
    %v3051 = vsel %vm69, %v3049, 0.0
    %3052 = vadd.xlane.f32.xlu0 %v3051
    %v3053 = vpop.xlane.xlu0 %3052
    %v3054 = vsel %vm69, %v3050, 0.0
    %3055 = vadd.xlane.f32.xlu0 %v3054
    %v3056 = vpop.xlane.xlu0 %3055
    %v3057 = vmul.f32 %v3053, %v1309
    %v3058 = vmul.f32 %v3056, %v1309
    %v3059 = vsub.f32 %v3049, %v3057
    %v3060 = vsub.f32 %v3050, %v3058
    %v3061 = vmul.f32 %v3059, %v3059
    %v3062 = vmul.f32 %v3060, %v3060
    %v3063 = vsel %vm69, %v3061, 0.0
    %3064 = vadd.xlane.f32.xlu0 %v3063
    %v3065 = vpop.xlane.xlu0 %3064
    %v3066 = vsel %vm69, %v3062, 0.0
    %3067 = vadd.xlane.f32.xlu0 %v3066
    %v3068 = vpop.xlane.xlu0 %3067
    %v3069 = vmul.f32 %v3065, %v1309
    %v3070 = vmul.f32 %v3068, %v1309
    %v3071 = vadd.f32 %v3069, 1e-05
    %v3072 = vadd.f32 %v3070, 1e-05
    %v3073 = vrsqrt.pop %v3071
    %v3074 = vrsqrt.pop %v3072
    %v3075 = vmul.f32 %v3059, %v3073
    %v3076 = vmul.f32 %v3060, %v3074
    %v3077 = vlaneseq
    %v3078 = vshrl.u32 %v3077, 7
    %v3079 = vsub.s32 4, %v3078
    %v3080 = vrot.slane %v1583, %v3079
    %v3081 = vmul.f32 %v3075, %v3080
    %v3082 = vmul.f32 %v3076, %v3080
    %v3083 = vlaneseq
    %v3084 = vshrl.u32 %v3083, 7
    %v3085 = vsub.s32 5, %v3084
    %v3086 = vrot.slane %v1583, %v3085
    %v3087 = vadd.f32 %v3081, %v3086
    %v3088 = vadd.f32 %v3082, %v3086
    %3089 = vst.msk [vmem:[#allocation5] sm:$0xff] %vm69, %v3087
    %3090 = vst.msk [vmem:[#allocation5 + $0x8] sm:$0xff] %vm69, %v3088
    // Predicated region
    $region42: #{tpu_custom_call.1} parent=1 // pred_check
      _
    $region43: #{tpu_custom_call.1} parent=1 // pred_check_branch
      %3092 = sbr.rel (0) target = $region45
    $region44: #{tpu_custom_call.1} parent=1 // pred_region
      %s3094 = ssub.s32 256, 256
      %3095 = vsyncadd [#allocation4], %s3094
      %s3096 = sshll.u32 [#allocation5], 4
      %s3097 = int_to_ptr.vmem [resolvable:$true] %s3096
      %3102 = dma.vmem_to_hbm [thread:$0]  %s3097, 256, %s9, [#allocation4], 128, 128, 8
    $region45: #{tpu_custom_call.1} parent=1 // pred_fallthru
      _
    // Predicated region
    $region46: #{tpu_custom_call.1} parent=1 // pred_check
      _
    $region47: #{tpu_custom_call.1} parent=1 // pred_check_branch
      %3104 = sbr.rel (0) target = $region49
    $region48: #{tpu_custom_call.1} parent=1 // pred_region
      %3105 = dma.done [#allocation4], 256
    $region49: #{tpu_custom_call.1} parent=1 // pred_fallthru
      _
    %3106 = vsyncpa [#allocation3], 1
    %3107 = vsyncpa [#allocation4], 1

</llo_original>
